<compile_context>
chip_gen: v7x
topology: tpu7x:2x2x1
jax: 0.10.0
libtpu: 0.0.40
codegen_flags: <defaults>
</compile_context>

<pallas_src>
import functools
import math

import jax
import jax.numpy as jnp
from jax.experimental import pallas as pl
from jax.experimental.pallas import tpu as pltpu


# ----------------------------------------------------------------------------
# helpers
# ----------------------------------------------------------------------------
_ERF_P = 0.3275911
_ERF_A = (0.254829592, -0.284496736, 1.421413741, -1.453152027, 1.061405429)


def _erf(z):
    """Abramowitz & Stegun 7.1.26 erf (|err| <= 1.5e-7) — exp/mul/add only,
    guaranteed to lower on the VPU/EUP (exact GELU, matching nn.GELU())."""
    a1, a2, a3, a4, a5 = _ERF_A
    sgn = jnp.where(z >= 0.0, 1.0, -1.0)
    az = jnp.abs(z)
    t = 1.0 / (1.0 + _ERF_P * az)
    poly = ((((a5 * t + a4) * t + a3) * t + a2) * t + a1) * t
    return sgn * (1.0 - poly * jnp.exp(-az * az))


def _pick_row_tile(n_rows, target):
    """Largest multiple of 8 that divides n_rows and is <= target (or n_rows)."""
    if n_rows <= target:
        return n_rows
    t = target - (target % 8)
    while t >= 8:
        if n_rows % t == 0:
            return t
        t -= 8
    return n_rows


# ----------------------------------------------------------------------------
# fused Pallas kernel: offset conv + deformable sampling + conv + BN + GELU
# ----------------------------------------------------------------------------
def _dpm_kernel(x_ref, p_ref, woff_ref, boff_ref, wd_ref, scale_ref, shift_ref,
                o_ref, *, H, W, Wo, TM):
    # x_ref   : (1, H*W, Cin)   full channels-last feature map of this batch
    # p_ref   : (1, TM, 4*Cin)  2x2 patch slab tile (offset-conv input)
    # woff_ref: (4*Cin, 8)      offset-conv weight, boff_ref: (1, 8) bias
    # wd_ref  : (4*Cin, Cout)   deform-conv weight (bf16, tap-major rows)
    # scale/shift: (1, Cout)    folded BatchNorm affine
    # o_ref   : (1, TM, Cout)
    m = pl.program_id(1)

    x = x_ref[0]                                           # (HW, Cin)  f32
    patches = p_ref[0]                                     # (TM, 4Cin) f32

    # --- fused offset conv (Conv2d k=2,s=2,p=0 as a patch matmul) ------------
    off = jnp.dot(patches, woff_ref[...],
                  preferred_element_type=jnp.float32) + boff_ref[...]  # (TM, 8)

    # --- output-pixel coordinates for this row tile --------------------------
    rows = (m * TM + jax.lax.broadcasted_iota(jnp.int32, (TM, 1), 0)
            ).astype(jnp.float32)                          # flat index in Ho*Wo
    h0 = jnp.floor((rows + 0.5) * (1.0 / Wo))              # rows // Wo (float)
    w0 = rows - h0 * Wo                                    # rows %  Wo (float)
    hw_iota = jax.lax.broadcasted_iota(jnp.int32, (TM, H * W), 1)

    # --- deformable bilinear sampling, one 2x2 tap at a time -----------------
    # Gather is expressed as a bilinear-weighted one-hot matmul on the MXU
    # (contraction width = H*W); out-of-bounds corners get zero weight,
    # matching mmcv's deform_conv bilinear sampling exactly.
    taps = []
    for t in range(4):
        ki, kj = t // 2, t % 2
        dy = off[:, 2 * t: 2 * t + 1]                      # (TM, 1)  Δy
        dx = off[:, 2 * t + 1: 2 * t + 2]                  # (TM, 1)  Δx
        py = h0 * 2.0 + float(ki) + dy
        px = w0 * 2.0 + float(kj) + dx
        yf = jnp.floor(py)
        xf = jnp.floor(px)
        wy = py - yf
        wx = px - xf
        y0 = yf.astype(jnp.int32)
        x0 = xf.astype(jnp.int32)

        sel = jnp.zeros((TM, H * W), jnp.float32)
        for yc, xc, wgt in (
                (y0,     x0,     (1.0 - wy) * (1.0 - wx)),
                (y0,     x0 + 1, (1.0 - wy) * wx),
                (y0 + 1, x0,     wy * (1.0 - wx)),
                (y0 + 1, x0 + 1, wy * wx)):
            valid = (yc >= 0) & (yc < H) & (xc >= 0) & (xc < W)
            w_c = jnp.where(valid, wgt, 0.0)               # (TM, 1)
            sel = sel + jnp.where(hw_iota == yc * W + xc, w_c, 0.0)

        # fp32 sampling matmul (keeps bilinear interpolation accurate)
        taps.append(jnp.dot(sel, x, preferred_element_type=jnp.float32))

    im2col = jnp.concatenate(taps, axis=-1)                # (TM, 4Cin) f32

    # --- 2x2 deformable conv: bf16 operands, fp32 accumulation ---------------
    acc = jnp.dot(im2col.astype(jnp.bfloat16), wd_ref[...],
                  preferred_element_type=jnp.float32)      # (TM, Cout)

    # --- fused BatchNorm (inference affine) + exact GELU epilogue ------------
    y = acc * scale_ref[...] + shift_ref[...]
    o_ref[0] = (0.5 * y * (1.0 + _erf(y * 0.7071067811865476))).astype(o_ref.dtype)


# ----------------------------------------------------------------------------
# parameter preparation (run once, outside the hot path)
# ----------------------------------------------------------------------------
def prepare_params(raw, c_in, c_out):
    # conv weights (Cout, Cin, kh, kw) -> (kh, kw, Cin)-major matmul matrices
    w_off = jnp.transpose(raw["w_off"], (2, 3, 1, 0)).reshape(4 * c_in, 8)
    w_d = jnp.transpose(raw["w_d"], (2, 3, 1, 0)).reshape(4 * c_in, c_out)
    inv = jax.lax.rsqrt(raw["bn_var"] + 1e-5)
    scale = raw["bn_gamma"] * inv
    shift = raw["bn_beta"] - raw["bn_mean"] * scale
    return {
        "w_off": w_off.astype(jnp.float32),
        "b_off": raw["b_off"].reshape(1, 8).astype(jnp.float32),
        "w_d": w_d.astype(jnp.bfloat16),                   # bf16 MXU operand
        "scale": scale.reshape(1, c_out).astype(jnp.float32),
        "shift": shift.reshape(1, c_out).astype(jnp.float32),
    }


# ----------------------------------------------------------------------------
# module forward
# ----------------------------------------------------------------------------
def deformable_patch_merging_forward(params, x_nchw, hw_shape, *, row_tile=256):
    H, W = hw_shape
    B, C_in = x_nchw.shape[0], x_nchw.shape[1]
    L = x_nchw.shape[2] * x_nchw.shape[3]
    assert L == H * W, "input feature has wrong size"
    assert H % 2 == 0 and W % 2 == 0, f"x size ({H}*{W}) are not even."
    Ho, Wo = H // 2, W // 2
    N_out = Ho * Wo
    C_out = params["w_d"].shape[1]

    # Layout plumbing only (single XLA fusion); all compute lives in the kernel.
    x_hwc = jnp.transpose(x_nchw, (0, 2, 3, 1))            # (B, H, W, C)
    x_cl = x_hwc.reshape(B, H * W, C_in).astype(jnp.float32)
    patches = (x_hwc.reshape(B, Ho, 2, Wo, 2, C_in)
               .transpose(0, 1, 3, 2, 4, 5)
               .reshape(B, N_out, 4 * C_in).astype(jnp.float32))
    # TODO(synk): fold this 2x2 patch gather into the kernel (strided sublane
    # loads) to drop the extra HBM relayout feeding the offset conv.

    TM = _pick_row_tile(N_out, row_tile)
    grid = (B, N_out // TM)

    kern = functools.partial(_dpm_kernel, H=H, W=W, Wo=Wo, TM=TM)
    tokens = pl.pallas_call(
        kern,
        out_shape=jax.ShapeDtypeStruct((B, N_out, C_out), jnp.float32),
        grid=grid,
        in_specs=[
            pl.BlockSpec((1, H * W, C_in), lambda b, m: (b, 0, 0)),
            pl.BlockSpec((1, TM, 4 * C_in), lambda b, m: (b, m, 0)),
            pl.BlockSpec((4 * C_in, 8), lambda b, m: (0, 0)),
            pl.BlockSpec((1, 8), lambda b, m: (0, 0)),
            pl.BlockSpec((4 * C_in, C_out), lambda b, m: (0, 0)),
            pl.BlockSpec((1, C_out), lambda b, m: (0, 0)),
            pl.BlockSpec((1, C_out), lambda b, m: (0, 0)),
        ],
        out_specs=pl.BlockSpec((1, TM, C_out), lambda b, m: (b, m, 0)),
        compiler_params=pltpu.CompilerParams(
            dimension_semantics=("parallel", "parallel"),
            vmem_limit_bytes=32 * 1024 * 1024),
    )(x_cl, patches, params["w_off"], params["b_off"], params["w_d"],
      params["scale"], params["shift"])
    # TODO(synk): return_offset=True path (emit the (B, 8, Ho, Wo) offset map as
    # a second kernel output) is not implemented.
    return tokens, (Ho, Wo)


# ----------------------------------------------------------------------------
# pure-JAX reference (fp32) for the correctness check
# ----------------------------------------------------------------------------
def deformable_patch_merging_ref(raw, x_nchw, hw_shape):
    H, W = hw_shape
    B, C_in = x_nchw.shape[0], x_nchw.shape[1]
    Ho, Wo = H // 2, W // 2
    C_out = raw["w_d"].shape[0]

    x_hwc = jnp.transpose(x_nchw, (0, 2, 3, 1))
    x_cl = x_hwc.reshape(B, H * W, C_in)
    patches = (x_hwc.reshape(B, Ho, 2, Wo, 2, C_in)
               .transpose(0, 1, 3, 2, 4, 5).reshape(B, Ho * Wo, 4 * C_in))
    w_off = jnp.transpose(raw["w_off"], (2, 3, 1, 0)).reshape(4 * C_in, 8)
    off = patches @ w_off + raw["b_off"]                   # (B, N, 8)

    rows = jnp.arange(Ho * Wo)
    h0 = (rows // Wo).astype(jnp.float32)[None, :]
    w0 = (rows % Wo).astype(jnp.float32)[None, :]

    taps = []
    for t in range(4):
        ki, kj = t // 2, t % 2
        py = h0 * 2.0 + ki + off[:, :, 2 * t]
        px = w0 * 2.0 + kj + off[:, :, 2 * t + 1]
        yf, xf = jnp.floor(py), jnp.floor(px)
        wy, wx = py - yf, px - xf
        y0, x0 = yf.astype(jnp.int32), xf.astype(jnp.int32)
        samp = jnp.zeros((B, Ho * Wo, C_in), jnp.float32)
        for yc, xc, wgt in ((y0, x0, (1 - wy) * (1 - wx)),
                            (y0, x0 + 1, (1 - wy) * wx),
                            (y0 + 1, x0, wy * (1 - wx)),
                            (y0 + 1, x0 + 1, wy * wx)):
            valid = ((yc >= 0) & (yc < H) & (xc >= 0) & (xc < W)).astype(jnp.float32)
            idx = jnp.clip(yc, 0, H - 1) * W + jnp.clip(xc, 0, W - 1)
            g = jnp.take_along_axis(x_cl, idx[..., None], axis=1)
            samp = samp + g * (wgt * valid)[..., None]
        taps.append(samp)

    im2col = jnp.concatenate(taps, axis=-1)                # (B, N, 4*Cin)
    w_d = jnp.transpose(raw["w_d"], (2, 3, 1, 0)).reshape(4 * C_in, C_out)
    conv = im2col @ w_d
    inv = jax.lax.rsqrt(raw["bn_var"] + 1e-5)
    y = (conv - raw["bn_mean"]) * inv * raw["bn_gamma"] + raw["bn_beta"]
    y = jax.nn.gelu(y, approximate=False)
    return y, (Ho, Wo)


# ----------------------------------------------------------------------------
# deterministic test parameters (mirrors module __init__ shapes)
# ----------------------------------------------------------------------------
def init_raw_params(key, c_in, c_out):
    ks = jax.random.split(key, 6)
    return {
        # DeformConv2dPack.conv_offset: Conv2d(C, 2*2*2, k=2, s=2, p=0) (zero-init
        # in the module; random here so the deformable/bilinear path is exercised)
        "w_off": jax.random.normal(ks[0], (8, c_in, 2, 2), jnp.float32) * 0.1,
        "b_off": jax.random.normal(ks[1], (8,), jnp.float32) * 0.1,
        # DeformConv2d weight (mmcv DeformConv2d has no bias)
        "w_d": jax.random.normal(ks[2], (c_out, c_in, 2, 2), jnp.float32)
               * math.sqrt(2.0 / (4 * c_in)),
        # BatchNorm2d (inference-mode running statistics + affine)
        # TODO(synk): training-mode BatchNorm (batch statistics) would need a
        # cross-batch reduction pass; inference running stats are used here.
        "bn_gamma": 1.0 + 0.1 * jax.random.normal(ks[3], (c_out,), jnp.float32),
        "bn_beta": 0.1 * jax.random.normal(ks[4], (c_out,), jnp.float32),
        "bn_mean": 0.1 * jax.random.normal(ks[5], (c_out,), jnp.float32),
        "bn_var": jnp.ones((c_out,), jnp.float32),
    }


if __name__ == "__main__":
    B, C_in, C_out, H, W = 2, 16, 32, 16, 16

    key = jax.random.PRNGKey(0)
    kx, kp = jax.random.split(key)
    x = jax.random.normal(kx, (B, C_in, H, W), jnp.float32)
    raw = init_raw_params(kp, C_in, C_out)
    params = prepare_params(raw, C_in, C_out)

    out, new_hw = deformable_patch_merging_forward(params, x, (H, W))
    out = jax.block_until_ready(out)

    ref, _ = deformable_patch_merging_ref(raw, x, (H, W))
    assert out.shape == (B, (H // 2) * (W // 2), C_out)
    assert new_hw == (H // 2, W // 2)
    max_err = float(jnp.max(jnp.abs(out - ref)))
    # bf16 conv operands (per perf feedback) => relaxed tolerance
    assert jnp.allclose(out, ref, atol=4e-2, rtol=4e-2), f"max abs err {max_err}"
    print("KERNEL_OK")
</pallas_src>

<mosaic_0001>
module attributes {stable_mosaic.version = 11 : i64} {
  func.func @_dpm_kernel(%arg0: i32, %arg1: i32, %arg2: memref<1x256x16xf32, #tpu.memory_space<vmem>>, %arg3: memref<1x64x64xf32, #tpu.memory_space<vmem>>, %arg4: memref<64x8xf32, #tpu.memory_space<vmem>>, %arg5: memref<1x8xf32, #tpu.memory_space<vmem>>, %arg6: memref<64x32xbf16, #tpu.memory_space<vmem>>, %arg7: memref<1x32xf32, #tpu.memory_space<vmem>>, %arg8: memref<1x32xf32, #tpu.memory_space<vmem>>, %arg9: memref<1x64x32xf32, #tpu.memory_space<vmem>>) attributes {dimension_semantics = [#tpu.dimension_semantics<parallel>, #tpu.dimension_semantics<parallel>], iteration_bounds = array<i64: 2, 1>, scalar_prefetch = 0 : i64, scratch_operands = 0 : i64, tpu.core_type = #tpu.core_type<tc>, window_params = [{transform_indices = @transform_0, window_bounds = array<i64: 1, 256, 16>}, {transform_indices = @transform_1, window_bounds = array<i64: 1, 64, 64>}, {pipeline_mode = #tpu.pipeline_mode<synchronous>, transform_indices = @transform_2, window_bounds = array<i64: 64, 8>}, {pipeline_mode = #tpu.pipeline_mode<synchronous>, transform_indices = @transform_3, window_bounds = array<i64: 1, 8>}, {pipeline_mode = #tpu.pipeline_mode<synchronous>, transform_indices = @transform_4, window_bounds = array<i64: 64, 32>}, {pipeline_mode = #tpu.pipeline_mode<synchronous>, transform_indices = @transform_5, window_bounds = array<i64: 1, 32>}, {pipeline_mode = #tpu.pipeline_mode<synchronous>, transform_indices = @transform_6, window_bounds = array<i64: 1, 32>}, {transform_indices = @transform_7, window_bounds = array<i64: 1, 64, 32>}]} {
    %c0 = arith.constant 0 : index
    %c0_0 = arith.constant 0 : index
    %c0_1 = arith.constant 0 : index
    %0 = vector.load %arg2[%c0, %c0_0, %c0_1] : memref<1x256x16xf32, #tpu.memory_space<vmem>>, vector<1x256x16xf32>
    %1 = vector.shape_cast %0 : vector<1x256x16xf32> to vector<256x16xf32>
    %c0_2 = arith.constant 0 : index
    %c0_3 = arith.constant 0 : index
    %c0_4 = arith.constant 0 : index
    %2 = vector.load %arg3[%c0_2, %c0_3, %c0_4] : memref<1x64x64xf32, #tpu.memory_space<vmem>>, vector<1x64x64xf32>
    %3 = vector.shape_cast %2 : vector<1x64x64xf32> to vector<64x64xf32>
    %c0_5 = arith.constant 0 : index
    %c0_6 = arith.constant 0 : index
    %4 = vector.load %arg4[%c0_5, %c0_6] : memref<64x8xf32, #tpu.memory_space<vmem>>, vector<64x8xf32>
    %cst = arith.constant dense<0.000000e+00> : vector<64x8xf32>
    %5 = tpu.matmul %3, %4, %cst {dimension_numbers = #tpu.dot_dimension_numbers<[1], [0], [0], [1], [0, 0, 1, 1], [], []>} : vector<64x64xf32>, vector<64x8xf32>, vector<64x8xf32> -> vector<64x8xf32>
    %c0_7 = arith.constant 0 : index
    %c0_8 = arith.constant 0 : index
    %6 = vector.load %arg5[%c0_7, %c0_8] : memref<1x8xf32, #tpu.memory_space<vmem>>, vector<1x8xf32>
    %7 = vector.broadcast %6 : vector<1x8xf32> to vector<64x8xf32>
    %8 = arith.addf %5, %7 : vector<64x8xf32>
    %c64_i32 = arith.constant 64 : i32
    %9 = arith.muli %arg1, %c64_i32 : i32
    %10 = tpu.iota {dimensions = array<i32: 0>} : vector<64x1xi32>
    %11 = vector.broadcast %9 : i32 to vector<64x1xi32>
    %12 = arith.addi %11, %10 : vector<64x1xi32>
    %13 = arith.sitofp %12 : vector<64x1xi32> to vector<64x1xf32>
    %cst_9 = arith.constant 5.000000e-01 : f32
    %14 = vector.broadcast %cst_9 : f32 to vector<64x1xf32>
    %15 = arith.addf %13, %14 : vector<64x1xf32>
    %cst_10 = arith.constant 1.250000e-01 : f32
    %16 = vector.broadcast %cst_10 : f32 to vector<64x1xf32>
    %17 = arith.mulf %15, %16 : vector<64x1xf32>
    %18 = math.floor %17 : vector<64x1xf32>
    %cst_11 = arith.constant 8.000000e+00 : f32
    %19 = vector.broadcast %cst_11 : f32 to vector<64x1xf32>
    %20 = arith.mulf %18, %19 : vector<64x1xf32>
    %21 = arith.subf %13, %20 : vector<64x1xf32>
    %22 = tpu.iota {dimensions = array<i32: 1>} : vector<64x256xi32>
    %23 = vector.extract_strided_slice %8 {offsets = [0, 0], sizes = [64, 1], strides = [1, 1]} : vector<64x8xf32> to vector<64x1xf32>
    %24 = vector.extract_strided_slice %8 {offsets = [0, 1], sizes = [64, 1], strides = [1, 1]} : vector<64x8xf32> to vector<64x1xf32>
    %cst_12 = arith.constant 2.000000e+00 : f32
    %25 = vector.broadcast %cst_12 : f32 to vector<64x1xf32>
    %26 = arith.mulf %18, %25 : vector<64x1xf32>
    %cst_13 = arith.constant 0.000000e+00 : f32
    %27 = vector.broadcast %cst_13 : f32 to vector<64x1xf32>
    %28 = arith.addf %26, %27 : vector<64x1xf32>
    %29 = arith.addf %28, %23 : vector<64x1xf32>
    %cst_14 = arith.constant 2.000000e+00 : f32
    %30 = vector.broadcast %cst_14 : f32 to vector<64x1xf32>
    %31 = arith.mulf %21, %30 : vector<64x1xf32>
    %cst_15 = arith.constant 0.000000e+00 : f32
    %32 = vector.broadcast %cst_15 : f32 to vector<64x1xf32>
    %33 = arith.addf %31, %32 : vector<64x1xf32>
    %34 = arith.addf %33, %24 : vector<64x1xf32>
    %35 = math.floor %29 : vector<64x1xf32>
    %36 = math.floor %34 : vector<64x1xf32>
    %37 = arith.subf %29, %35 : vector<64x1xf32>
    %38 = arith.subf %34, %36 : vector<64x1xf32>
    %39 = arith.fptosi %35 : vector<64x1xf32> to vector<64x1xi32>
    %40 = arith.fptosi %36 : vector<64x1xf32> to vector<64x1xi32>
    %cst_16 = arith.constant 0.000000e+00 : f32
    %41 = vector.broadcast %cst_16 : f32 to vector<64x256xf32>
    %cst_17 = arith.constant 1.000000e+00 : f32
    %42 = vector.broadcast %cst_17 : f32 to vector<64x1xf32>
    %43 = arith.subf %42, %37 : vector<64x1xf32>
    %cst_18 = arith.constant 1.000000e+00 : f32
    %44 = vector.broadcast %cst_18 : f32 to vector<64x1xf32>
    %45 = arith.subf %44, %38 : vector<64x1xf32>
    %46 = arith.mulf %43, %45 : vector<64x1xf32>
    %c1_i32 = arith.constant 1 : i32
    %47 = vector.broadcast %c1_i32 : i32 to vector<64x1xi32>
    %48 = arith.addi %40, %47 : vector<64x1xi32>
    %cst_19 = arith.constant 1.000000e+00 : f32
    %49 = vector.broadcast %cst_19 : f32 to vector<64x1xf32>
    %50 = arith.subf %49, %37 : vector<64x1xf32>
    %51 = arith.mulf %50, %38 : vector<64x1xf32>
    %c1_i32_20 = arith.constant 1 : i32
    %52 = vector.broadcast %c1_i32_20 : i32 to vector<64x1xi32>
    %53 = arith.addi %39, %52 : vector<64x1xi32>
    %cst_21 = arith.constant 1.000000e+00 : f32
    %54 = vector.broadcast %cst_21 : f32 to vector<64x1xf32>
    %55 = arith.subf %54, %38 : vector<64x1xf32>
    %56 = arith.mulf %37, %55 : vector<64x1xf32>
    %c1_i32_22 = arith.constant 1 : i32
    %57 = vector.broadcast %c1_i32_22 : i32 to vector<64x1xi32>
    %58 = arith.addi %39, %57 : vector<64x1xi32>
    %c1_i32_23 = arith.constant 1 : i32
    %59 = vector.broadcast %c1_i32_23 : i32 to vector<64x1xi32>
    %60 = arith.addi %40, %59 : vector<64x1xi32>
    %61 = arith.mulf %37, %38 : vector<64x1xf32>
    %c0_i32 = arith.constant 0 : i32
    %62 = vector.broadcast %c0_i32 : i32 to vector<64x1xi32>
    %63 = arith.cmpi sge, %39, %62 : vector<64x1xi32>
    %c16_i32 = arith.constant 16 : i32
    %64 = vector.broadcast %c16_i32 : i32 to vector<64x1xi32>
    %65 = arith.cmpi slt, %39, %64 : vector<64x1xi32>
    %66 = arith.andi %63, %65 : vector<64x1xi1>
    %c0_i32_24 = arith.constant 0 : i32
    %67 = vector.broadcast %c0_i32_24 : i32 to vector<64x1xi32>
    %68 = arith.cmpi sge, %40, %67 : vector<64x1xi32>
    %69 = arith.andi %66, %68 : vector<64x1xi1>
    %c16_i32_25 = arith.constant 16 : i32
    %70 = vector.broadcast %c16_i32_25 : i32 to vector<64x1xi32>
    %71 = arith.cmpi slt, %40, %70 : vector<64x1xi32>
    %72 = arith.andi %69, %71 : vector<64x1xi1>
    %cst_26 = arith.constant 0.000000e+00 : f32
    %73 = vector.broadcast %cst_26 : f32 to vector<64x1xf32>
    %74 = arith.select %72, %46, %73 : vector<64x1xi1>, vector<64x1xf32>
    %c16_i32_27 = arith.constant 16 : i32
    %75 = vector.broadcast %c16_i32_27 : i32 to vector<64x1xi32>
    %76 = arith.muli %39, %75 : vector<64x1xi32>
    %77 = arith.addi %76, %40 : vector<64x1xi32>
    %78 = vector.broadcast %77 : vector<64x1xi32> to vector<64x256xi32>
    %79 = arith.cmpi eq, %22, %78 : vector<64x256xi32>
    %cst_28 = arith.constant 0.000000e+00 : f32
    %80 = vector.shape_cast %74 : vector<64x1xf32> to vector<64x1xf32>
    %81 = vector.broadcast %80 : vector<64x1xf32> to vector<64x256xf32>
    %82 = vector.broadcast %cst_28 : f32 to vector<64x256xf32>
    %83 = arith.select %79, %81, %82 : vector<64x256xi1>, vector<64x256xf32>
    %84 = arith.addf %41, %83 : vector<64x256xf32>
    %c0_i32_29 = arith.constant 0 : i32
    %85 = vector.broadcast %c0_i32_29 : i32 to vector<64x1xi32>
    %86 = arith.cmpi sge, %39, %85 : vector<64x1xi32>
    %c16_i32_30 = arith.constant 16 : i32
    %87 = vector.broadcast %c16_i32_30 : i32 to vector<64x1xi32>
    %88 = arith.cmpi slt, %39, %87 : vector<64x1xi32>
    %89 = arith.andi %86, %88 : vector<64x1xi1>
    %c0_i32_31 = arith.constant 0 : i32
    %90 = vector.broadcast %c0_i32_31 : i32 to vector<64x1xi32>
    %91 = arith.cmpi sge, %48, %90 : vector<64x1xi32>
    %92 = arith.andi %89, %91 : vector<64x1xi1>
    %c16_i32_32 = arith.constant 16 : i32
    %93 = vector.broadcast %c16_i32_32 : i32 to vector<64x1xi32>
    %94 = arith.cmpi slt, %48, %93 : vector<64x1xi32>
    %95 = arith.andi %92, %94 : vector<64x1xi1>
    %cst_33 = arith.constant 0.000000e+00 : f32
    %96 = vector.broadcast %cst_33 : f32 to vector<64x1xf32>
    %97 = arith.select %95, %51, %96 : vector<64x1xi1>, vector<64x1xf32>
    %c16_i32_34 = arith.constant 16 : i32
    %98 = vector.broadcast %c16_i32_34 : i32 to vector<64x1xi32>
    %99 = arith.muli %39, %98 : vector<64x1xi32>
    %100 = arith.addi %99, %48 : vector<64x1xi32>
    %101 = vector.broadcast %100 : vector<64x1xi32> to vector<64x256xi32>
    %102 = arith.cmpi eq, %22, %101 : vector<64x256xi32>
    %cst_35 = arith.constant 0.000000e+00 : f32
    %103 = vector.shape_cast %97 : vector<64x1xf32> to vector<64x1xf32>
    %104 = vector.broadcast %103 : vector<64x1xf32> to vector<64x256xf32>
    %105 = vector.broadcast %cst_35 : f32 to vector<64x256xf32>
    %106 = arith.select %102, %104, %105 : vector<64x256xi1>, vector<64x256xf32>
    %107 = arith.addf %84, %106 : vector<64x256xf32>
    %c0_i32_36 = arith.constant 0 : i32
    %108 = vector.broadcast %c0_i32_36 : i32 to vector<64x1xi32>
    %109 = arith.cmpi sge, %53, %108 : vector<64x1xi32>
    %c16_i32_37 = arith.constant 16 : i32
    %110 = vector.broadcast %c16_i32_37 : i32 to vector<64x1xi32>
    %111 = arith.cmpi slt, %53, %110 : vector<64x1xi32>
    %112 = arith.andi %109, %111 : vector<64x1xi1>
    %c0_i32_38 = arith.constant 0 : i32
    %113 = vector.broadcast %c0_i32_38 : i32 to vector<64x1xi32>
    %114 = arith.cmpi sge, %40, %113 : vector<64x1xi32>
    %115 = arith.andi %112, %114 : vector<64x1xi1>
    %c16_i32_39 = arith.constant 16 : i32
    %116 = vector.broadcast %c16_i32_39 : i32 to vector<64x1xi32>
    %117 = arith.cmpi slt, %40, %116 : vector<64x1xi32>
    %118 = arith.andi %115, %117 : vector<64x1xi1>
    %cst_40 = arith.constant 0.000000e+00 : f32
    %119 = vector.broadcast %cst_40 : f32 to vector<64x1xf32>
    %120 = arith.select %118, %56, %119 : vector<64x1xi1>, vector<64x1xf32>
    %c16_i32_41 = arith.constant 16 : i32
    %121 = vector.broadcast %c16_i32_41 : i32 to vector<64x1xi32>
    %122 = arith.muli %53, %121 : vector<64x1xi32>
    %123 = arith.addi %122, %40 : vector<64x1xi32>
    %124 = vector.broadcast %123 : vector<64x1xi32> to vector<64x256xi32>
    %125 = arith.cmpi eq, %22, %124 : vector<64x256xi32>
    %cst_42 = arith.constant 0.000000e+00 : f32
    %126 = vector.shape_cast %120 : vector<64x1xf32> to vector<64x1xf32>
    %127 = vector.broadcast %126 : vector<64x1xf32> to vector<64x256xf32>
    %128 = vector.broadcast %cst_42 : f32 to vector<64x256xf32>
    %129 = arith.select %125, %127, %128 : vector<64x256xi1>, vector<64x256xf32>
    %130 = arith.addf %107, %129 : vector<64x256xf32>
    %c0_i32_43 = arith.constant 0 : i32
    %131 = vector.broadcast %c0_i32_43 : i32 to vector<64x1xi32>
    %132 = arith.cmpi sge, %58, %131 : vector<64x1xi32>
    %c16_i32_44 = arith.constant 16 : i32
    %133 = vector.broadcast %c16_i32_44 : i32 to vector<64x1xi32>
    %134 = arith.cmpi slt, %58, %133 : vector<64x1xi32>
    %135 = arith.andi %132, %134 : vector<64x1xi1>
    %c0_i32_45 = arith.constant 0 : i32
    %136 = vector.broadcast %c0_i32_45 : i32 to vector<64x1xi32>
    %137 = arith.cmpi sge, %60, %136 : vector<64x1xi32>
    %138 = arith.andi %135, %137 : vector<64x1xi1>
    %c16_i32_46 = arith.constant 16 : i32
    %139 = vector.broadcast %c16_i32_46 : i32 to vector<64x1xi32>
    %140 = arith.cmpi slt, %60, %139 : vector<64x1xi32>
    %141 = arith.andi %138, %140 : vector<64x1xi1>
    %cst_47 = arith.constant 0.000000e+00 : f32
    %142 = vector.broadcast %cst_47 : f32 to vector<64x1xf32>
    %143 = arith.select %141, %61, %142 : vector<64x1xi1>, vector<64x1xf32>
    %c16_i32_48 = arith.constant 16 : i32
    %144 = vector.broadcast %c16_i32_48 : i32 to vector<64x1xi32>
    %145 = arith.muli %58, %144 : vector<64x1xi32>
    %146 = arith.addi %145, %60 : vector<64x1xi32>
    %147 = vector.broadcast %146 : vector<64x1xi32> to vector<64x256xi32>
    %148 = arith.cmpi eq, %22, %147 : vector<64x256xi32>
    %cst_49 = arith.constant 0.000000e+00 : f32
    %149 = vector.shape_cast %143 : vector<64x1xf32> to vector<64x1xf32>
    %150 = vector.broadcast %149 : vector<64x1xf32> to vector<64x256xf32>
    %151 = vector.broadcast %cst_49 : f32 to vector<64x256xf32>
    %152 = arith.select %148, %150, %151 : vector<64x256xi1>, vector<64x256xf32>
    %153 = arith.addf %130, %152 : vector<64x256xf32>
    %cst_50 = arith.constant dense<0.000000e+00> : vector<64x16xf32>
    %154 = tpu.matmul %153, %1, %cst_50 {dimension_numbers = #tpu.dot_dimension_numbers<[1], [0], [0], [1], [0, 0, 1, 1], [], []>} : vector<64x256xf32>, vector<256x16xf32>, vector<64x16xf32> -> vector<64x16xf32>
    %155 = vector.extract_strided_slice %8 {offsets = [0, 2], sizes = [64, 1], strides = [1, 1]} : vector<64x8xf32> to vector<64x1xf32>
    %156 = vector.extract_strided_slice %8 {offsets = [0, 3], sizes = [64, 1], strides = [1, 1]} : vector<64x8xf32> to vector<64x1xf32>
    %cst_51 = arith.constant 2.000000e+00 : f32
    %157 = vector.broadcast %cst_51 : f32 to vector<64x1xf32>
    %158 = arith.mulf %18, %157 : vector<64x1xf32>
    %cst_52 = arith.constant 0.000000e+00 : f32
    %159 = vector.broadcast %cst_52 : f32 to vector<64x1xf32>
    %160 = arith.addf %158, %159 : vector<64x1xf32>
    %161 = arith.addf %160, %155 : vector<64x1xf32>
    %cst_53 = arith.constant 2.000000e+00 : f32
    %162 = vector.broadcast %cst_53 : f32 to vector<64x1xf32>
    %163 = arith.mulf %21, %162 : vector<64x1xf32>
    %cst_54 = arith.constant 1.000000e+00 : f32
    %164 = vector.broadcast %cst_54 : f32 to vector<64x1xf32>
    %165 = arith.addf %163, %164 : vector<64x1xf32>
    %166 = arith.addf %165, %156 : vector<64x1xf32>
    %167 = math.floor %161 : vector<64x1xf32>
    %168 = math.floor %166 : vector<64x1xf32>
    %169 = arith.subf %161, %167 : vector<64x1xf32>
    %170 = arith.subf %166, %168 : vector<64x1xf32>
    %171 = arith.fptosi %167 : vector<64x1xf32> to vector<64x1xi32>
    %172 = arith.fptosi %168 : vector<64x1xf32> to vector<64x1xi32>
    %cst_55 = arith.constant 0.000000e+00 : f32
    %173 = vector.broadcast %cst_55 : f32 to vector<64x256xf32>
    %cst_56 = arith.constant 1.000000e+00 : f32
    %174 = vector.broadcast %cst_56 : f32 to vector<64x1xf32>
    %175 = arith.subf %174, %169 : vector<64x1xf32>
    %cst_57 = arith.constant 1.000000e+00 : f32
    %176 = vector.broadcast %cst_57 : f32 to vector<64x1xf32>
    %177 = arith.subf %176, %170 : vector<64x1xf32>
    %178 = arith.mulf %175, %177 : vector<64x1xf32>
    %c1_i32_58 = arith.constant 1 : i32
    %179 = vector.broadcast %c1_i32_58 : i32 to vector<64x1xi32>
    %180 = arith.addi %172, %179 : vector<64x1xi32>
    %cst_59 = arith.constant 1.000000e+00 : f32
    %181 = vector.broadcast %cst_59 : f32 to vector<64x1xf32>
    %182 = arith.subf %181, %169 : vector<64x1xf32>
    %183 = arith.mulf %182, %170 : vector<64x1xf32>
    %c1_i32_60 = arith.constant 1 : i32
    %184 = vector.broadcast %c1_i32_60 : i32 to vector<64x1xi32>
    %185 = arith.addi %171, %184 : vector<64x1xi32>
    %cst_61 = arith.constant 1.000000e+00 : f32
    %186 = vector.broadcast %cst_61 : f32 to vector<64x1xf32>
    %187 = arith.subf %186, %170 : vector<64x1xf32>
    %188 = arith.mulf %169, %187 : vector<64x1xf32>
    %c1_i32_62 = arith.constant 1 : i32
    %189 = vector.broadcast %c1_i32_62 : i32 to vector<64x1xi32>
    %190 = arith.addi %171, %189 : vector<64x1xi32>
    %c1_i32_63 = arith.constant 1 : i32
    %191 = vector.broadcast %c1_i32_63 : i32 to vector<64x1xi32>
    %192 = arith.addi %172, %191 : vector<64x1xi32>
    %193 = arith.mulf %169, %170 : vector<64x1xf32>
    %c0_i32_64 = arith.constant 0 : i32
    %194 = vector.broadcast %c0_i32_64 : i32 to vector<64x1xi32>
    %195 = arith.cmpi sge, %171, %194 : vector<64x1xi32>
    %c16_i32_65 = arith.constant 16 : i32
    %196 = vector.broadcast %c16_i32_65 : i32 to vector<64x1xi32>
    %197 = arith.cmpi slt, %171, %196 : vector<64x1xi32>
    %198 = arith.andi %195, %197 : vector<64x1xi1>
    %c0_i32_66 = arith.constant 0 : i32
    %199 = vector.broadcast %c0_i32_66 : i32 to vector<64x1xi32>
    %200 = arith.cmpi sge, %172, %199 : vector<64x1xi32>
    %201 = arith.andi %198, %200 : vector<64x1xi1>
    %c16_i32_67 = arith.constant 16 : i32
    %202 = vector.broadcast %c16_i32_67 : i32 to vector<64x1xi32>
    %203 = arith.cmpi slt, %172, %202 : vector<64x1xi32>
    %204 = arith.andi %201, %203 : vector<64x1xi1>
    %cst_68 = arith.constant 0.000000e+00 : f32
    %205 = vector.broadcast %cst_68 : f32 to vector<64x1xf32>
    %206 = arith.select %204, %178, %205 : vector<64x1xi1>, vector<64x1xf32>
    %c16_i32_69 = arith.constant 16 : i32
    %207 = vector.broadcast %c16_i32_69 : i32 to vector<64x1xi32>
    %208 = arith.muli %171, %207 : vector<64x1xi32>
    %209 = arith.addi %208, %172 : vector<64x1xi32>
    %210 = vector.broadcast %209 : vector<64x1xi32> to vector<64x256xi32>
    %211 = arith.cmpi eq, %22, %210 : vector<64x256xi32>
    %cst_70 = arith.constant 0.000000e+00 : f32
    %212 = vector.shape_cast %206 : vector<64x1xf32> to vector<64x1xf32>
    %213 = vector.broadcast %212 : vector<64x1xf32> to vector<64x256xf32>
    %214 = vector.broadcast %cst_70 : f32 to vector<64x256xf32>
    %215 = arith.select %211, %213, %214 : vector<64x256xi1>, vector<64x256xf32>
    %216 = arith.addf %173, %215 : vector<64x256xf32>
    %c0_i32_71 = arith.constant 0 : i32
    %217 = vector.broadcast %c0_i32_71 : i32 to vector<64x1xi32>
    %218 = arith.cmpi sge, %171, %217 : vector<64x1xi32>
    %c16_i32_72 = arith.constant 16 : i32
    %219 = vector.broadcast %c16_i32_72 : i32 to vector<64x1xi32>
    %220 = arith.cmpi slt, %171, %219 : vector<64x1xi32>
    %221 = arith.andi %218, %220 : vector<64x1xi1>
    %c0_i32_73 = arith.constant 0 : i32
    %222 = vector.broadcast %c0_i32_73 : i32 to vector<64x1xi32>
    %223 = arith.cmpi sge, %180, %222 : vector<64x1xi32>
    %224 = arith.andi %221, %223 : vector<64x1xi1>
    %c16_i32_74 = arith.constant 16 : i32
    %225 = vector.broadcast %c16_i32_74 : i32 to vector<64x1xi32>
    %226 = arith.cmpi slt, %180, %225 : vector<64x1xi32>
    %227 = arith.andi %224, %226 : vector<64x1xi1>
    %cst_75 = arith.constant 0.000000e+00 : f32
    %228 = vector.broadcast %cst_75 : f32 to vector<64x1xf32>
    %229 = arith.select %227, %183, %228 : vector<64x1xi1>, vector<64x1xf32>
    %c16_i32_76 = arith.constant 16 : i32
    %230 = vector.broadcast %c16_i32_76 : i32 to vector<64x1xi32>
    %231 = arith.muli %171, %230 : vector<64x1xi32>
    %232 = arith.addi %231, %180 : vector<64x1xi32>
    %233 = vector.broadcast %232 : vector<64x1xi32> to vector<64x256xi32>
    %234 = arith.cmpi eq, %22, %233 : vector<64x256xi32>
    %cst_77 = arith.constant 0.000000e+00 : f32
    %235 = vector.shape_cast %229 : vector<64x1xf32> to vector<64x1xf32>
    %236 = vector.broadcast %235 : vector<64x1xf32> to vector<64x256xf32>
    %237 = vector.broadcast %cst_77 : f32 to vector<64x256xf32>
    %238 = arith.select %234, %236, %237 : vector<64x256xi1>, vector<64x256xf32>
    %239 = arith.addf %216, %238 : vector<64x256xf32>
    %c0_i32_78 = arith.constant 0 : i32
    %240 = vector.broadcast %c0_i32_78 : i32 to vector<64x1xi32>
    %241 = arith.cmpi sge, %185, %240 : vector<64x1xi32>
    %c16_i32_79 = arith.constant 16 : i32
    %242 = vector.broadcast %c16_i32_79 : i32 to vector<64x1xi32>
    %243 = arith.cmpi slt, %185, %242 : vector<64x1xi32>
    %244 = arith.andi %241, %243 : vector<64x1xi1>
    %c0_i32_80 = arith.constant 0 : i32
    %245 = vector.broadcast %c0_i32_80 : i32 to vector<64x1xi32>
    %246 = arith.cmpi sge, %172, %245 : vector<64x1xi32>
    %247 = arith.andi %244, %246 : vector<64x1xi1>
    %c16_i32_81 = arith.constant 16 : i32
    %248 = vector.broadcast %c16_i32_81 : i32 to vector<64x1xi32>
    %249 = arith.cmpi slt, %172, %248 : vector<64x1xi32>
    %250 = arith.andi %247, %249 : vector<64x1xi1>
    %cst_82 = arith.constant 0.000000e+00 : f32
    %251 = vector.broadcast %cst_82 : f32 to vector<64x1xf32>
    %252 = arith.select %250, %188, %251 : vector<64x1xi1>, vector<64x1xf32>
    %c16_i32_83 = arith.constant 16 : i32
    %253 = vector.broadcast %c16_i32_83 : i32 to vector<64x1xi32>
    %254 = arith.muli %185, %253 : vector<64x1xi32>
    %255 = arith.addi %254, %172 : vector<64x1xi32>
    %256 = vector.broadcast %255 : vector<64x1xi32> to vector<64x256xi32>
    %257 = arith.cmpi eq, %22, %256 : vector<64x256xi32>
    %cst_84 = arith.constant 0.000000e+00 : f32
    %258 = vector.shape_cast %252 : vector<64x1xf32> to vector<64x1xf32>
    %259 = vector.broadcast %258 : vector<64x1xf32> to vector<64x256xf32>
    %260 = vector.broadcast %cst_84 : f32 to vector<64x256xf32>
    %261 = arith.select %257, %259, %260 : vector<64x256xi1>, vector<64x256xf32>
    %262 = arith.addf %239, %261 : vector<64x256xf32>
    %c0_i32_85 = arith.constant 0 : i32
    %263 = vector.broadcast %c0_i32_85 : i32 to vector<64x1xi32>
    %264 = arith.cmpi sge, %190, %263 : vector<64x1xi32>
    %c16_i32_86 = arith.constant 16 : i32
    %265 = vector.broadcast %c16_i32_86 : i32 to vector<64x1xi32>
    %266 = arith.cmpi slt, %190, %265 : vector<64x1xi32>
    %267 = arith.andi %264, %266 : vector<64x1xi1>
    %c0_i32_87 = arith.constant 0 : i32
    %268 = vector.broadcast %c0_i32_87 : i32 to vector<64x1xi32>
    %269 = arith.cmpi sge, %192, %268 : vector<64x1xi32>
    %270 = arith.andi %267, %269 : vector<64x1xi1>
    %c16_i32_88 = arith.constant 16 : i32
    %271 = vector.broadcast %c16_i32_88 : i32 to vector<64x1xi32>
    %272 = arith.cmpi slt, %192, %271 : vector<64x1xi32>
    %273 = arith.andi %270, %272 : vector<64x1xi1>
    %cst_89 = arith.constant 0.000000e+00 : f32
    %274 = vector.broadcast %cst_89 : f32 to vector<64x1xf32>
    %275 = arith.select %273, %193, %274 : vector<64x1xi1>, vector<64x1xf32>
    %c16_i32_90 = arith.constant 16 : i32
    %276 = vector.broadcast %c16_i32_90 : i32 to vector<64x1xi32>
    %277 = arith.muli %190, %276 : vector<64x1xi32>
    %278 = arith.addi %277, %192 : vector<64x1xi32>
    %279 = vector.broadcast %278 : vector<64x1xi32> to vector<64x256xi32>
    %280 = arith.cmpi eq, %22, %279 : vector<64x256xi32>
    %cst_91 = arith.constant 0.000000e+00 : f32
    %281 = vector.shape_cast %275 : vector<64x1xf32> to vector<64x1xf32>
    %282 = vector.broadcast %281 : vector<64x1xf32> to vector<64x256xf32>
    %283 = vector.broadcast %cst_91 : f32 to vector<64x256xf32>
    %284 = arith.select %280, %282, %283 : vector<64x256xi1>, vector<64x256xf32>
    %285 = arith.addf %262, %284 : vector<64x256xf32>
    %cst_92 = arith.constant dense<0.000000e+00> : vector<64x16xf32>
    %286 = tpu.matmul %285, %1, %cst_92 {dimension_numbers = #tpu.dot_dimension_numbers<[1], [0], [0], [1], [0, 0, 1, 1], [], []>} : vector<64x256xf32>, vector<256x16xf32>, vector<64x16xf32> -> vector<64x16xf32>
    %287 = vector.extract_strided_slice %8 {offsets = [0, 4], sizes = [64, 1], strides = [1, 1]} : vector<64x8xf32> to vector<64x1xf32>
    %288 = vector.extract_strided_slice %8 {offsets = [0, 5], sizes = [64, 1], strides = [1, 1]} : vector<64x8xf32> to vector<64x1xf32>
    %cst_93 = arith.constant 2.000000e+00 : f32
    %289 = vector.broadcast %cst_93 : f32 to vector<64x1xf32>
    %290 = arith.mulf %18, %289 : vector<64x1xf32>
    %cst_94 = arith.constant 1.000000e+00 : f32
    %291 = vector.broadcast %cst_94 : f32 to vector<64x1xf32>
    %292 = arith.addf %290, %291 : vector<64x1xf32>
    %293 = arith.addf %292, %287 : vector<64x1xf32>
    %cst_95 = arith.constant 2.000000e+00 : f32
    %294 = vector.broadcast %cst_95 : f32 to vector<64x1xf32>
    %295 = arith.mulf %21, %294 : vector<64x1xf32>
    %cst_96 = arith.constant 0.000000e+00 : f32
    %296 = vector.broadcast %cst_96 : f32 to vector<64x1xf32>
    %297 = arith.addf %295, %296 : vector<64x1xf32>
    %298 = arith.addf %297, %288 : vector<64x1xf32>
    %299 = math.floor %293 : vector<64x1xf32>
    %300 = math.floor %298 : vector<64x1xf32>
    %301 = arith.subf %293, %299 : vector<64x1xf32>
    %302 = arith.subf %298, %300 : vector<64x1xf32>
    %303 = arith.fptosi %299 : vector<64x1xf32> to vector<64x1xi32>
    %304 = arith.fptosi %300 : vector<64x1xf32> to vector<64x1xi32>
    %cst_97 = arith.constant 0.000000e+00 : f32
    %305 = vector.broadcast %cst_97 : f32 to vector<64x256xf32>
    %cst_98 = arith.constant 1.000000e+00 : f32
    %306 = vector.broadcast %cst_98 : f32 to vector<64x1xf32>
    %307 = arith.subf %306, %301 : vector<64x1xf32>
    %cst_99 = arith.constant 1.000000e+00 : f32
    %308 = vector.broadcast %cst_99 : f32 to vector<64x1xf32>
    %309 = arith.subf %308, %302 : vector<64x1xf32>
    %310 = arith.mulf %307, %309 : vector<64x1xf32>
    %c1_i32_100 = arith.constant 1 : i32
    %311 = vector.broadcast %c1_i32_100 : i32 to vector<64x1xi32>
    %312 = arith.addi %304, %311 : vector<64x1xi32>
    %cst_101 = arith.constant 1.000000e+00 : f32
    %313 = vector.broadcast %cst_101 : f32 to vector<64x1xf32>
    %314 = arith.subf %313, %301 : vector<64x1xf32>
    %315 = arith.mulf %314, %302 : vector<64x1xf32>
    %c1_i32_102 = arith.constant 1 : i32
    %316 = vector.broadcast %c1_i32_102 : i32 to vector<64x1xi32>
    %317 = arith.addi %303, %316 : vector<64x1xi32>
    %cst_103 = arith.constant 1.000000e+00 : f32
    %318 = vector.broadcast %cst_103 : f32 to vector<64x1xf32>
    %319 = arith.subf %318, %302 : vector<64x1xf32>
    %320 = arith.mulf %301, %319 : vector<64x1xf32>
    %c1_i32_104 = arith.constant 1 : i32
    %321 = vector.broadcast %c1_i32_104 : i32 to vector<64x1xi32>
    %322 = arith.addi %303, %321 : vector<64x1xi32>
    %c1_i32_105 = arith.constant 1 : i32
    %323 = vector.broadcast %c1_i32_105 : i32 to vector<64x1xi32>
    %324 = arith.addi %304, %323 : vector<64x1xi32>
    %325 = arith.mulf %301, %302 : vector<64x1xf32>
    %c0_i32_106 = arith.constant 0 : i32
    %326 = vector.broadcast %c0_i32_106 : i32 to vector<64x1xi32>
    %327 = arith.cmpi sge, %303, %326 : vector<64x1xi32>
    %c16_i32_107 = arith.constant 16 : i32
    %328 = vector.broadcast %c16_i32_107 : i32 to vector<64x1xi32>
    %329 = arith.cmpi slt, %303, %328 : vector<64x1xi32>
    %330 = arith.andi %327, %329 : vector<64x1xi1>
    %c0_i32_108 = arith.constant 0 : i32
    %331 = vector.broadcast %c0_i32_108 : i32 to vector<64x1xi32>
    %332 = arith.cmpi sge, %304, %331 : vector<64x1xi32>
    %333 = arith.andi %330, %332 : vector<64x1xi1>
    %c16_i32_109 = arith.constant 16 : i32
    %334 = vector.broadcast %c16_i32_109 : i32 to vector<64x1xi32>
    %335 = arith.cmpi slt, %304, %334 : vector<64x1xi32>
    %336 = arith.andi %333, %335 : vector<64x1xi1>
    %cst_110 = arith.constant 0.000000e+00 : f32
    %337 = vector.broadcast %cst_110 : f32 to vector<64x1xf32>
    %338 = arith.select %336, %310, %337 : vector<64x1xi1>, vector<64x1xf32>
    %c16_i32_111 = arith.constant 16 : i32
    %339 = vector.broadcast %c16_i32_111 : i32 to vector<64x1xi32>
    %340 = arith.muli %303, %339 : vector<64x1xi32>
    %341 = arith.addi %340, %304 : vector<64x1xi32>
    %342 = vector.broadcast %341 : vector<64x1xi32> to vector<64x256xi32>
    %343 = arith.cmpi eq, %22, %342 : vector<64x256xi32>
    %cst_112 = arith.constant 0.000000e+00 : f32
    %344 = vector.shape_cast %338 : vector<64x1xf32> to vector<64x1xf32>
    %345 = vector.broadcast %344 : vector<64x1xf32> to vector<64x256xf32>
    %346 = vector.broadcast %cst_112 : f32 to vector<64x256xf32>
    %347 = arith.select %343, %345, %346 : vector<64x256xi1>, vector<64x256xf32>
    %348 = arith.addf %305, %347 : vector<64x256xf32>
    %c0_i32_113 = arith.constant 0 : i32
    %349 = vector.broadcast %c0_i32_113 : i32 to vector<64x1xi32>
    %350 = arith.cmpi sge, %303, %349 : vector<64x1xi32>
    %c16_i32_114 = arith.constant 16 : i32
    %351 = vector.broadcast %c16_i32_114 : i32 to vector<64x1xi32>
    %352 = arith.cmpi slt, %303, %351 : vector<64x1xi32>
    %353 = arith.andi %350, %352 : vector<64x1xi1>
    %c0_i32_115 = arith.constant 0 : i32
    %354 = vector.broadcast %c0_i32_115 : i32 to vector<64x1xi32>
    %355 = arith.cmpi sge, %312, %354 : vector<64x1xi32>
    %356 = arith.andi %353, %355 : vector<64x1xi1>
    %c16_i32_116 = arith.constant 16 : i32
    %357 = vector.broadcast %c16_i32_116 : i32 to vector<64x1xi32>
    %358 = arith.cmpi slt, %312, %357 : vector<64x1xi32>
    %359 = arith.andi %356, %358 : vector<64x1xi1>
    %cst_117 = arith.constant 0.000000e+00 : f32
    %360 = vector.broadcast %cst_117 : f32 to vector<64x1xf32>
    %361 = arith.select %359, %315, %360 : vector<64x1xi1>, vector<64x1xf32>
    %c16_i32_118 = arith.constant 16 : i32
    %362 = vector.broadcast %c16_i32_118 : i32 to vector<64x1xi32>
    %363 = arith.muli %303, %362 : vector<64x1xi32>
    %364 = arith.addi %363, %312 : vector<64x1xi32>
    %365 = vector.broadcast %364 : vector<64x1xi32> to vector<64x256xi32>
    %366 = arith.cmpi eq, %22, %365 : vector<64x256xi32>
    %cst_119 = arith.constant 0.000000e+00 : f32
    %367 = vector.shape_cast %361 : vector<64x1xf32> to vector<64x1xf32>
    %368 = vector.broadcast %367 : vector<64x1xf32> to vector<64x256xf32>
    %369 = vector.broadcast %cst_119 : f32 to vector<64x256xf32>
    %370 = arith.select %366, %368, %369 : vector<64x256xi1>, vector<64x256xf32>
    %371 = arith.addf %348, %370 : vector<64x256xf32>
    %c0_i32_120 = arith.constant 0 : i32
    %372 = vector.broadcast %c0_i32_120 : i32 to vector<64x1xi32>
    %373 = arith.cmpi sge, %317, %372 : vector<64x1xi32>
    %c16_i32_121 = arith.constant 16 : i32
    %374 = vector.broadcast %c16_i32_121 : i32 to vector<64x1xi32>
    %375 = arith.cmpi slt, %317, %374 : vector<64x1xi32>
    %376 = arith.andi %373, %375 : vector<64x1xi1>
    %c0_i32_122 = arith.constant 0 : i32
    %377 = vector.broadcast %c0_i32_122 : i32 to vector<64x1xi32>
    %378 = arith.cmpi sge, %304, %377 : vector<64x1xi32>
    %379 = arith.andi %376, %378 : vector<64x1xi1>
    %c16_i32_123 = arith.constant 16 : i32
    %380 = vector.broadcast %c16_i32_123 : i32 to vector<64x1xi32>
    %381 = arith.cmpi slt, %304, %380 : vector<64x1xi32>
    %382 = arith.andi %379, %381 : vector<64x1xi1>
    %cst_124 = arith.constant 0.000000e+00 : f32
    %383 = vector.broadcast %cst_124 : f32 to vector<64x1xf32>
    %384 = arith.select %382, %320, %383 : vector<64x1xi1>, vector<64x1xf32>
    %c16_i32_125 = arith.constant 16 : i32
    %385 = vector.broadcast %c16_i32_125 : i32 to vector<64x1xi32>
    %386 = arith.muli %317, %385 : vector<64x1xi32>
    %387 = arith.addi %386, %304 : vector<64x1xi32>
    %388 = vector.broadcast %387 : vector<64x1xi32> to vector<64x256xi32>
    %389 = arith.cmpi eq, %22, %388 : vector<64x256xi32>
    %cst_126 = arith.constant 0.000000e+00 : f32
    %390 = vector.shape_cast %384 : vector<64x1xf32> to vector<64x1xf32>
    %391 = vector.broadcast %390 : vector<64x1xf32> to vector<64x256xf32>
    %392 = vector.broadcast %cst_126 : f32 to vector<64x256xf32>
    %393 = arith.select %389, %391, %392 : vector<64x256xi1>, vector<64x256xf32>
    %394 = arith.addf %371, %393 : vector<64x256xf32>
    %c0_i32_127 = arith.constant 0 : i32
    %395 = vector.broadcast %c0_i32_127 : i32 to vector<64x1xi32>
    %396 = arith.cmpi sge, %322, %395 : vector<64x1xi32>
    %c16_i32_128 = arith.constant 16 : i32
    %397 = vector.broadcast %c16_i32_128 : i32 to vector<64x1xi32>
    %398 = arith.cmpi slt, %322, %397 : vector<64x1xi32>
    %399 = arith.andi %396, %398 : vector<64x1xi1>
    %c0_i32_129 = arith.constant 0 : i32
    %400 = vector.broadcast %c0_i32_129 : i32 to vector<64x1xi32>
    %401 = arith.cmpi sge, %324, %400 : vector<64x1xi32>
    %402 = arith.andi %399, %401 : vector<64x1xi1>
    %c16_i32_130 = arith.constant 16 : i32
    %403 = vector.broadcast %c16_i32_130 : i32 to vector<64x1xi32>
    %404 = arith.cmpi slt, %324, %403 : vector<64x1xi32>
    %405 = arith.andi %402, %404 : vector<64x1xi1>
    %cst_131 = arith.constant 0.000000e+00 : f32
    %406 = vector.broadcast %cst_131 : f32 to vector<64x1xf32>
    %407 = arith.select %405, %325, %406 : vector<64x1xi1>, vector<64x1xf32>
    %c16_i32_132 = arith.constant 16 : i32
    %408 = vector.broadcast %c16_i32_132 : i32 to vector<64x1xi32>
    %409 = arith.muli %322, %408 : vector<64x1xi32>
    %410 = arith.addi %409, %324 : vector<64x1xi32>
    %411 = vector.broadcast %410 : vector<64x1xi32> to vector<64x256xi32>
    %412 = arith.cmpi eq, %22, %411 : vector<64x256xi32>
    %cst_133 = arith.constant 0.000000e+00 : f32
    %413 = vector.shape_cast %407 : vector<64x1xf32> to vector<64x1xf32>
    %414 = vector.broadcast %413 : vector<64x1xf32> to vector<64x256xf32>
    %415 = vector.broadcast %cst_133 : f32 to vector<64x256xf32>
    %416 = arith.select %412, %414, %415 : vector<64x256xi1>, vector<64x256xf32>
    %417 = arith.addf %394, %416 : vector<64x256xf32>
    %cst_134 = arith.constant dense<0.000000e+00> : vector<64x16xf32>
    %418 = tpu.matmul %417, %1, %cst_134 {dimension_numbers = #tpu.dot_dimension_numbers<[1], [0], [0], [1], [0, 0, 1, 1], [], []>} : vector<64x256xf32>, vector<256x16xf32>, vector<64x16xf32> -> vector<64x16xf32>
    %419 = vector.extract_strided_slice %8 {offsets = [0, 6], sizes = [64, 1], strides = [1, 1]} : vector<64x8xf32> to vector<64x1xf32>
    %420 = vector.extract_strided_slice %8 {offsets = [0, 7], sizes = [64, 1], strides = [1, 1]} : vector<64x8xf32> to vector<64x1xf32>
    %cst_135 = arith.constant 2.000000e+00 : f32
    %421 = vector.broadcast %cst_135 : f32 to vector<64x1xf32>
    %422 = arith.mulf %18, %421 : vector<64x1xf32>
    %cst_136 = arith.constant 1.000000e+00 : f32
    %423 = vector.broadcast %cst_136 : f32 to vector<64x1xf32>
    %424 = arith.addf %422, %423 : vector<64x1xf32>
    %425 = arith.addf %424, %419 : vector<64x1xf32>
    %cst_137 = arith.constant 2.000000e+00 : f32
    %426 = vector.broadcast %cst_137 : f32 to vector<64x1xf32>
    %427 = arith.mulf %21, %426 : vector<64x1xf32>
    %cst_138 = arith.constant 1.000000e+00 : f32
    %428 = vector.broadcast %cst_138 : f32 to vector<64x1xf32>
    %429 = arith.addf %427, %428 : vector<64x1xf32>
    %430 = arith.addf %429, %420 : vector<64x1xf32>
    %431 = math.floor %425 : vector<64x1xf32>
    %432 = math.floor %430 : vector<64x1xf32>
    %433 = arith.subf %425, %431 : vector<64x1xf32>
    %434 = arith.subf %430, %432 : vector<64x1xf32>
    %435 = arith.fptosi %431 : vector<64x1xf32> to vector<64x1xi32>
    %436 = arith.fptosi %432 : vector<64x1xf32> to vector<64x1xi32>
    %cst_139 = arith.constant 0.000000e+00 : f32
    %437 = vector.broadcast %cst_139 : f32 to vector<64x256xf32>
    %cst_140 = arith.constant 1.000000e+00 : f32
    %438 = vector.broadcast %cst_140 : f32 to vector<64x1xf32>
    %439 = arith.subf %438, %433 : vector<64x1xf32>
    %cst_141 = arith.constant 1.000000e+00 : f32
    %440 = vector.broadcast %cst_141 : f32 to vector<64x1xf32>
    %441 = arith.subf %440, %434 : vector<64x1xf32>
    %442 = arith.mulf %439, %441 : vector<64x1xf32>
    %c1_i32_142 = arith.constant 1 : i32
    %443 = vector.broadcast %c1_i32_142 : i32 to vector<64x1xi32>
    %444 = arith.addi %436, %443 : vector<64x1xi32>
    %cst_143 = arith.constant 1.000000e+00 : f32
    %445 = vector.broadcast %cst_143 : f32 to vector<64x1xf32>
    %446 = arith.subf %445, %433 : vector<64x1xf32>
    %447 = arith.mulf %446, %434 : vector<64x1xf32>
    %c1_i32_144 = arith.constant 1 : i32
    %448 = vector.broadcast %c1_i32_144 : i32 to vector<64x1xi32>
    %449 = arith.addi %435, %448 : vector<64x1xi32>
    %cst_145 = arith.constant 1.000000e+00 : f32
    %450 = vector.broadcast %cst_145 : f32 to vector<64x1xf32>
    %451 = arith.subf %450, %434 : vector<64x1xf32>
    %452 = arith.mulf %433, %451 : vector<64x1xf32>
    %c1_i32_146 = arith.constant 1 : i32
    %453 = vector.broadcast %c1_i32_146 : i32 to vector<64x1xi32>
    %454 = arith.addi %435, %453 : vector<64x1xi32>
    %c1_i32_147 = arith.constant 1 : i32
    %455 = vector.broadcast %c1_i32_147 : i32 to vector<64x1xi32>
    %456 = arith.addi %436, %455 : vector<64x1xi32>
    %457 = arith.mulf %433, %434 : vector<64x1xf32>
    %c0_i32_148 = arith.constant 0 : i32
    %458 = vector.broadcast %c0_i32_148 : i32 to vector<64x1xi32>
    %459 = arith.cmpi sge, %435, %458 : vector<64x1xi32>
    %c16_i32_149 = arith.constant 16 : i32
    %460 = vector.broadcast %c16_i32_149 : i32 to vector<64x1xi32>
    %461 = arith.cmpi slt, %435, %460 : vector<64x1xi32>
    %462 = arith.andi %459, %461 : vector<64x1xi1>
    %c0_i32_150 = arith.constant 0 : i32
    %463 = vector.broadcast %c0_i32_150 : i32 to vector<64x1xi32>
    %464 = arith.cmpi sge, %436, %463 : vector<64x1xi32>
    %465 = arith.andi %462, %464 : vector<64x1xi1>
    %c16_i32_151 = arith.constant 16 : i32
    %466 = vector.broadcast %c16_i32_151 : i32 to vector<64x1xi32>
    %467 = arith.cmpi slt, %436, %466 : vector<64x1xi32>
    %468 = arith.andi %465, %467 : vector<64x1xi1>
    %cst_152 = arith.constant 0.000000e+00 : f32
    %469 = vector.broadcast %cst_152 : f32 to vector<64x1xf32>
    %470 = arith.select %468, %442, %469 : vector<64x1xi1>, vector<64x1xf32>
    %c16_i32_153 = arith.constant 16 : i32
    %471 = vector.broadcast %c16_i32_153 : i32 to vector<64x1xi32>
    %472 = arith.muli %435, %471 : vector<64x1xi32>
    %473 = arith.addi %472, %436 : vector<64x1xi32>
    %474 = vector.broadcast %473 : vector<64x1xi32> to vector<64x256xi32>
    %475 = arith.cmpi eq, %22, %474 : vector<64x256xi32>
    %cst_154 = arith.constant 0.000000e+00 : f32
    %476 = vector.shape_cast %470 : vector<64x1xf32> to vector<64x1xf32>
    %477 = vector.broadcast %476 : vector<64x1xf32> to vector<64x256xf32>
    %478 = vector.broadcast %cst_154 : f32 to vector<64x256xf32>
    %479 = arith.select %475, %477, %478 : vector<64x256xi1>, vector<64x256xf32>
    %480 = arith.addf %437, %479 : vector<64x256xf32>
    %c0_i32_155 = arith.constant 0 : i32
    %481 = vector.broadcast %c0_i32_155 : i32 to vector<64x1xi32>
    %482 = arith.cmpi sge, %435, %481 : vector<64x1xi32>
    %c16_i32_156 = arith.constant 16 : i32
    %483 = vector.broadcast %c16_i32_156 : i32 to vector<64x1xi32>
    %484 = arith.cmpi slt, %435, %483 : vector<64x1xi32>
    %485 = arith.andi %482, %484 : vector<64x1xi1>
    %c0_i32_157 = arith.constant 0 : i32
    %486 = vector.broadcast %c0_i32_157 : i32 to vector<64x1xi32>
    %487 = arith.cmpi sge, %444, %486 : vector<64x1xi32>
    %488 = arith.andi %485, %487 : vector<64x1xi1>
    %c16_i32_158 = arith.constant 16 : i32
    %489 = vector.broadcast %c16_i32_158 : i32 to vector<64x1xi32>
    %490 = arith.cmpi slt, %444, %489 : vector<64x1xi32>
    %491 = arith.andi %488, %490 : vector<64x1xi1>
    %cst_159 = arith.constant 0.000000e+00 : f32
    %492 = vector.broadcast %cst_159 : f32 to vector<64x1xf32>
    %493 = arith.select %491, %447, %492 : vector<64x1xi1>, vector<64x1xf32>
    %c16_i32_160 = arith.constant 16 : i32
    %494 = vector.broadcast %c16_i32_160 : i32 to vector<64x1xi32>
    %495 = arith.muli %435, %494 : vector<64x1xi32>
    %496 = arith.addi %495, %444 : vector<64x1xi32>
    %497 = vector.broadcast %496 : vector<64x1xi32> to vector<64x256xi32>
    %498 = arith.cmpi eq, %22, %497 : vector<64x256xi32>
    %cst_161 = arith.constant 0.000000e+00 : f32
    %499 = vector.shape_cast %493 : vector<64x1xf32> to vector<64x1xf32>
    %500 = vector.broadcast %499 : vector<64x1xf32> to vector<64x256xf32>
    %501 = vector.broadcast %cst_161 : f32 to vector<64x256xf32>
    %502 = arith.select %498, %500, %501 : vector<64x256xi1>, vector<64x256xf32>
    %503 = arith.addf %480, %502 : vector<64x256xf32>
    %c0_i32_162 = arith.constant 0 : i32
    %504 = vector.broadcast %c0_i32_162 : i32 to vector<64x1xi32>
    %505 = arith.cmpi sge, %449, %504 : vector<64x1xi32>
    %c16_i32_163 = arith.constant 16 : i32
    %506 = vector.broadcast %c16_i32_163 : i32 to vector<64x1xi32>
    %507 = arith.cmpi slt, %449, %506 : vector<64x1xi32>
    %508 = arith.andi %505, %507 : vector<64x1xi1>
    %c0_i32_164 = arith.constant 0 : i32
    %509 = vector.broadcast %c0_i32_164 : i32 to vector<64x1xi32>
    %510 = arith.cmpi sge, %436, %509 : vector<64x1xi32>
    %511 = arith.andi %508, %510 : vector<64x1xi1>
    %c16_i32_165 = arith.constant 16 : i32
    %512 = vector.broadcast %c16_i32_165 : i32 to vector<64x1xi32>
    %513 = arith.cmpi slt, %436, %512 : vector<64x1xi32>
    %514 = arith.andi %511, %513 : vector<64x1xi1>
    %cst_166 = arith.constant 0.000000e+00 : f32
    %515 = vector.broadcast %cst_166 : f32 to vector<64x1xf32>
    %516 = arith.select %514, %452, %515 : vector<64x1xi1>, vector<64x1xf32>
    %c16_i32_167 = arith.constant 16 : i32
    %517 = vector.broadcast %c16_i32_167 : i32 to vector<64x1xi32>
    %518 = arith.muli %449, %517 : vector<64x1xi32>
    %519 = arith.addi %518, %436 : vector<64x1xi32>
    %520 = vector.broadcast %519 : vector<64x1xi32> to vector<64x256xi32>
    %521 = arith.cmpi eq, %22, %520 : vector<64x256xi32>
    %cst_168 = arith.constant 0.000000e+00 : f32
    %522 = vector.shape_cast %516 : vector<64x1xf32> to vector<64x1xf32>
    %523 = vector.broadcast %522 : vector<64x1xf32> to vector<64x256xf32>
    %524 = vector.broadcast %cst_168 : f32 to vector<64x256xf32>
    %525 = arith.select %521, %523, %524 : vector<64x256xi1>, vector<64x256xf32>
    %526 = arith.addf %503, %525 : vector<64x256xf32>
    %c0_i32_169 = arith.constant 0 : i32
    %527 = vector.broadcast %c0_i32_169 : i32 to vector<64x1xi32>
    %528 = arith.cmpi sge, %454, %527 : vector<64x1xi32>
    %c16_i32_170 = arith.constant 16 : i32
    %529 = vector.broadcast %c16_i32_170 : i32 to vector<64x1xi32>
    %530 = arith.cmpi slt, %454, %529 : vector<64x1xi32>
    %531 = arith.andi %528, %530 : vector<64x1xi1>
    %c0_i32_171 = arith.constant 0 : i32
    %532 = vector.broadcast %c0_i32_171 : i32 to vector<64x1xi32>
    %533 = arith.cmpi sge, %456, %532 : vector<64x1xi32>
    %534 = arith.andi %531, %533 : vector<64x1xi1>
    %c16_i32_172 = arith.constant 16 : i32
    %535 = vector.broadcast %c16_i32_172 : i32 to vector<64x1xi32>
    %536 = arith.cmpi slt, %456, %535 : vector<64x1xi32>
    %537 = arith.andi %534, %536 : vector<64x1xi1>
    %cst_173 = arith.constant 0.000000e+00 : f32
    %538 = vector.broadcast %cst_173 : f32 to vector<64x1xf32>
    %539 = arith.select %537, %457, %538 : vector<64x1xi1>, vector<64x1xf32>
    %c16_i32_174 = arith.constant 16 : i32
    %540 = vector.broadcast %c16_i32_174 : i32 to vector<64x1xi32>
    %541 = arith.muli %454, %540 : vector<64x1xi32>
    %542 = arith.addi %541, %456 : vector<64x1xi32>
    %543 = vector.broadcast %542 : vector<64x1xi32> to vector<64x256xi32>
    %544 = arith.cmpi eq, %22, %543 : vector<64x256xi32>
    %cst_175 = arith.constant 0.000000e+00 : f32
    %545 = vector.shape_cast %539 : vector<64x1xf32> to vector<64x1xf32>
    %546 = vector.broadcast %545 : vector<64x1xf32> to vector<64x256xf32>
    %547 = vector.broadcast %cst_175 : f32 to vector<64x256xf32>
    %548 = arith.select %544, %546, %547 : vector<64x256xi1>, vector<64x256xf32>
    %549 = arith.addf %526, %548 : vector<64x256xf32>
    %cst_176 = arith.constant dense<0.000000e+00> : vector<64x16xf32>
    %550 = tpu.matmul %549, %1, %cst_176 {dimension_numbers = #tpu.dot_dimension_numbers<[1], [0], [0], [1], [0, 0, 1, 1], [], []>} : vector<64x256xf32>, vector<256x16xf32>, vector<64x16xf32> -> vector<64x16xf32>
    %551 = tpu.concatenate %154, %286, %418, %550 in 1 : vector<64x16xf32>, vector<64x16xf32>, vector<64x16xf32>, vector<64x16xf32> -> vector<64x64xf32>
    %552 = arith.truncf %551 : vector<64x64xf32> to vector<64x64xbf16>
    %c0_177 = arith.constant 0 : index
    %c0_178 = arith.constant 0 : index
    %553 = vector.load %arg6[%c0_177, %c0_178] : memref<64x32xbf16, #tpu.memory_space<vmem>>, vector<64x32xbf16>
    %cst_179 = arith.constant dense<0.000000e+00> : vector<64x32xf32>
    %554 = tpu.matmul %552, %553, %cst_179 {dimension_numbers = #tpu.dot_dimension_numbers<[1], [0], [0], [1], [0, 0, 1, 1], [], []>} : vector<64x64xbf16>, vector<64x32xbf16>, vector<64x32xf32> -> vector<64x32xf32>
    %c0_180 = arith.constant 0 : index
    %c0_181 = arith.constant 0 : index
    %555 = vector.load %arg7[%c0_180, %c0_181] : memref<1x32xf32, #tpu.memory_space<vmem>>, vector<1x32xf32>
    %556 = vector.broadcast %555 : vector<1x32xf32> to vector<64x32xf32>
    %557 = arith.mulf %554, %556 : vector<64x32xf32>
    %c0_182 = arith.constant 0 : index
    %c0_183 = arith.constant 0 : index
    %558 = vector.load %arg8[%c0_182, %c0_183] : memref<1x32xf32, #tpu.memory_space<vmem>>, vector<1x32xf32>
    %559 = vector.broadcast %558 : vector<1x32xf32> to vector<64x32xf32>
    %560 = arith.addf %557, %559 : vector<64x32xf32>
    %cst_184 = arith.constant 5.000000e-01 : f32
    %561 = vector.broadcast %cst_184 : f32 to vector<64x32xf32>
    %562 = arith.mulf %561, %560 : vector<64x32xf32>
    %cst_185 = arith.constant 0.707106769 : f32
    %563 = vector.broadcast %cst_185 : f32 to vector<64x32xf32>
    %564 = arith.mulf %560, %563 : vector<64x32xf32>
    %cst_186 = arith.constant 0.000000e+00 : f32
    %565 = vector.broadcast %cst_186 : f32 to vector<64x32xf32>
    %566 = arith.cmpf oge, %564, %565 : vector<64x32xf32>
    %cst_187 = arith.constant 1.000000e+00 : f32
    %cst_188 = arith.constant -1.000000e+00 : f32
    %567 = vector.broadcast %cst_187 : f32 to vector<64x32xf32>
    %568 = vector.broadcast %cst_188 : f32 to vector<64x32xf32>
    %569 = arith.select %566, %567, %568 : vector<64x32xi1>, vector<64x32xf32>
    %570 = math.absf %564 : vector<64x32xf32>
    %cst_189 = arith.constant 0.327591091 : f32
    %571 = vector.broadcast %cst_189 : f32 to vector<64x32xf32>
    %572 = arith.mulf %571, %570 : vector<64x32xf32>
    %cst_190 = arith.constant 1.000000e+00 : f32
    %573 = vector.broadcast %cst_190 : f32 to vector<64x32xf32>
    %574 = arith.addf %573, %572 : vector<64x32xf32>
    %cst_191 = arith.constant 1.000000e+00 : f32
    %575 = vector.broadcast %cst_191 : f32 to vector<64x32xf32>
    %576 = arith.divf %575, %574 : vector<64x32xf32>
    %cst_192 = arith.constant 1.06140542 : f32
    %577 = vector.broadcast %cst_192 : f32 to vector<64x32xf32>
    %578 = arith.mulf %577, %576 : vector<64x32xf32>
    %cst_193 = arith.constant -1.45315206 : f32
    %579 = vector.broadcast %cst_193 : f32 to vector<64x32xf32>
    %580 = arith.addf %578, %579 : vector<64x32xf32>
    %581 = arith.mulf %580, %576 : vector<64x32xf32>
    %cst_194 = arith.constant 1.42141378 : f32
    %582 = vector.broadcast %cst_194 : f32 to vector<64x32xf32>
    %583 = arith.addf %581, %582 : vector<64x32xf32>
    %584 = arith.mulf %583, %576 : vector<64x32xf32>
    %cst_195 = arith.constant -0.284496725 : f32
    %585 = vector.broadcast %cst_195 : f32 to vector<64x32xf32>
    %586 = arith.addf %584, %585 : vector<64x32xf32>
    %587 = arith.mulf %586, %576 : vector<64x32xf32>
    %cst_196 = arith.constant 0.254829586 : f32
    %588 = vector.broadcast %cst_196 : f32 to vector<64x32xf32>
    %589 = arith.addf %587, %588 : vector<64x32xf32>
    %590 = arith.mulf %589, %576 : vector<64x32xf32>
    %cst_197 = arith.constant 0.000000e+00 : f32
    %591 = vector.broadcast %cst_197 : f32 to vector<64x32xf32>
    %592 = arith.subf %591, %570 : vector<64x32xf32>
    %593 = arith.mulf %592, %570 : vector<64x32xf32>
    %594 = math.exp %593 : vector<64x32xf32>
    %595 = arith.mulf %590, %594 : vector<64x32xf32>
    %cst_198 = arith.constant 1.000000e+00 : f32
    %596 = vector.broadcast %cst_198 : f32 to vector<64x32xf32>
    %597 = arith.subf %596, %595 : vector<64x32xf32>
    %598 = arith.mulf %569, %597 : vector<64x32xf32>
    %cst_199 = arith.constant 1.000000e+00 : f32
    %599 = vector.broadcast %cst_199 : f32 to vector<64x32xf32>
    %600 = arith.addf %599, %598 : vector<64x32xf32>
    %601 = arith.mulf %562, %600 : vector<64x32xf32>
    %c0_200 = arith.constant 0 : index
    %c0_201 = arith.constant 0 : index
    %c0_202 = arith.constant 0 : index
    %602 = vector.load %arg9[%c0_200, %c0_201, %c0_202] : memref<1x64x32xf32, #tpu.memory_space<vmem>>, vector<1x64x32xf32>
    %603 = vector.shape_cast %602 : vector<1x64x32xf32> to vector<64x32xf32>
    %604 = vector.shape_cast %601 : vector<64x32xf32> to vector<1x64x32xf32>
    tpu.vector_store %arg9[%c0_200, %c0_201, %c0_202], %604 {strides = array<i32>} : memref<1x64x32xf32, #tpu.memory_space<vmem>>, vector<1x64x32xf32>,
    return
  }
  func.func @transform_0(%arg0: i32, %arg1: i32) -> (i32, i32, i32) {
    %c0_i32 = arith.constant 0 : i32
    %c0_i32_0 = arith.constant 0 : i32
    %c0_i32_1 = arith.constant 0 : i32
    return %arg0, %c0_i32, %c0_i32_0 : i32, i32, i32
  }
  func.func @transform_1(%arg0: i32, %arg1: i32) -> (i32, i32, i32) {
    %c0_i32 = arith.constant 0 : i32
    %c0_i32_0 = arith.constant 0 : i32
    return %arg0, %arg1, %c0_i32 : i32, i32, i32
  }
  func.func @transform_2(%arg0: i32, %arg1: i32) -> (i32, i32) {
    %c0_i32 = arith.constant 0 : i32
    %c0_i32_0 = arith.constant 0 : i32
    %c0_i32_1 = arith.constant 0 : i32
    return %c0_i32, %c0_i32_0 : i32, i32
  }
  func.func @transform_3(%arg0: i32, %arg1: i32) -> (i32, i32) {
    %c0_i32 = arith.constant 0 : i32
    %c0_i32_0 = arith.constant 0 : i32
    %c0_i32_1 = arith.constant 0 : i32
    return %c0_i32, %c0_i32_0 : i32, i32
  }
  func.func @transform_4(%arg0: i32, %arg1: i32) -> (i32, i32) {
    %c0_i32 = arith.constant 0 : i32
    %c0_i32_0 = arith.constant 0 : i32
    %c0_i32_1 = arith.constant 0 : i32
    return %c0_i32, %c0_i32_0 : i32, i32
  }
  func.func @transform_5(%arg0: i32, %arg1: i32) -> (i32, i32) {
    %c0_i32 = arith.constant 0 : i32
    %c0_i32_0 = arith.constant 0 : i32
    %c0_i32_1 = arith.constant 0 : i32
    return %c0_i32, %c0_i32_0 : i32, i32
  }
  func.func @transform_6(%arg0: i32, %arg1: i32) -> (i32, i32) {
    %c0_i32 = arith.constant 0 : i32
    %c0_i32_0 = arith.constant 0 : i32
    %c0_i32_1 = arith.constant 0 : i32
    return %c0_i32, %c0_i32_0 : i32, i32
  }
  func.func @transform_7(%arg0: i32, %arg1: i32) -> (i32, i32, i32) {
    %c0_i32 = arith.constant 0 : i32
    %c0_i32_0 = arith.constant 0 : i32
    return %arg0, %arg1, %c0_i32 : i32, i32, i32
  }
}

</mosaic_0001>

<llo_original>
// kernel: tpu_custom_call.1
$region0: #{tpu_custom_call.1}
  #allocation0 [shape = 'u32[]', space=smem, size = 0x4, offset = 0x4, fixed_abs, tag = 'smem constant byte address 0x4 - core index']
  #allocation1 [shape = 'u32[144,128]{1,0:T(1,128)}', space=vmem, size = 0x12000, scoped, tag = 'internal scratch']
  %s0 = inlined_call_operand.vmem [shape: f32[2,256,16], index: 0, kind: input, shape index: {}]
  %s1 = inlined_call_operand.vmem [shape: f32[2,64,64], index: 1, kind: input, shape index: {}]
  %s2 = inlined_call_operand.vmem [shape: f32[64,8], index: 2, kind: input, shape index: {}]
  %s3 = inlined_call_operand.vmem [shape: f32[1,8], index: 3, kind: input, shape index: {}]
  %s4 = inlined_call_operand.vmem [shape: bf16[64,32], index: 4, kind: input, shape index: {}]
  %s5 = inlined_call_operand.vmem [shape: f32[1,32], index: 5, kind: input, shape index: {}]
  %s6 = inlined_call_operand.vmem [shape: f32[1,32], index: 6, kind: input, shape index: {}]
  %s7 = inlined_call_operand.vmem [shape: f32[2,64,32], index: 7, kind: output, shape index: {}]
  %s8 = sld [smem:[#allocation0]]
  $region61: #{tpu_custom_call.1} parent=0
    _
  %s10 = ssub.s32 1, %s8
  %s11 = scalar_select 0, %s10, %s8
  loop: start=0, step=1, limit=4
  $region2: #{tpu_custom_call.1} parent=0 // loop_pre_header
    _
  $region3: #{tpu_custom_call.1} parent=0 // loop_header
    %s13 = sphi 0, %s17
    %p14 = scmp.ge.s32.totalorder %s13, 4
    %s20 = sphi 0, %s32
    %s21 = sphi 0, %s28
    %s22 = sphi 0, %s20
    %s23 = sphi 0, %s21
    %s24 = sphi 0, %s22
    %s25 = sphi 0, %s23
    %s35 = sphi 0, %s37
    %s38 = sphi 0, %s35
    %s39 = sphi 0, %s38
    %s55 = sphi 0, %s39
    %s63 = sphi 0, %s65
    %s66 = sphi 0, %s63
    %s67 = sphi 0, %s66
    %s83 = sphi 0, %s67
    %s87 = sphi 0, %s87
    %s89 = sphi 0, %s87
    %s90 = sphi 0, %s89
    %s104 = sphi 0, %s90
    %s108 = sphi 0, %s108
    %s110 = sphi 0, %s108
    %s111 = sphi 0, %s110
    %s125 = sphi 0, %s111
    %s129 = sphi 0, %s129
    %s131 = sphi 0, %s129
    %s132 = sphi 0, %s131
    %s146 = sphi 0, %s132
    %s150 = sphi 0, %s150
    %s152 = sphi 0, %s150
    %s153 = sphi 0, %s152
    %s167 = sphi 0, %s153
    %s171 = sphi 0, %s171
    %s173 = sphi 0, %s171
    %s174 = sphi 0, %s173
    %s188 = sphi 0, %s174
    %s196 = sphi 0, %s198
    %s199 = sphi 0, %s196
    %s200 = sphi 0, %s199
    %s216 = sphi 0, %s200
  $region4: #{tpu_custom_call.1} parent=0 // loop_header_branch
    %16 = sbr.rel (%p14) target = $region8
  $region5: #{tpu_custom_call.1} parent=0 // loop_body
    %s18 = ssub.s32 %s13, 1
    %s19 = ssub.s32 %s13, 2
    %s26 = sadd.s32 1, %s21
    %p27 = scmp.ge.s32.totalorder %s26, 1
    %s28 = scalar_select %p27, 0, %s26
    %s29 = sadd.s32 1, %s20
    %s30 = scalar_select %p27, %s29, %s20
    %p31 = scmp.ge.s32.totalorder %s30, 2
    %s32 = scalar_select %p31, 0, %s30
    %s33 = ssub.s32 %s20, %s32
    %p34 = scmp.eq.s32.totalorder %s33, 0
    %s36 = sadd.s32 %s35, 1
    %s37 = scalar_select %p34, %s35, %s36
    %p40 = pneg %p34
    %p41 = scmp.eq.s32.totalorder %s13, 1
    %p42 = por %p40, %p41
    %p43 = scmp.ne.s32.totalorder %s35, %s38
    %p44 = scmp.eq.s32.totalorder %s13, 0
    %p45 = por %p43, %p44
    %p46 = scmp.ne.s32.totalorder %s35, %s38
    %p47 = scmp.eq.s32.totalorder %s18, 1
    %p48 = por %p46, %p47
    %p49 = scmp.ne.s32.totalorder %s38, %s39
    %p50 = scmp.eq.s32.totalorder %s18, 0
    %p51 = por %p49, %p50
    %p52 = scmp.ne.s32.totalorder %s38, %s39
    %p53 = scmp.eq.s32.totalorder %s19, 1
    %p54 = por %p52, %p53
    %p56 = scmp.ne.s32.totalorder %s39, %s55
    %p57 = scmp.eq.s32.totalorder %s19, 0
    %p58 = por %p56, %p57
    %s59 = ssub.s32 %s20, %s32
    %s60 = ssub.s32 %s21, %s28
    %s61 = sor.u32 %s59, %s60
    %p62 = scmp.eq.s32.totalorder %s61, 0
    %s64 = sadd.s32 %s63, 1
    %s65 = scalar_select %p62, %s63, %s64
    %p68 = pneg %p62
    %p69 = scmp.eq.s32.totalorder %s13, 1
    %p70 = por %p68, %p69
    %p71 = scmp.ne.s32.totalorder %s63, %s66
    %p72 = scmp.eq.s32.totalorder %s13, 0
    %p73 = por %p71, %p72
    %p74 = scmp.ne.s32.totalorder %s63, %s66
    %p75 = scmp.eq.s32.totalorder %s18, 1
    %p76 = por %p74, %p75
    %p77 = scmp.ne.s32.totalorder %s66, %s67
    %p78 = scmp.eq.s32.totalorder %s18, 0
    %p79 = por %p77, %p78
    %p80 = scmp.ne.s32.totalorder %s66, %s67
    %p81 = scmp.eq.s32.totalorder %s19, 1
    %p82 = por %p80, %p81
    %p84 = scmp.ne.s32.totalorder %s67, %s83
    %p85 = scmp.eq.s32.totalorder %s19, 0
    %p86 = por %p84, %p85
    %s88 = sadd.s32 %s87, 1
    %p91 = scmp.eq.s32.totalorder %s13, 1
    %p92 = scmp.ne.s32.totalorder %s87, %s89
    %p93 = scmp.eq.s32.totalorder %s13, 0
    %p94 = por %p92, %p93
    %p95 = scmp.ne.s32.totalorder %s87, %s89
    %p96 = scmp.eq.s32.totalorder %s18, 1
    %p97 = por %p95, %p96
    %p98 = scmp.ne.s32.totalorder %s89, %s90
    %p99 = scmp.eq.s32.totalorder %s18, 0
    %p100 = por %p98, %p99
    %p101 = scmp.ne.s32.totalorder %s89, %s90
    %p102 = scmp.eq.s32.totalorder %s19, 1
    %p103 = por %p101, %p102
    %p105 = scmp.ne.s32.totalorder %s90, %s104
    %p106 = scmp.eq.s32.totalorder %s19, 0
    %p107 = por %p105, %p106
    %s109 = sadd.s32 %s108, 1
    %p112 = scmp.eq.s32.totalorder %s13, 1
    %p113 = scmp.ne.s32.totalorder %s108, %s110
    %p114 = scmp.eq.s32.totalorder %s13, 0
    %p115 = por %p113, %p114
    %p116 = scmp.ne.s32.totalorder %s108, %s110
    %p117 = scmp.eq.s32.totalorder %s18, 1
    %p118 = por %p116, %p117
    %p119 = scmp.ne.s32.totalorder %s110, %s111
    %p120 = scmp.eq.s32.totalorder %s18, 0
    %p121 = por %p119, %p120
    %p122 = scmp.ne.s32.totalorder %s110, %s111
    %p123 = scmp.eq.s32.totalorder %s19, 1
    %p124 = por %p122, %p123
    %p126 = scmp.ne.s32.totalorder %s111, %s125
    %p127 = scmp.eq.s32.totalorder %s19, 0
    %p128 = por %p126, %p127
    %s130 = sadd.s32 %s129, 1
    %p133 = scmp.eq.s32.totalorder %s13, 1
    %p134 = scmp.ne.s32.totalorder %s129, %s131
    %p135 = scmp.eq.s32.totalorder %s13, 0
    %p136 = por %p134, %p135
    %p137 = scmp.ne.s32.totalorder %s129, %s131
    %p138 = scmp.eq.s32.totalorder %s18, 1
    %p139 = por %p137, %p138
    %p140 = scmp.ne.s32.totalorder %s131, %s132
    %p141 = scmp.eq.s32.totalorder %s18, 0
    %p142 = por %p140, %p141
    %p143 = scmp.ne.s32.totalorder %s131, %s132
    %p144 = scmp.eq.s32.totalorder %s19, 1
    %p145 = por %p143, %p144
    %p147 = scmp.ne.s32.totalorder %s132, %s146
    %p148 = scmp.eq.s32.totalorder %s19, 0
    %p149 = por %p147, %p148
    %s151 = sadd.s32 %s150, 1
    %p154 = scmp.eq.s32.totalorder %s13, 1
    %p155 = scmp.ne.s32.totalorder %s150, %s152
    %p156 = scmp.eq.s32.totalorder %s13, 0
    %p157 = por %p155, %p156
    %p158 = scmp.ne.s32.totalorder %s150, %s152
    %p159 = scmp.eq.s32.totalorder %s18, 1
    %p160 = por %p158, %p159
    %p161 = scmp.ne.s32.totalorder %s152, %s153
    %p162 = scmp.eq.s32.totalorder %s18, 0
    %p163 = por %p161, %p162
    %p164 = scmp.ne.s32.totalorder %s152, %s153
    %p165 = scmp.eq.s32.totalorder %s19, 1
    %p166 = por %p164, %p165
    %p168 = scmp.ne.s32.totalorder %s153, %s167
    %p169 = scmp.eq.s32.totalorder %s19, 0
    %p170 = por %p168, %p169
    %s172 = sadd.s32 %s171, 1
    %p175 = scmp.eq.s32.totalorder %s13, 1
    %p176 = scmp.ne.s32.totalorder %s171, %s173
    %p177 = scmp.eq.s32.totalorder %s13, 0
    %p178 = por %p176, %p177
    %p179 = scmp.ne.s32.totalorder %s171, %s173
    %p180 = scmp.eq.s32.totalorder %s18, 1
    %p181 = por %p179, %p180
    %p182 = scmp.ne.s32.totalorder %s173, %s174
    %p183 = scmp.eq.s32.totalorder %s18, 0
    %p184 = por %p182, %p183
    %p185 = scmp.ne.s32.totalorder %s173, %s174
    %p186 = scmp.eq.s32.totalorder %s19, 1
    %p187 = por %p185, %p186
    %p189 = scmp.ne.s32.totalorder %s174, %s188
    %p190 = scmp.eq.s32.totalorder %s19, 0
    %p191 = por %p189, %p190
    %s192 = ssub.s32 %s20, %s32
    %s193 = ssub.s32 %s21, %s28
    %s194 = sor.u32 %s192, %s193
    %p195 = scmp.eq.s32.totalorder %s194, 0
    %s197 = sadd.s32 %s196, 1
    %s198 = scalar_select %p195, %s196, %s197
    %p201 = pneg %p195
    %p202 = scmp.eq.s32.totalorder %s13, 1
    %p203 = por %p201, %p202
    %p204 = scmp.ne.s32.totalorder %s196, %s199
    %p205 = scmp.eq.s32.totalorder %s13, 0
    %p206 = por %p204, %p205
    %p207 = scmp.ne.s32.totalorder %s196, %s199
    %p208 = scmp.eq.s32.totalorder %s18, 1
    %p209 = por %p207, %p208
    %p210 = scmp.ne.s32.totalorder %s199, %s200
    %p211 = scmp.eq.s32.totalorder %s18, 0
    %p212 = por %p210, %p211
    %p213 = scmp.ne.s32.totalorder %s199, %s200
    %p214 = scmp.eq.s32.totalorder %s19, 1
    %p215 = por %p213, %p214
    %p217 = scmp.ne.s32.totalorder %s200, %s216
    %p218 = scmp.eq.s32.totalorder %s19, 0
    %p219 = por %p217, %p218
    %p220 = scmp.le.s32.totalorder 1, %s13
    %p221 = scmp.lt.s32.totalorder %s13, 3
    %p222 = pnand %p220, %p221
    %p223 = pneg %p222
    // Predicated region
    $region9: #{tpu_custom_call.1} parent=5 // pred_check
      _
    $region10: #{tpu_custom_call.1} parent=5 // pred_check_branch
      %225 = sbr.rel (%p222) target = $region12
    $region11: #{tpu_custom_call.1} parent=5 // pred_region
      %s226 = ssub.s32 %s13, 1
      // Predicated region
      $region13: #{tpu_custom_call.1} parent=11 // pred_check
        %p227 = pneg %p100
      $region14: #{tpu_custom_call.1} parent=11 // pred_check_branch
        %229 = sbr.rel (%p227) target = $region16
      $region15: #{tpu_custom_call.1} parent=11 // pred_region
        _
      $region16: #{tpu_custom_call.1} parent=11 // pred_fallthru
        _
      // Predicated region
      $region17: #{tpu_custom_call.1} parent=11 // pred_check
        %p230 = pneg %p121
      $region18: #{tpu_custom_call.1} parent=11 // pred_check_branch
        %232 = sbr.rel (%p230) target = $region20
      $region19: #{tpu_custom_call.1} parent=11 // pred_region
        _
      $region20: #{tpu_custom_call.1} parent=11 // pred_fallthru
        _
      // Predicated region
      $region21: #{tpu_custom_call.1} parent=11 // pred_check
        %p233 = pneg %p142
      $region22: #{tpu_custom_call.1} parent=11 // pred_check_branch
        %235 = sbr.rel (%p233) target = $region24
      $region23: #{tpu_custom_call.1} parent=11 // pred_region
        _
      $region24: #{tpu_custom_call.1} parent=11 // pred_fallthru
        _
      // Predicated region
      $region25: #{tpu_custom_call.1} parent=11 // pred_check
        %p236 = pneg %p163
      $region26: #{tpu_custom_call.1} parent=11 // pred_check_branch
        %238 = sbr.rel (%p236) target = $region28
      $region27: #{tpu_custom_call.1} parent=11 // pred_region
        _
      $region28: #{tpu_custom_call.1} parent=11 // pred_fallthru
        _
      // Predicated region
      $region29: #{tpu_custom_call.1} parent=11 // pred_check
        %p239 = pneg %p184
      $region30: #{tpu_custom_call.1} parent=11 // pred_check_branch
        %241 = sbr.rel (%p239) target = $region32
      $region31: #{tpu_custom_call.1} parent=11 // pred_region
        _
      $region32: #{tpu_custom_call.1} parent=11 // pred_fallthru
        _
    $region12: #{tpu_custom_call.1} parent=5 // pred_fallthru
      _
    %p242 = scmp.lt.s32.totalorder %s13, 2
    // Predicated region
    $region33: #{tpu_custom_call.1} parent=5 // pred_check
      %p243 = pneg %p242
    $region34: #{tpu_custom_call.1} parent=5 // pred_check_branch
      %245 = sbr.rel (%p243) target = $region36
    $region35: #{tpu_custom_call.1} parent=5 // pred_region
      // Predicated region
      $region37: #{tpu_custom_call.1} parent=35 // pred_check
        %p246 = pneg %p45
      $region38: #{tpu_custom_call.1} parent=35 // pred_check_branch
        %248 = sbr.rel (%p246) target = $region40
      $region39: #{tpu_custom_call.1} parent=35 // pred_region
        %p249 = scmp.lt.s32.totalorder %s20, 1
        %s250 = scalar_select %p249, %s20, 1
        %s251 = smul.addr %s250, 32
        %s252 = smul.addr %s251, 8
        %s253 = scalar_lea.vmem %s0, %s252
      $region40: #{tpu_custom_call.1} parent=35 // pred_fallthru
        _
      // Predicated region
      $region41: #{tpu_custom_call.1} parent=35 // pred_check
        %p254 = pneg %p73
      $region42: #{tpu_custom_call.1} parent=35 // pred_check_branch
        %256 = sbr.rel (%p254) target = $region44
      $region43: #{tpu_custom_call.1} parent=35 // pred_region
        %s257 = smul.u32 8, %s21
        %p258 = scmp.lt.s32.totalorder %s20, 1
        %s259 = scalar_select %p258, %s20, 1
        %p260 = scmp.lt.s32.totalorder %s257, 7
        %s261 = scalar_select %p260, %s257, 7
        %s262 = smul.addr %s259, 8
        %s263 = sadd.s32 %s261, %s262
        %s264 = smul.addr %s263, 8
        %s265 = scalar_lea.vmem %s1, %s264
        %s266 = smul.u32 8, %s21
      $region44: #{tpu_custom_call.1} parent=35 // pred_fallthru
        _
    $region36: #{tpu_custom_call.1} parent=5 // pred_fallthru
      _
    %p267 = scmp.le.s32.totalorder 1, %s13
    %p268 = scmp.lt.s32.totalorder %s13, 3
    %p269 = pnand %p267, %p268
    %p270 = pneg %p269
    // Predicated region
    $region45: #{tpu_custom_call.1} parent=5 // pred_check
      _
    $region46: #{tpu_custom_call.1} parent=5 // pred_check_branch
      %272 = sbr.rel (%p269) target = $region48
    $region47: #{tpu_custom_call.1} parent=5 // pred_region
      %s273 = ssub.s32 %s13, 1
      %p274 = scmp.lt.s32.totalorder %s22, 1
      %s275 = scalar_select %p274, %s22, 1
      %s276 = smul.addr %s275, 32
      %s277 = smul.addr %s276, 8
      %s278 = scalar_lea.vmem %s0, %s277
      %p279 = pneg %p51
      %p280 = pneg %p48
      %s281 = smul.u32 8, %s23
      %p282 = scmp.lt.s32.totalorder %s22, 1
      %s283 = scalar_select %p282, %s22, 1
      %p284 = scmp.lt.s32.totalorder %s281, 7
      %s285 = scalar_select %p284, %s281, 7
      %s286 = smul.addr %s283, 8
      %s287 = sadd.s32 %s285, %s286
      %s288 = smul.addr %s287, 8
      %s289 = scalar_lea.vmem %s1, %s288
      %p290 = pneg %p79
      %p291 = pneg %p76
      %p292 = pneg %p100
      %p293 = pneg %p97
      %p294 = pneg %p121
      %p295 = pneg %p118
      %p296 = pneg %p142
      %p297 = pneg %p139
      %p298 = pneg %p163
      %p299 = pneg %p160
      %p300 = pneg %p184
      %p301 = pneg %p181
      %p302 = pneg %p212
      %p303 = pneg %p209
      %s304 = smul.u32 8, %s23
      %p305 = scmp.lt.s32.totalorder %s22, 1
      %s306 = scalar_select %p305, %s22, 1
      %p307 = scmp.lt.s32.totalorder %s304, 7
      %s308 = scalar_select %p307, %s304, 7
      %s309 = smul.addr %s306, 8
      %s310 = sadd.s32 %s308, %s309
      %s311 = smul.addr %s310, 8
      %s312 = scalar_lea.vmem %s7, %s311
      %p313 = scmp.lt.s32.totalorder %s22, 1
      %s314 = scalar_select %p313, %s22, 1
      %s315 = smul.addr %s314, 32
      %s316 = smul.addr %s315, 8
      %s317 = scalar_lea.vmem %s0, %s316
      %s318 = smul.u32 8, %s23
      %p319 = scmp.lt.s32.totalorder %s22, 1
      %s320 = scalar_select %p319, %s22, 1
      %p321 = scmp.lt.s32.totalorder %s318, 7
      %s322 = scalar_select %p321, %s318, 7
      %s323 = smul.addr %s320, 8
      %s324 = sadd.s32 %s322, %s323
      %s325 = smul.addr %s324, 8
      %s326 = scalar_lea.vmem %s1, %s325
      %s327 = smul.u32 8, %s23
      %s328 = smul.u32 8, %s23
      %p329 = scmp.lt.s32.totalorder %s22, 1
      %s330 = scalar_select %p329, %s22, 1
      %p331 = scmp.lt.s32.totalorder %s328, 7
      %s332 = scalar_select %p331, %s328, 7
      %s333 = smul.addr %s330, 8
      %s334 = sadd.s32 %s332, %s333
      %s335 = smul.addr %s334, 8
      %s336 = scalar_lea.vmem %s7, %s335
      %s337 = smul.u32 8, %s23
      %v339 = vld [vmem:[%s317] sm:$0xff]
      %v340 = vld [vmem:[%s317 + $0x8] sm:$0xff]
      %v341 = vld [vmem:[%s317 + $0x10] sm:$0xff]
      %v342 = vld [vmem:[%s317 + $0x18] sm:$0xff]
      %v343 = vld [vmem:[%s317 + $0x20] sm:$0xff]
      %v344 = vld [vmem:[%s317 + $0x28] sm:$0xff]
      %v345 = vld [vmem:[%s317 + $0x30] sm:$0xff]
      %v346 = vld [vmem:[%s317 + $0x38] sm:$0xff]
      %v347 = vld [vmem:[%s317 + $0x40] sm:$0xff]
      %v348 = vld [vmem:[%s317 + $0x48] sm:$0xff]
      %v349 = vld [vmem:[%s317 + $0x50] sm:$0xff]
      %v350 = vld [vmem:[%s317 + $0x58] sm:$0xff]
      %v351 = vld [vmem:[%s317 + $0x60] sm:$0xff]
      %v352 = vld [vmem:[%s317 + $0x68] sm:$0xff]
      %v353 = vld [vmem:[%s317 + $0x70] sm:$0xff]
      %v354 = vld [vmem:[%s317 + $0x78] sm:$0xff]
      %v355 = vld [vmem:[%s317 + $0x80] sm:$0xff]
      %v356 = vld [vmem:[%s317 + $0x88] sm:$0xff]
      %v357 = vld [vmem:[%s317 + $0x90] sm:$0xff]
      %v358 = vld [vmem:[%s317 + $0x98] sm:$0xff]
      %v359 = vld [vmem:[%s317 + $0xa0] sm:$0xff]
      %v360 = vld [vmem:[%s317 + $0xa8] sm:$0xff]
      %v361 = vld [vmem:[%s317 + $0xb0] sm:$0xff]
      %v362 = vld [vmem:[%s317 + $0xb8] sm:$0xff]
      %v363 = vld [vmem:[%s317 + $0xc0] sm:$0xff]
      %v364 = vld [vmem:[%s317 + $0xc8] sm:$0xff]
      %v365 = vld [vmem:[%s317 + $0xd0] sm:$0xff]
      %v366 = vld [vmem:[%s317 + $0xd8] sm:$0xff]
      %v367 = vld [vmem:[%s317 + $0xe0] sm:$0xff]
      %v368 = vld [vmem:[%s317 + $0xe8] sm:$0xff]
      %v369 = vld [vmem:[%s317 + $0xf0] sm:$0xff]
      %v370 = vld [vmem:[%s317 + $0xf8] sm:$0xff]
      %v371 = vld [vmem:[%s326] sm:$0xff]
      %v372 = vld [vmem:[%s326 + $0x8] sm:$0xff]
      %v373 = vld [vmem:[%s326 + $0x10] sm:$0xff]
      %v374 = vld [vmem:[%s326 + $0x18] sm:$0xff]
      %v375 = vld [vmem:[%s326 + $0x20] sm:$0xff]
      %v376 = vld [vmem:[%s326 + $0x28] sm:$0xff]
      %v377 = vld [vmem:[%s326 + $0x30] sm:$0xff]
      %v378 = vld [vmem:[%s326 + $0x38] sm:$0xff]
      %v379 = vld [vmem:[%s2] sm:$0xff]
      %v380 = vld [vmem:[%s2 + $0x8] sm:$0xff]
      %v381 = vld [vmem:[%s2 + $0x10] sm:$0xff]
      %v382 = vld [vmem:[%s2 + $0x18] sm:$0xff]
      %v383 = vld [vmem:[%s2 + $0x20] sm:$0xff]
      %v384 = vld [vmem:[%s2 + $0x28] sm:$0xff]
      %v385 = vld [vmem:[%s2 + $0x30] sm:$0xff]
      %v386 = vld [vmem:[%s2 + $0x38] sm:$0xff]
      %v387 = vld [vmem:[%s3] sm:$0x1]
      %v389 = vlaneseq
      %v390 = vshrl.u32 %v389, 7
      %v391 = vsub.s32 0, %v390
      %v392 = vrot.slane %v387, %v391
      %vm394 = vcmask 523264
      %v396 = vsel %vm394, %v371, 0
      %v399 = vsel %vm394, %v372, 0
      %v402 = vsel %vm394, %v373, 0
      %v405 = vsel %vm394, %v374, 0
      %v408 = vsel %vm394, %v375, 0
      %v411 = vsel %vm394, %v376, 0
      %v414 = vsel %vm394, %v377, 0
      %v417 = vsel %vm394, %v378, 0
      %419 = vmatprep.subr.mxu0 0.0
      %420 = vmatpush1.msra.mxu0 %v379
      %421 = vmatprep.subr.mxu0 0.0
      %422 = vmatpush1.msra.mxu0 %v380
      %423 = vmatprep.subr.mxu0 0.0
      %424 = vmatpush1.msra.mxu0 %v381
      %425 = vmatprep.subr.mxu0 0.0
      %426 = vmatpush1.msra.mxu0 %v382
      %427 = vmatprep.subr.mxu0 0.0
      %428 = vmatpush1.msra.mxu0 %v383
      %429 = vmatprep.subr.mxu0 0.0
      %430 = vmatpush1.msra.mxu0 %v384
      %431 = vmatprep.subr.mxu0 0.0
      %432 = vmatpush1.msra.mxu0 %v385
      %433 = vmatprep.subr.mxu0 0.0
      %434 = vmatpush1.msra.mxu0 %v386
      %435 = vmatprep.subr.mxu0 0.0
      %436 = vmatpush1.msra.mxu0 0.0
      %437 = vmatprep.subr.mxu0 0.0
      %438 = vmatpush1.msra.mxu0 0.0
      %439 = vmatprep.subr.mxu0 0.0
      %440 = vmatpush1.msra.mxu0 0.0
      %441 = vmatprep.subr.mxu0 0.0
      %442 = vmatpush1.msra.mxu0 0.0
      %443 = vmatprep.subr.mxu0 0.0
      %444 = vmatpush1.msra.mxu0 0.0
      %445 = vmatprep.subr.mxu0 0.0
      %446 = vmatpush1.msra.mxu0 0.0
      %447 = vmatprep.subr.mxu0 0.0
      %448 = vmatpush1.msra.mxu0 0.0
      %449 = vmatprep.subr.mxu0 0.0
      %450 = vmatpush1.msra.mxu0 0.0
      %451 = vmatprep.subr.mxu0 0.0
      %452 = vmatpush1.msra.mxu0 0.0
      %453 = vmatprep.subr.mxu0 0.0
      %454 = vmatpush1.msra.mxu0 0.0
      %455 = vmatprep.subr.mxu0 0.0
      %456 = vmatpush1.msra.mxu0 0.0
      %457 = vmatprep.subr.mxu0 0.0
      %458 = vmatpush1.msra.mxu0 0.0
      %459 = vmatprep.subr.mxu0 0.0
      %460 = vmatpush1.msra.mxu0 0.0
      %461 = vmatprep.subr.mxu0 0.0
      %462 = vmatpush1.msra.mxu0 0.0
      %463 = vmatprep.subr.mxu0 0.0
      %464 = vmatpush1.msra.mxu0 0.0
      %465 = vmatprep.subr.mxu0 0.0
      %466 = vmatpush1.msra.mxu0 0.0
      %467 = vmatprep.subr.mxu0 0.0
      %468 = vmatpush1.msra.mxu0 0.0
      %469 = vmatprep.subr.mxu0 0.0
      %470 = vmatpush1.msra.mxu0 0.0
      %471 = vmatprep.subr.mxu0 0.0
      %472 = vmatpush1.msra.mxu0 0.0
      %473 = vmatprep.subr.mxu0 0.0
      %474 = vmatpush1.msra.mxu0 0.0
      %475 = vmatprep.subr.mxu0 0.0
      %476 = vmatpush1.msra.mxu0 0.0
      %477 = vmatprep.subr.mxu0 0.0
      %478 = vmatpush1.msra.mxu0 0.0
      %479 = vmatprep.subr.mxu0 0.0
      %480 = vmatpush1.msra.mxu0 0.0
      %481 = vmatprep.subr.mxu0 0.0
      %482 = vmatpush1.msra.mxu0 0.0
      %483 = vmatprep.mubr.f32.mxu0 0.0
      %484 = vmatmul.mubr.f32.gmra.mrb[0].mxu0 %v396
      %v485 = vpop.f32.mrb[0].mxu0
      %v486 = vadd.f32 %v392, %v485
      %v487 = vpop.f32.mrb[0].mxu0
      %488 = vmatprep.mubr.f32.mxu0 0.0
      %489 = vmatmul.mubr.f32.gmra.mrb[0].mxu0 %v399
      %v490 = vpop.f32.mrb[0].mxu0
      %v491 = vadd.f32 %v392, %v490
      %v492 = vpop.f32.mrb[0].mxu0
      %493 = vmatprep.mubr.f32.mxu0 0.0
      %494 = vmatmul.mubr.f32.gmra.mrb[0].mxu0 %v402
      %v495 = vpop.f32.mrb[0].mxu0
      %v496 = vadd.f32 %v392, %v495
      %v497 = vpop.f32.mrb[0].mxu0
      %498 = vmatprep.mubr.f32.mxu0 0.0
      %499 = vmatmul.mubr.f32.gmra.mrb[0].mxu0 %v405
      %v500 = vpop.f32.mrb[0].mxu0
      %v501 = vadd.f32 %v392, %v500
      %v502 = vpop.f32.mrb[0].mxu0
      %503 = vmatprep.mubr.f32.mxu0 0.0
      %504 = vmatmul.mubr.f32.gmra.mrb[0].mxu0 %v408
      %v505 = vpop.f32.mrb[0].mxu0
      %v506 = vadd.f32 %v392, %v505
      %v507 = vpop.f32.mrb[0].mxu0
      %508 = vmatprep.mubr.f32.mxu0 0.0
      %509 = vmatmul.mubr.f32.gmra.mrb[0].mxu0 %v411
      %v510 = vpop.f32.mrb[0].mxu0
      %v511 = vadd.f32 %v392, %v510
      %v512 = vpop.f32.mrb[0].mxu0
      %513 = vmatprep.mubr.f32.mxu0 0.0
      %514 = vmatmul.mubr.f32.gmra.mrb[0].mxu0 %v414
      %v515 = vpop.f32.mrb[0].mxu0
      %v516 = vadd.f32 %v392, %v515
      %v517 = vpop.f32.mrb[0].mxu0
      %518 = vmatprep.mubr.f32.mxu0 0.0
      %519 = vmatmul.mubr.f32.gmra.mrb[0].mxu0 %v417
      %v520 = vpop.f32.mrb[0].mxu0
      %v521 = vadd.f32 %v392, %v520
      %v522 = vpop.f32.mrb[0].mxu0
      %523 = vdwg.mxu0
      %s524 = smul.u32 %s23, 64
      %v525 = vlaneseq
      %v526 = vshrl.u32 %v525, 7
      %v527 = vadd.s32 %v526, 8
      %v528 = vadd.s32 %v526, 16
      %v529 = vadd.s32 %v526, 24
      %v530 = vadd.s32 %v526, 32
      %v531 = vadd.s32 %v526, 40
      %v532 = vadd.s32 %v526, 48
      %v533 = vadd.s32 %v526, 56
      %v534 = vstv %s524
      %v535 = vadd.s32 %v534, %v526
      %v536 = vadd.s32 %v534, %v527
      %v537 = vadd.s32 %v534, %v528
      %v538 = vadd.s32 %v534, %v529
      %v539 = vadd.s32 %v534, %v530
      %v540 = vadd.s32 %v534, %v531
      %v541 = vadd.s32 %v534, %v532
      %v542 = vadd.s32 %v534, %v533
      %v543 = vcvt.s32.f32 %v535
      %v544 = vcvt.s32.f32 %v536
      %v545 = vcvt.s32.f32 %v537
      %v546 = vcvt.s32.f32 %v538
      %v547 = vcvt.s32.f32 %v539
      %v548 = vcvt.s32.f32 %v540
      %v549 = vcvt.s32.f32 %v541
      %v550 = vcvt.s32.f32 %v542
      %v551 = vadd.f32 %v543, 0.5
      %v552 = vadd.f32 %v544, 0.5
      %v553 = vadd.f32 %v545, 0.5
      %v554 = vadd.f32 %v546, 0.5
      %v555 = vadd.f32 %v547, 0.5
      %v556 = vadd.f32 %v548, 0.5
      %v557 = vadd.f32 %v549, 0.5
      %v558 = vadd.f32 %v550, 0.5
      %v559 = vmul.f32 %v551, 0.125
      %v560 = vmul.f32 %v552, 0.125
      %v561 = vmul.f32 %v553, 0.125
      %v562 = vmul.f32 %v554, 0.125
      %v563 = vmul.f32 %v555, 0.125
      %v564 = vmul.f32 %v556, 0.125
      %v565 = vmul.f32 %v557, 0.125
      %v566 = vmul.f32 %v558, 0.125
      %v567 = vfloor.f32 %v559
      %v568 = vfloor.f32 %v560
      %v569 = vfloor.f32 %v561
      %v570 = vfloor.f32 %v562
      %v571 = vfloor.f32 %v563
      %v572 = vfloor.f32 %v564
      %v573 = vfloor.f32 %v565
      %v574 = vfloor.f32 %v566
      %v575 = vmul.f32 %v567, 8.0
      %v576 = vmul.f32 %v568, 8.0
      %v577 = vmul.f32 %v569, 8.0
      %v578 = vmul.f32 %v570, 8.0
      %v579 = vmul.f32 %v571, 8.0
      %v580 = vmul.f32 %v572, 8.0
      %v581 = vmul.f32 %v573, 8.0
      %v582 = vmul.f32 %v574, 8.0
      %v583 = vsub.f32 %v543, %v575
      %v584 = vsub.f32 %v544, %v576
      %v585 = vsub.f32 %v545, %v577
      %v586 = vsub.f32 %v546, %v578
      %v587 = vsub.f32 %v547, %v579
      %v588 = vsub.f32 %v548, %v580
      %v589 = vsub.f32 %v549, %v581
      %v590 = vsub.f32 %v550, %v582
      %v591 = vlaneseq
      %v592 = vand.u32 %v591, 127
      %v593 = vadd.s32 %v592, 128
      %v594 = vmul.f32 %v567, 2.0
      %v595 = vmul.f32 %v568, 2.0
      %v596 = vmul.f32 %v569, 2.0
      %v597 = vmul.f32 %v570, 2.0
      %v598 = vmul.f32 %v571, 2.0
      %v599 = vmul.f32 %v572, 2.0
      %v600 = vmul.f32 %v573, 2.0
      %v601 = vmul.f32 %v574, 2.0
      %v602 = vadd.f32 %v594, 0.0
      %v603 = vadd.f32 %v595, 0.0
      %v604 = vadd.f32 %v596, 0.0
      %v605 = vadd.f32 %v597, 0.0
      %v606 = vadd.f32 %v598, 0.0
      %v607 = vadd.f32 %v599, 0.0
      %v608 = vadd.f32 %v600, 0.0
      %v609 = vadd.f32 %v601, 0.0
      %v610 = vadd.f32 %v602, %v486
      %v611 = vadd.f32 %v603, %v491
      %v612 = vadd.f32 %v604, %v496
      %v613 = vadd.f32 %v605, %v501
      %v614 = vadd.f32 %v606, %v506
      %v615 = vadd.f32 %v607, %v511
      %v616 = vadd.f32 %v608, %v516
      %v617 = vadd.f32 %v609, %v521
      %v618 = vmul.f32 %v583, 2.0
      %v619 = vmul.f32 %v584, 2.0
      %v620 = vmul.f32 %v585, 2.0
      %v621 = vmul.f32 %v586, 2.0
      %v622 = vmul.f32 %v587, 2.0
      %v623 = vmul.f32 %v588, 2.0
      %v624 = vmul.f32 %v589, 2.0
      %v625 = vmul.f32 %v590, 2.0
      %v626 = vadd.f32 %v618, 0.0
      %v627 = vadd.f32 %v619, 0.0
      %v628 = vadd.f32 %v620, 0.0
      %v629 = vadd.f32 %v621, 0.0
      %v630 = vadd.f32 %v622, 0.0
      %v631 = vadd.f32 %v623, 0.0
      %v632 = vadd.f32 %v624, 0.0
      %v633 = vadd.f32 %v625, 0.0
      %v634 = vadd.f32 %v626, %v486
      %v635 = vadd.f32 %v627, %v491
      %v636 = vadd.f32 %v628, %v496
      %v637 = vadd.f32 %v629, %v501
      %v638 = vadd.f32 %v630, %v506
      %v639 = vadd.f32 %v631, %v511
      %v640 = vadd.f32 %v632, %v516
      %v641 = vadd.f32 %v633, %v521
      %v642 = vfloor.f32 %v610
      %v643 = vfloor.f32 %v611
      %v644 = vfloor.f32 %v612
      %v645 = vfloor.f32 %v613
      %v646 = vfloor.f32 %v614
      %v647 = vfloor.f32 %v615
      %v648 = vfloor.f32 %v616
      %v649 = vfloor.f32 %v617
      %v650 = vfloor.f32 %v634
      %v651 = vfloor.f32 %v635
      %v652 = vfloor.f32 %v636
      %v653 = vfloor.f32 %v637
      %v654 = vfloor.f32 %v638
      %v655 = vfloor.f32 %v639
      %v656 = vfloor.f32 %v640
      %v657 = vfloor.f32 %v641
      %v658 = vsub.f32 %v610, %v642
      %v659 = vsub.f32 %v611, %v643
      %v660 = vsub.f32 %v612, %v644
      %v661 = vsub.f32 %v613, %v645
      %v662 = vsub.f32 %v614, %v646
      %v663 = vsub.f32 %v615, %v647
      %v664 = vsub.f32 %v616, %v648
      %v665 = vsub.f32 %v617, %v649
      %v666 = vsub.f32 %v634, %v650
      %v667 = vsub.f32 %v635, %v651
      %v668 = vsub.f32 %v636, %v652
      %v669 = vsub.f32 %v637, %v653
      %v670 = vsub.f32 %v638, %v654
      %v671 = vsub.f32 %v639, %v655
      %v672 = vsub.f32 %v640, %v656
      %v673 = vsub.f32 %v641, %v657
      %v674 = vcvt.f32.s32.to.zero.pseudo %v642
      %v675 = vcvt.f32.s32.to.zero.pseudo %v643
      %v676 = vcvt.f32.s32.to.zero.pseudo %v644
      %v677 = vcvt.f32.s32.to.zero.pseudo %v645
      %v678 = vcvt.f32.s32.to.zero.pseudo %v646
      %v679 = vcvt.f32.s32.to.zero.pseudo %v647
      %v680 = vcvt.f32.s32.to.zero.pseudo %v648
      %v681 = vcvt.f32.s32.to.zero.pseudo %v649
      %v682 = vcvt.f32.s32.to.zero.pseudo %v650
      %v683 = vcvt.f32.s32.to.zero.pseudo %v651
      %v684 = vcvt.f32.s32.to.zero.pseudo %v652
      %v685 = vcvt.f32.s32.to.zero.pseudo %v653
      %v686 = vcvt.f32.s32.to.zero.pseudo %v654
      %v687 = vcvt.f32.s32.to.zero.pseudo %v655
      %v688 = vcvt.f32.s32.to.zero.pseudo %v656
      %v689 = vcvt.f32.s32.to.zero.pseudo %v657
      %v690 = vsub.f32 1.0, %v658
      %v691 = vsub.f32 1.0, %v659
      %v692 = vsub.f32 1.0, %v660
      %v693 = vsub.f32 1.0, %v661
      %v694 = vsub.f32 1.0, %v662
      %v695 = vsub.f32 1.0, %v663
      %v696 = vsub.f32 1.0, %v664
      %v697 = vsub.f32 1.0, %v665
      %v698 = vsub.f32 1.0, %v666
      %v699 = vsub.f32 1.0, %v667
      %v700 = vsub.f32 1.0, %v668
      %v701 = vsub.f32 1.0, %v669
      %v702 = vsub.f32 1.0, %v670
      %v703 = vsub.f32 1.0, %v671
      %v704 = vsub.f32 1.0, %v672
      %v705 = vsub.f32 1.0, %v673
      %714 = vrot.lane.b32.xlu0 %v698, 127
      %v715 = vpop.permute.xlu0 %714
      %716 = vrot.lane.b32.xlu0 %v699, 127
      %v717 = vpop.permute.xlu0 %716
      %718 = vrot.lane.b32.xlu0 %v700, 127
      %v719 = vpop.permute.xlu0 %718
      %720 = vrot.lane.b32.xlu0 %v701, 127
      %v721 = vpop.permute.xlu0 %720
      %722 = vrot.lane.b32.xlu0 %v702, 127
      %v723 = vpop.permute.xlu0 %722
      %724 = vrot.lane.b32.xlu0 %v703, 127
      %v725 = vpop.permute.xlu0 %724
      %726 = vrot.lane.b32.xlu0 %v704, 127
      %v727 = vpop.permute.xlu0 %726
      %728 = vrot.lane.b32.xlu0 %v705, 127
      %v729 = vpop.permute.xlu0 %728
      %v738 = vmul.f32 %v690, %v715
      %v739 = vmul.f32 %v691, %v717
      %v740 = vmul.f32 %v692, %v719
      %v741 = vmul.f32 %v693, %v721
      %v742 = vmul.f32 %v694, %v723
      %v743 = vmul.f32 %v695, %v725
      %v744 = vmul.f32 %v696, %v727
      %v745 = vmul.f32 %v697, %v729
      %v746 = vadd.s32 %v682, 1
      %v747 = vadd.s32 %v683, 1
      %v748 = vadd.s32 %v684, 1
      %v749 = vadd.s32 %v685, 1
      %v750 = vadd.s32 %v686, 1
      %v751 = vadd.s32 %v687, 1
      %v752 = vadd.s32 %v688, 1
      %v753 = vadd.s32 %v689, 1
      %762 = vrot.lane.b32.xlu0 %v666, 127
      %v763 = vpop.permute.xlu0 %762
      %764 = vrot.lane.b32.xlu0 %v667, 127
      %v765 = vpop.permute.xlu0 %764
      %766 = vrot.lane.b32.xlu0 %v668, 127
      %v767 = vpop.permute.xlu0 %766
      %768 = vrot.lane.b32.xlu0 %v669, 127
      %v769 = vpop.permute.xlu0 %768
      %770 = vrot.lane.b32.xlu0 %v670, 127
      %v771 = vpop.permute.xlu0 %770
      %772 = vrot.lane.b32.xlu0 %v671, 127
      %v773 = vpop.permute.xlu0 %772
      %774 = vrot.lane.b32.xlu0 %v672, 127
      %v775 = vpop.permute.xlu0 %774
      %776 = vrot.lane.b32.xlu0 %v673, 127
      %v777 = vpop.permute.xlu0 %776
      %v786 = vmul.f32 %v690, %v763
      %v787 = vmul.f32 %v691, %v765
      %v788 = vmul.f32 %v692, %v767
      %v789 = vmul.f32 %v693, %v769
      %v790 = vmul.f32 %v694, %v771
      %v791 = vmul.f32 %v695, %v773
      %v792 = vmul.f32 %v696, %v775
      %v793 = vmul.f32 %v697, %v777
      %v794 = vadd.s32 %v674, 1
      %v795 = vadd.s32 %v675, 1
      %v796 = vadd.s32 %v676, 1
      %v797 = vadd.s32 %v677, 1
      %v798 = vadd.s32 %v678, 1
      %v799 = vadd.s32 %v679, 1
      %v800 = vadd.s32 %v680, 1
      %v801 = vadd.s32 %v681, 1
      %v802 = vmul.f32 %v658, %v715
      %v803 = vmul.f32 %v659, %v717
      %v804 = vmul.f32 %v660, %v719
      %v805 = vmul.f32 %v661, %v721
      %v806 = vmul.f32 %v662, %v723
      %v807 = vmul.f32 %v663, %v725
      %v808 = vmul.f32 %v664, %v727
      %v809 = vmul.f32 %v665, %v729
      %v810 = vmul.f32 %v658, %v763
      %v811 = vmul.f32 %v659, %v765
      %v812 = vmul.f32 %v660, %v767
      %v813 = vmul.f32 %v661, %v769
      %v814 = vmul.f32 %v662, %v771
      %v815 = vmul.f32 %v663, %v773
      %v816 = vmul.f32 %v664, %v775
      %v817 = vmul.f32 %v665, %v777
      %vm818 = vcmp.ge.s32.totalorder %v674, 0
      %vm819 = vcmp.ge.s32.totalorder %v675, 0
      %vm820 = vcmp.ge.s32.totalorder %v676, 0
      %vm821 = vcmp.ge.s32.totalorder %v677, 0
      %vm822 = vcmp.ge.s32.totalorder %v678, 0
      %vm823 = vcmp.ge.s32.totalorder %v679, 0
      %vm824 = vcmp.ge.s32.totalorder %v680, 0
      %vm825 = vcmp.ge.s32.totalorder %v681, 0
      %vm826 = vcmp.lt.s32.totalorder %v674, 16
      %vm827 = vcmp.lt.s32.totalorder %v675, 16
      %vm828 = vcmp.lt.s32.totalorder %v676, 16
      %vm829 = vcmp.lt.s32.totalorder %v677, 16
      %vm830 = vcmp.lt.s32.totalorder %v678, 16
      %vm831 = vcmp.lt.s32.totalorder %v679, 16
      %vm832 = vcmp.lt.s32.totalorder %v680, 16
      %vm833 = vcmp.lt.s32.totalorder %v681, 16
      %vm834 = vmand %vm818, %vm826
      %vm835 = vmand %vm819, %vm827
      %vm836 = vmand %vm820, %vm828
      %vm837 = vmand %vm821, %vm829
      %vm838 = vmand %vm822, %vm830
      %vm839 = vmand %vm823, %vm831
      %vm840 = vmand %vm824, %vm832
      %vm841 = vmand %vm825, %vm833
      %vm842 = vcmp.ge.s32.totalorder %v682, 0
      %vm843 = vcmp.ge.s32.totalorder %v683, 0
      %vm844 = vcmp.ge.s32.totalorder %v684, 0
      %vm845 = vcmp.ge.s32.totalorder %v685, 0
      %vm846 = vcmp.ge.s32.totalorder %v686, 0
      %vm847 = vcmp.ge.s32.totalorder %v687, 0
      %vm848 = vcmp.ge.s32.totalorder %v688, 0
      %vm849 = vcmp.ge.s32.totalorder %v689, 0
      %v850 = vsel %vm842, 1, 0
      %v851 = vsel %vm843, 1, 0
      %v852 = vsel %vm844, 1, 0
      %v853 = vsel %vm845, 1, 0
      %v854 = vsel %vm846, 1, 0
      %v855 = vsel %vm847, 1, 0
      %v856 = vsel %vm848, 1, 0
      %v857 = vsel %vm849, 1, 0
      %858 = vrot.lane.b32.xlu0 %v850, 127
      %v859 = vpop.permute.xlu0 %858
      %860 = vrot.lane.b32.xlu0 %v851, 127
      %v861 = vpop.permute.xlu0 %860
      %862 = vrot.lane.b32.xlu0 %v852, 127
      %v863 = vpop.permute.xlu0 %862
      %864 = vrot.lane.b32.xlu0 %v853, 127
      %v865 = vpop.permute.xlu0 %864
      %866 = vrot.lane.b32.xlu0 %v854, 127
      %v867 = vpop.permute.xlu0 %866
      %868 = vrot.lane.b32.xlu0 %v855, 127
      %v869 = vpop.permute.xlu0 %868
      %870 = vrot.lane.b32.xlu0 %v856, 127
      %v871 = vpop.permute.xlu0 %870
      %872 = vrot.lane.b32.xlu0 %v857, 127
      %v873 = vpop.permute.xlu0 %872
      %vm874 = vcmp.ne.s32.totalorder %v859, 0
      %vm875 = vcmp.ne.s32.totalorder %v861, 0
      %vm876 = vcmp.ne.s32.totalorder %v863, 0
      %vm877 = vcmp.ne.s32.totalorder %v865, 0
      %vm878 = vcmp.ne.s32.totalorder %v867, 0
      %vm879 = vcmp.ne.s32.totalorder %v869, 0
      %vm880 = vcmp.ne.s32.totalorder %v871, 0
      %vm881 = vcmp.ne.s32.totalorder %v873, 0
      %vm882 = vmand %vm834, %vm874
      %vm883 = vmand %vm835, %vm875
      %vm884 = vmand %vm836, %vm876
      %vm885 = vmand %vm837, %vm877
      %vm886 = vmand %vm838, %vm878
      %vm887 = vmand %vm839, %vm879
      %vm888 = vmand %vm840, %vm880
      %vm889 = vmand %vm841, %vm881
      %vm890 = vcmp.lt.s32.totalorder %v682, 16
      %vm891 = vcmp.lt.s32.totalorder %v683, 16
      %vm892 = vcmp.lt.s32.totalorder %v684, 16
      %vm893 = vcmp.lt.s32.totalorder %v685, 16
      %vm894 = vcmp.lt.s32.totalorder %v686, 16
      %vm895 = vcmp.lt.s32.totalorder %v687, 16
      %vm896 = vcmp.lt.s32.totalorder %v688, 16
      %vm897 = vcmp.lt.s32.totalorder %v689, 16
      %v898 = vsel %vm890, 1, 0
      %v899 = vsel %vm891, 1, 0
      %v900 = vsel %vm892, 1, 0
      %v901 = vsel %vm893, 1, 0
      %v902 = vsel %vm894, 1, 0
      %v903 = vsel %vm895, 1, 0
      %v904 = vsel %vm896, 1, 0
      %v905 = vsel %vm897, 1, 0
      %906 = vrot.lane.b32.xlu0 %v898, 127
      %v907 = vpop.permute.xlu0 %906
      %908 = vrot.lane.b32.xlu0 %v899, 127
      %v909 = vpop.permute.xlu0 %908
      %910 = vrot.lane.b32.xlu0 %v900, 127
      %v911 = vpop.permute.xlu0 %910
      %912 = vrot.lane.b32.xlu0 %v901, 127
      %v913 = vpop.permute.xlu0 %912
      %914 = vrot.lane.b32.xlu0 %v902, 127
      %v915 = vpop.permute.xlu0 %914
      %916 = vrot.lane.b32.xlu0 %v903, 127
      %v917 = vpop.permute.xlu0 %916
      %918 = vrot.lane.b32.xlu0 %v904, 127
      %v919 = vpop.permute.xlu0 %918
      %920 = vrot.lane.b32.xlu0 %v905, 127
      %v921 = vpop.permute.xlu0 %920
      %vm922 = vcmp.ne.s32.totalorder %v907, 0
      %vm923 = vcmp.ne.s32.totalorder %v909, 0
      %vm924 = vcmp.ne.s32.totalorder %v911, 0
      %vm925 = vcmp.ne.s32.totalorder %v913, 0
      %vm926 = vcmp.ne.s32.totalorder %v915, 0
      %vm927 = vcmp.ne.s32.totalorder %v917, 0
      %vm928 = vcmp.ne.s32.totalorder %v919, 0
      %vm929 = vcmp.ne.s32.totalorder %v921, 0
      %vm930 = vmand %vm882, %vm922
      %vm931 = vmand %vm883, %vm923
      %vm932 = vmand %vm884, %vm924
      %vm933 = vmand %vm885, %vm925
      %vm934 = vmand %vm886, %vm926
      %vm935 = vmand %vm887, %vm927
      %vm936 = vmand %vm888, %vm928
      %vm937 = vmand %vm889, %vm929
      %v938 = vsel %vm930, %v738, 0.0
      %v939 = vsel %vm931, %v739, 0.0
      %v940 = vsel %vm932, %v740, 0.0
      %v941 = vsel %vm933, %v741, 0.0
      %v942 = vsel %vm934, %v742, 0.0
      %v943 = vsel %vm935, %v743, 0.0
      %v944 = vsel %vm936, %v744, 0.0
      %v945 = vsel %vm937, %v745, 0.0
      %v946 = vmul.u32 %v674, 16
      %v947 = vmul.u32 %v675, 16
      %v948 = vmul.u32 %v676, 16
      %v949 = vmul.u32 %v677, 16
      %v950 = vmul.u32 %v678, 16
      %v951 = vmul.u32 %v679, 16
      %v952 = vmul.u32 %v680, 16
      %v953 = vmul.u32 %v681, 16
      %954 = vrot.lane.b32.xlu0 %v682, 127
      %v955 = vpop.permute.xlu0 %954
      %956 = vrot.lane.b32.xlu0 %v683, 127
      %v957 = vpop.permute.xlu0 %956
      %958 = vrot.lane.b32.xlu0 %v684, 127
      %v959 = vpop.permute.xlu0 %958
      %960 = vrot.lane.b32.xlu0 %v685, 127
      %v961 = vpop.permute.xlu0 %960
      %962 = vrot.lane.b32.xlu0 %v686, 127
      %v963 = vpop.permute.xlu0 %962
      %964 = vrot.lane.b32.xlu0 %v687, 127
      %v965 = vpop.permute.xlu0 %964
      %966 = vrot.lane.b32.xlu0 %v688, 127
      %v967 = vpop.permute.xlu0 %966
      %968 = vrot.lane.b32.xlu0 %v689, 127
      %v969 = vpop.permute.xlu0 %968
      %v970 = vadd.s32 %v946, %v955
      %v971 = vadd.s32 %v947, %v957
      %v972 = vadd.s32 %v948, %v959
      %v973 = vadd.s32 %v949, %v961
      %v974 = vadd.s32 %v950, %v963
      %v975 = vadd.s32 %v951, %v965
      %v976 = vadd.s32 %v952, %v967
      %v977 = vadd.s32 %v953, %v969
      %978 = vset.pattern.permute.xlu0 0
      %979 = vperm.xlu0 %978, %v970
      %v980 = vpop.permute.xlu0 %979
      %981 = vset.pattern.permute.xlu0 0
      %982 = vperm.xlu0 %981, %v971
      %v983 = vpop.permute.xlu0 %982
      %984 = vset.pattern.permute.xlu0 0
      %985 = vperm.xlu0 %984, %v972
      %v986 = vpop.permute.xlu0 %985
      %987 = vset.pattern.permute.xlu0 0
      %988 = vperm.xlu0 %987, %v973
      %v989 = vpop.permute.xlu0 %988
      %990 = vset.pattern.permute.xlu0 0
      %991 = vperm.xlu0 %990, %v974
      %v992 = vpop.permute.xlu0 %991
      %993 = vset.pattern.permute.xlu0 0
      %994 = vperm.xlu0 %993, %v975
      %v995 = vpop.permute.xlu0 %994
      %996 = vset.pattern.permute.xlu0 0
      %997 = vperm.xlu0 %996, %v976
      %v998 = vpop.permute.xlu0 %997
      %999 = vset.pattern.permute.xlu0 0
      %1000 = vperm.xlu0 %999, %v977
      %v1001 = vpop.permute.xlu0 %1000
      %vm1002 = vcmp.eq.s32.totalorder %v592, %v980
      %vm1003 = vcmp.eq.s32.totalorder %v593, %v980
      %vm1004 = vcmp.eq.s32.totalorder %v592, %v983
      %vm1005 = vcmp.eq.s32.totalorder %v593, %v983
      %vm1006 = vcmp.eq.s32.totalorder %v592, %v986
      %vm1007 = vcmp.eq.s32.totalorder %v593, %v986
      %vm1008 = vcmp.eq.s32.totalorder %v592, %v989
      %vm1009 = vcmp.eq.s32.totalorder %v593, %v989
      %vm1010 = vcmp.eq.s32.totalorder %v592, %v992
      %vm1011 = vcmp.eq.s32.totalorder %v593, %v992
      %vm1012 = vcmp.eq.s32.totalorder %v592, %v995
      %vm1013 = vcmp.eq.s32.totalorder %v593, %v995
      %vm1014 = vcmp.eq.s32.totalorder %v592, %v998
      %vm1015 = vcmp.eq.s32.totalorder %v593, %v998
      %vm1016 = vcmp.eq.s32.totalorder %v592, %v1001
      %vm1017 = vcmp.eq.s32.totalorder %v593, %v1001
      %1019 = vset.pattern.permute.xlu0 0
      %1020 = vperm.xlu0 %1019, %v938
      %v1021 = vpop.permute.xlu0 %1020
      %1024 = vset.pattern.permute.xlu0 0
      %1025 = vperm.xlu0 %1024, %v939
      %v1026 = vpop.permute.xlu0 %1025
      %1029 = vset.pattern.permute.xlu0 0
      %1030 = vperm.xlu0 %1029, %v940
      %v1031 = vpop.permute.xlu0 %1030
      %1034 = vset.pattern.permute.xlu0 0
      %1035 = vperm.xlu0 %1034, %v941
      %v1036 = vpop.permute.xlu0 %1035
      %1039 = vset.pattern.permute.xlu0 0
      %1040 = vperm.xlu0 %1039, %v942
      %v1041 = vpop.permute.xlu0 %1040
      %1044 = vset.pattern.permute.xlu0 0
      %1045 = vperm.xlu0 %1044, %v943
      %v1046 = vpop.permute.xlu0 %1045
      %1049 = vset.pattern.permute.xlu0 0
      %1050 = vperm.xlu0 %1049, %v944
      %v1051 = vpop.permute.xlu0 %1050
      %1054 = vset.pattern.permute.xlu0 0
      %1055 = vperm.xlu0 %1054, %v945
      %v1056 = vpop.permute.xlu0 %1055
      %v1058 = vsel %vm1002, %v1021, 0.0
      %v1059 = vsel %vm1003, %v1021, 0.0
      %v1060 = vsel %vm1004, %v1026, 0.0
      %v1061 = vsel %vm1005, %v1026, 0.0
      %v1062 = vsel %vm1006, %v1031, 0.0
      %v1063 = vsel %vm1007, %v1031, 0.0
      %v1064 = vsel %vm1008, %v1036, 0.0
      %v1065 = vsel %vm1009, %v1036, 0.0
      %v1066 = vsel %vm1010, %v1041, 0.0
      %v1067 = vsel %vm1011, %v1041, 0.0
      %v1068 = vsel %vm1012, %v1046, 0.0
      %v1069 = vsel %vm1013, %v1046, 0.0
      %v1070 = vsel %vm1014, %v1051, 0.0
      %v1071 = vsel %vm1015, %v1051, 0.0
      %v1072 = vsel %vm1016, %v1056, 0.0
      %v1073 = vsel %vm1017, %v1056, 0.0
      %v1074 = vadd.f32 %v1058, 0.0
      %v1075 = vadd.f32 %v1059, 0.0
      %v1076 = vadd.f32 %v1060, 0.0
      %v1077 = vadd.f32 %v1061, 0.0
      %v1078 = vadd.f32 %v1062, 0.0
      %v1079 = vadd.f32 %v1063, 0.0
      %v1080 = vadd.f32 %v1064, 0.0
      %v1081 = vadd.f32 %v1065, 0.0
      %v1082 = vadd.f32 %v1066, 0.0
      %v1083 = vadd.f32 %v1067, 0.0
      %v1084 = vadd.f32 %v1068, 0.0
      %v1085 = vadd.f32 %v1069, 0.0
      %v1086 = vadd.f32 %v1070, 0.0
      %v1087 = vadd.f32 %v1071, 0.0
      %v1088 = vadd.f32 %v1072, 0.0
      %v1089 = vadd.f32 %v1073, 0.0
      %vm1090 = vcmp.ge.s32.totalorder %v746, 0
      %vm1091 = vcmp.ge.s32.totalorder %v747, 0
      %vm1092 = vcmp.ge.s32.totalorder %v748, 0
      %vm1093 = vcmp.ge.s32.totalorder %v749, 0
      %vm1094 = vcmp.ge.s32.totalorder %v750, 0
      %vm1095 = vcmp.ge.s32.totalorder %v751, 0
      %vm1096 = vcmp.ge.s32.totalorder %v752, 0
      %vm1097 = vcmp.ge.s32.totalorder %v753, 0
      %v1098 = vsel %vm1090, 1, 0
      %v1099 = vsel %vm1091, 1, 0
      %v1100 = vsel %vm1092, 1, 0
      %v1101 = vsel %vm1093, 1, 0
      %v1102 = vsel %vm1094, 1, 0
      %v1103 = vsel %vm1095, 1, 0
      %v1104 = vsel %vm1096, 1, 0
      %v1105 = vsel %vm1097, 1, 0
      %1106 = vrot.lane.b32.xlu0 %v1098, 127
      %v1107 = vpop.permute.xlu0 %1106
      %1108 = vrot.lane.b32.xlu0 %v1099, 127
      %v1109 = vpop.permute.xlu0 %1108
      %1110 = vrot.lane.b32.xlu0 %v1100, 127
      %v1111 = vpop.permute.xlu0 %1110
      %1112 = vrot.lane.b32.xlu0 %v1101, 127
      %v1113 = vpop.permute.xlu0 %1112
      %1114 = vrot.lane.b32.xlu0 %v1102, 127
      %v1115 = vpop.permute.xlu0 %1114
      %1116 = vrot.lane.b32.xlu0 %v1103, 127
      %v1117 = vpop.permute.xlu0 %1116
      %1118 = vrot.lane.b32.xlu0 %v1104, 127
      %v1119 = vpop.permute.xlu0 %1118
      %1120 = vrot.lane.b32.xlu0 %v1105, 127
      %v1121 = vpop.permute.xlu0 %1120
      %vm1122 = vcmp.ne.s32.totalorder %v1107, 0
      %vm1123 = vcmp.ne.s32.totalorder %v1109, 0
      %vm1124 = vcmp.ne.s32.totalorder %v1111, 0
      %vm1125 = vcmp.ne.s32.totalorder %v1113, 0
      %vm1126 = vcmp.ne.s32.totalorder %v1115, 0
      %vm1127 = vcmp.ne.s32.totalorder %v1117, 0
      %vm1128 = vcmp.ne.s32.totalorder %v1119, 0
      %vm1129 = vcmp.ne.s32.totalorder %v1121, 0
      %vm1130 = vmand %vm834, %vm1122
      %vm1131 = vmand %vm835, %vm1123
      %vm1132 = vmand %vm836, %vm1124
      %vm1133 = vmand %vm837, %vm1125
      %vm1134 = vmand %vm838, %vm1126
      %vm1135 = vmand %vm839, %vm1127
      %vm1136 = vmand %vm840, %vm1128
      %vm1137 = vmand %vm841, %vm1129
      %vm1138 = vcmp.lt.s32.totalorder %v746, 16
      %vm1139 = vcmp.lt.s32.totalorder %v747, 16
      %vm1140 = vcmp.lt.s32.totalorder %v748, 16
      %vm1141 = vcmp.lt.s32.totalorder %v749, 16
      %vm1142 = vcmp.lt.s32.totalorder %v750, 16
      %vm1143 = vcmp.lt.s32.totalorder %v751, 16
      %vm1144 = vcmp.lt.s32.totalorder %v752, 16
      %vm1145 = vcmp.lt.s32.totalorder %v753, 16
      %v1146 = vsel %vm1138, 1, 0
      %v1147 = vsel %vm1139, 1, 0
      %v1148 = vsel %vm1140, 1, 0
      %v1149 = vsel %vm1141, 1, 0
      %v1150 = vsel %vm1142, 1, 0
      %v1151 = vsel %vm1143, 1, 0
      %v1152 = vsel %vm1144, 1, 0
      %v1153 = vsel %vm1145, 1, 0
      %1154 = vrot.lane.b32.xlu0 %v1146, 127
      %v1155 = vpop.permute.xlu0 %1154
      %1156 = vrot.lane.b32.xlu0 %v1147, 127
      %v1157 = vpop.permute.xlu0 %1156
      %1158 = vrot.lane.b32.xlu0 %v1148, 127
      %v1159 = vpop.permute.xlu0 %1158
      %1160 = vrot.lane.b32.xlu0 %v1149, 127
      %v1161 = vpop.permute.xlu0 %1160
      %1162 = vrot.lane.b32.xlu0 %v1150, 127
      %v1163 = vpop.permute.xlu0 %1162
      %1164 = vrot.lane.b32.xlu0 %v1151, 127
      %v1165 = vpop.permute.xlu0 %1164
      %1166 = vrot.lane.b32.xlu0 %v1152, 127
      %v1167 = vpop.permute.xlu0 %1166
      %1168 = vrot.lane.b32.xlu0 %v1153, 127
      %v1169 = vpop.permute.xlu0 %1168
      %vm1170 = vcmp.ne.s32.totalorder %v1155, 0
      %vm1171 = vcmp.ne.s32.totalorder %v1157, 0
      %vm1172 = vcmp.ne.s32.totalorder %v1159, 0
      %vm1173 = vcmp.ne.s32.totalorder %v1161, 0
      %vm1174 = vcmp.ne.s32.totalorder %v1163, 0
      %vm1175 = vcmp.ne.s32.totalorder %v1165, 0
      %vm1176 = vcmp.ne.s32.totalorder %v1167, 0
      %vm1177 = vcmp.ne.s32.totalorder %v1169, 0
      %vm1178 = vmand %vm1130, %vm1170
      %vm1179 = vmand %vm1131, %vm1171
      %vm1180 = vmand %vm1132, %vm1172
      %vm1181 = vmand %vm1133, %vm1173
      %vm1182 = vmand %vm1134, %vm1174
      %vm1183 = vmand %vm1135, %vm1175
      %vm1184 = vmand %vm1136, %vm1176
      %vm1185 = vmand %vm1137, %vm1177
      %v1186 = vsel %vm1178, %v786, 0.0
      %v1187 = vsel %vm1179, %v787, 0.0
      %v1188 = vsel %vm1180, %v788, 0.0
      %v1189 = vsel %vm1181, %v789, 0.0
      %v1190 = vsel %vm1182, %v790, 0.0
      %v1191 = vsel %vm1183, %v791, 0.0
      %v1192 = vsel %vm1184, %v792, 0.0
      %v1193 = vsel %vm1185, %v793, 0.0
      %1194 = vrot.lane.b32.xlu0 %v746, 127
      %v1195 = vpop.permute.xlu0 %1194
      %1196 = vrot.lane.b32.xlu0 %v747, 127
      %v1197 = vpop.permute.xlu0 %1196
      %1198 = vrot.lane.b32.xlu0 %v748, 127
      %v1199 = vpop.permute.xlu0 %1198
      %1200 = vrot.lane.b32.xlu0 %v749, 127
      %v1201 = vpop.permute.xlu0 %1200
      %1202 = vrot.lane.b32.xlu0 %v750, 127
      %v1203 = vpop.permute.xlu0 %1202
      %1204 = vrot.lane.b32.xlu0 %v751, 127
      %v1205 = vpop.permute.xlu0 %1204
      %1206 = vrot.lane.b32.xlu0 %v752, 127
      %v1207 = vpop.permute.xlu0 %1206
      %1208 = vrot.lane.b32.xlu0 %v753, 127
      %v1209 = vpop.permute.xlu0 %1208
      %v1210 = vadd.s32 %v946, %v1195
      %v1211 = vadd.s32 %v947, %v1197
      %v1212 = vadd.s32 %v948, %v1199
      %v1213 = vadd.s32 %v949, %v1201
      %v1214 = vadd.s32 %v950, %v1203
      %v1215 = vadd.s32 %v951, %v1205
      %v1216 = vadd.s32 %v952, %v1207
      %v1217 = vadd.s32 %v953, %v1209
      %1218 = vset.pattern.permute.xlu0 0
      %1219 = vperm.xlu0 %1218, %v1210
      %v1220 = vpop.permute.xlu0 %1219
      %1221 = vset.pattern.permute.xlu0 0
      %1222 = vperm.xlu0 %1221, %v1211
      %v1223 = vpop.permute.xlu0 %1222
      %1224 = vset.pattern.permute.xlu0 0
      %1225 = vperm.xlu0 %1224, %v1212
      %v1226 = vpop.permute.xlu0 %1225
      %1227 = vset.pattern.permute.xlu0 0
      %1228 = vperm.xlu0 %1227, %v1213
      %v1229 = vpop.permute.xlu0 %1228
      %1230 = vset.pattern.permute.xlu0 0
      %1231 = vperm.xlu0 %1230, %v1214
      %v1232 = vpop.permute.xlu0 %1231
      %1233 = vset.pattern.permute.xlu0 0
      %1234 = vperm.xlu0 %1233, %v1215
      %v1235 = vpop.permute.xlu0 %1234
      %1236 = vset.pattern.permute.xlu0 0
      %1237 = vperm.xlu0 %1236, %v1216
      %v1238 = vpop.permute.xlu0 %1237
      %1239 = vset.pattern.permute.xlu0 0
      %1240 = vperm.xlu0 %1239, %v1217
      %v1241 = vpop.permute.xlu0 %1240
      %vm1242 = vcmp.eq.s32.totalorder %v592, %v1220
      %vm1243 = vcmp.eq.s32.totalorder %v593, %v1220
      %vm1244 = vcmp.eq.s32.totalorder %v592, %v1223
      %vm1245 = vcmp.eq.s32.totalorder %v593, %v1223
      %vm1246 = vcmp.eq.s32.totalorder %v592, %v1226
      %vm1247 = vcmp.eq.s32.totalorder %v593, %v1226
      %vm1248 = vcmp.eq.s32.totalorder %v592, %v1229
      %vm1249 = vcmp.eq.s32.totalorder %v593, %v1229
      %vm1250 = vcmp.eq.s32.totalorder %v592, %v1232
      %vm1251 = vcmp.eq.s32.totalorder %v593, %v1232
      %vm1252 = vcmp.eq.s32.totalorder %v592, %v1235
      %vm1253 = vcmp.eq.s32.totalorder %v593, %v1235
      %vm1254 = vcmp.eq.s32.totalorder %v592, %v1238
      %vm1255 = vcmp.eq.s32.totalorder %v593, %v1238
      %vm1256 = vcmp.eq.s32.totalorder %v592, %v1241
      %vm1257 = vcmp.eq.s32.totalorder %v593, %v1241
      %1259 = vset.pattern.permute.xlu0 0
      %1260 = vperm.xlu0 %1259, %v1186
      %v1261 = vpop.permute.xlu0 %1260
      %1264 = vset.pattern.permute.xlu0 0
      %1265 = vperm.xlu0 %1264, %v1187
      %v1266 = vpop.permute.xlu0 %1265
      %1269 = vset.pattern.permute.xlu0 0
      %1270 = vperm.xlu0 %1269, %v1188
      %v1271 = vpop.permute.xlu0 %1270
      %1274 = vset.pattern.permute.xlu0 0
      %1275 = vperm.xlu0 %1274, %v1189
      %v1276 = vpop.permute.xlu0 %1275
      %1279 = vset.pattern.permute.xlu0 0
      %1280 = vperm.xlu0 %1279, %v1190
      %v1281 = vpop.permute.xlu0 %1280
      %1284 = vset.pattern.permute.xlu0 0
      %1285 = vperm.xlu0 %1284, %v1191
      %v1286 = vpop.permute.xlu0 %1285
      %1289 = vset.pattern.permute.xlu0 0
      %1290 = vperm.xlu0 %1289, %v1192
      %v1291 = vpop.permute.xlu0 %1290
      %1294 = vset.pattern.permute.xlu0 0
      %1295 = vperm.xlu0 %1294, %v1193
      %v1296 = vpop.permute.xlu0 %1295
      %v1298 = vsel %vm1242, %v1261, 0.0
      %v1299 = vsel %vm1243, %v1261, 0.0
      %v1300 = vsel %vm1244, %v1266, 0.0
      %v1301 = vsel %vm1245, %v1266, 0.0
      %v1302 = vsel %vm1246, %v1271, 0.0
      %v1303 = vsel %vm1247, %v1271, 0.0
      %v1304 = vsel %vm1248, %v1276, 0.0
      %v1305 = vsel %vm1249, %v1276, 0.0
      %v1306 = vsel %vm1250, %v1281, 0.0
      %v1307 = vsel %vm1251, %v1281, 0.0
      %v1308 = vsel %vm1252, %v1286, 0.0
      %v1309 = vsel %vm1253, %v1286, 0.0
      %v1310 = vsel %vm1254, %v1291, 0.0
      %v1311 = vsel %vm1255, %v1291, 0.0
      %v1312 = vsel %vm1256, %v1296, 0.0
      %v1313 = vsel %vm1257, %v1296, 0.0
      %v1314 = vadd.f32 %v1074, %v1298
      %v1315 = vadd.f32 %v1075, %v1299
      %v1316 = vadd.f32 %v1076, %v1300
      %v1317 = vadd.f32 %v1077, %v1301
      %v1318 = vadd.f32 %v1078, %v1302
      %v1319 = vadd.f32 %v1079, %v1303
      %v1320 = vadd.f32 %v1080, %v1304
      %v1321 = vadd.f32 %v1081, %v1305
      %v1322 = vadd.f32 %v1082, %v1306
      %v1323 = vadd.f32 %v1083, %v1307
      %v1324 = vadd.f32 %v1084, %v1308
      %v1325 = vadd.f32 %v1085, %v1309
      %v1326 = vadd.f32 %v1086, %v1310
      %v1327 = vadd.f32 %v1087, %v1311
      %v1328 = vadd.f32 %v1088, %v1312
      %v1329 = vadd.f32 %v1089, %v1313
      %vm1330 = vcmp.ge.s32.totalorder %v794, 0
      %vm1331 = vcmp.ge.s32.totalorder %v795, 0
      %vm1332 = vcmp.ge.s32.totalorder %v796, 0
      %vm1333 = vcmp.ge.s32.totalorder %v797, 0
      %vm1334 = vcmp.ge.s32.totalorder %v798, 0
      %vm1335 = vcmp.ge.s32.totalorder %v799, 0
      %vm1336 = vcmp.ge.s32.totalorder %v800, 0
      %vm1337 = vcmp.ge.s32.totalorder %v801, 0
      %vm1338 = vcmp.lt.s32.totalorder %v794, 16
      %vm1339 = vcmp.lt.s32.totalorder %v795, 16
      %vm1340 = vcmp.lt.s32.totalorder %v796, 16
      %vm1341 = vcmp.lt.s32.totalorder %v797, 16
      %vm1342 = vcmp.lt.s32.totalorder %v798, 16
      %vm1343 = vcmp.lt.s32.totalorder %v799, 16
      %vm1344 = vcmp.lt.s32.totalorder %v800, 16
      %vm1345 = vcmp.lt.s32.totalorder %v801, 16
      %vm1346 = vmand %vm1330, %vm1338
      %vm1347 = vmand %vm1331, %vm1339
      %vm1348 = vmand %vm1332, %vm1340
      %vm1349 = vmand %vm1333, %vm1341
      %vm1350 = vmand %vm1334, %vm1342
      %vm1351 = vmand %vm1335, %vm1343
      %vm1352 = vmand %vm1336, %vm1344
      %vm1353 = vmand %vm1337, %vm1345
      %vm1354 = vmand %vm1346, %vm874
      %vm1355 = vmand %vm1347, %vm875
      %vm1356 = vmand %vm1348, %vm876
      %vm1357 = vmand %vm1349, %vm877
      %vm1358 = vmand %vm1350, %vm878
      %vm1359 = vmand %vm1351, %vm879
      %vm1360 = vmand %vm1352, %vm880
      %vm1361 = vmand %vm1353, %vm881
      %vm1362 = vmand %vm1354, %vm922
      %vm1363 = vmand %vm1355, %vm923
      %vm1364 = vmand %vm1356, %vm924
      %vm1365 = vmand %vm1357, %vm925
      %vm1366 = vmand %vm1358, %vm926
      %vm1367 = vmand %vm1359, %vm927
      %vm1368 = vmand %vm1360, %vm928
      %vm1369 = vmand %vm1361, %vm929
      %v1370 = vsel %vm1362, %v802, 0.0
      %v1371 = vsel %vm1363, %v803, 0.0
      %v1372 = vsel %vm1364, %v804, 0.0
      %v1373 = vsel %vm1365, %v805, 0.0
      %v1374 = vsel %vm1366, %v806, 0.0
      %v1375 = vsel %vm1367, %v807, 0.0
      %v1376 = vsel %vm1368, %v808, 0.0
      %v1377 = vsel %vm1369, %v809, 0.0
      %v1378 = vmul.u32 %v794, 16
      %v1379 = vmul.u32 %v795, 16
      %v1380 = vmul.u32 %v796, 16
      %v1381 = vmul.u32 %v797, 16
      %v1382 = vmul.u32 %v798, 16
      %v1383 = vmul.u32 %v799, 16
      %v1384 = vmul.u32 %v800, 16
      %v1385 = vmul.u32 %v801, 16
      %v1386 = vadd.s32 %v1378, %v955
      %v1387 = vadd.s32 %v1379, %v957
      %v1388 = vadd.s32 %v1380, %v959
      %v1389 = vadd.s32 %v1381, %v961
      %v1390 = vadd.s32 %v1382, %v963
      %v1391 = vadd.s32 %v1383, %v965
      %v1392 = vadd.s32 %v1384, %v967
      %v1393 = vadd.s32 %v1385, %v969
      %1394 = vset.pattern.permute.xlu0 0
      %1395 = vperm.xlu0 %1394, %v1386
      %v1396 = vpop.permute.xlu0 %1395
      %1397 = vset.pattern.permute.xlu0 0
      %1398 = vperm.xlu0 %1397, %v1387
      %v1399 = vpop.permute.xlu0 %1398
      %1400 = vset.pattern.permute.xlu0 0
      %1401 = vperm.xlu0 %1400, %v1388
      %v1402 = vpop.permute.xlu0 %1401
      %1403 = vset.pattern.permute.xlu0 0
      %1404 = vperm.xlu0 %1403, %v1389
      %v1405 = vpop.permute.xlu0 %1404
      %1406 = vset.pattern.permute.xlu0 0
      %1407 = vperm.xlu0 %1406, %v1390
      %v1408 = vpop.permute.xlu0 %1407
      %1409 = vset.pattern.permute.xlu0 0
      %1410 = vperm.xlu0 %1409, %v1391
      %v1411 = vpop.permute.xlu0 %1410
      %1412 = vset.pattern.permute.xlu0 0
      %1413 = vperm.xlu0 %1412, %v1392
      %v1414 = vpop.permute.xlu0 %1413
      %1415 = vset.pattern.permute.xlu0 0
      %1416 = vperm.xlu0 %1415, %v1393
      %v1417 = vpop.permute.xlu0 %1416
      %vm1418 = vcmp.eq.s32.totalorder %v592, %v1396
      %vm1419 = vcmp.eq.s32.totalorder %v593, %v1396
      %vm1420 = vcmp.eq.s32.totalorder %v592, %v1399
      %vm1421 = vcmp.eq.s32.totalorder %v593, %v1399
      %vm1422 = vcmp.eq.s32.totalorder %v592, %v1402
      %vm1423 = vcmp.eq.s32.totalorder %v593, %v1402
      %vm1424 = vcmp.eq.s32.totalorder %v592, %v1405
      %vm1425 = vcmp.eq.s32.totalorder %v593, %v1405
      %vm1426 = vcmp.eq.s32.totalorder %v592, %v1408
      %vm1427 = vcmp.eq.s32.totalorder %v593, %v1408
      %vm1428 = vcmp.eq.s32.totalorder %v592, %v1411
      %vm1429 = vcmp.eq.s32.totalorder %v593, %v1411
      %vm1430 = vcmp.eq.s32.totalorder %v592, %v1414
      %vm1431 = vcmp.eq.s32.totalorder %v593, %v1414
      %vm1432 = vcmp.eq.s32.totalorder %v592, %v1417
      %vm1433 = vcmp.eq.s32.totalorder %v593, %v1417
      %1435 = vset.pattern.permute.xlu0 0
      %1436 = vperm.xlu0 %1435, %v1370
      %v1437 = vpop.permute.xlu0 %1436
      %1440 = vset.pattern.permute.xlu0 0
      %1441 = vperm.xlu0 %1440, %v1371
      %v1442 = vpop.permute.xlu0 %1441
      %1445 = vset.pattern.permute.xlu0 0
      %1446 = vperm.xlu0 %1445, %v1372
      %v1447 = vpop.permute.xlu0 %1446
      %1450 = vset.pattern.permute.xlu0 0
      %1451 = vperm.xlu0 %1450, %v1373
      %v1452 = vpop.permute.xlu0 %1451
      %1455 = vset.pattern.permute.xlu0 0
      %1456 = vperm.xlu0 %1455, %v1374
      %v1457 = vpop.permute.xlu0 %1456
      %1460 = vset.pattern.permute.xlu0 0
      %1461 = vperm.xlu0 %1460, %v1375
      %v1462 = vpop.permute.xlu0 %1461
      %1465 = vset.pattern.permute.xlu0 0
      %1466 = vperm.xlu0 %1465, %v1376
      %v1467 = vpop.permute.xlu0 %1466
      %1470 = vset.pattern.permute.xlu0 0
      %1471 = vperm.xlu0 %1470, %v1377
      %v1472 = vpop.permute.xlu0 %1471
      %v1474 = vsel %vm1418, %v1437, 0.0
      %v1475 = vsel %vm1419, %v1437, 0.0
      %v1476 = vsel %vm1420, %v1442, 0.0
      %v1477 = vsel %vm1421, %v1442, 0.0
      %v1478 = vsel %vm1422, %v1447, 0.0
      %v1479 = vsel %vm1423, %v1447, 0.0
      %v1480 = vsel %vm1424, %v1452, 0.0
      %v1481 = vsel %vm1425, %v1452, 0.0
      %v1482 = vsel %vm1426, %v1457, 0.0
      %v1483 = vsel %vm1427, %v1457, 0.0
      %v1484 = vsel %vm1428, %v1462, 0.0
      %v1485 = vsel %vm1429, %v1462, 0.0
      %v1486 = vsel %vm1430, %v1467, 0.0
      %v1487 = vsel %vm1431, %v1467, 0.0
      %v1488 = vsel %vm1432, %v1472, 0.0
      %v1489 = vsel %vm1433, %v1472, 0.0
      %v1490 = vadd.f32 %v1314, %v1474
      %v1491 = vadd.f32 %v1315, %v1475
      %v1492 = vadd.f32 %v1316, %v1476
      %v1493 = vadd.f32 %v1317, %v1477
      %v1494 = vadd.f32 %v1318, %v1478
      %v1495 = vadd.f32 %v1319, %v1479
      %v1496 = vadd.f32 %v1320, %v1480
      %v1497 = vadd.f32 %v1321, %v1481
      %v1498 = vadd.f32 %v1322, %v1482
      %v1499 = vadd.f32 %v1323, %v1483
      %v1500 = vadd.f32 %v1324, %v1484
      %v1501 = vadd.f32 %v1325, %v1485
      %v1502 = vadd.f32 %v1326, %v1486
      %v1503 = vadd.f32 %v1327, %v1487
      %v1504 = vadd.f32 %v1328, %v1488
      %v1505 = vadd.f32 %v1329, %v1489
      %vm1506 = vmand %vm1346, %vm1122
      %vm1507 = vmand %vm1347, %vm1123
      %vm1508 = vmand %vm1348, %vm1124
      %vm1509 = vmand %vm1349, %vm1125
      %vm1510 = vmand %vm1350, %vm1126
      %vm1511 = vmand %vm1351, %vm1127
      %vm1512 = vmand %vm1352, %vm1128
      %vm1513 = vmand %vm1353, %vm1129
      %vm1514 = vmand %vm1506, %vm1170
      %vm1515 = vmand %vm1507, %vm1171
      %vm1516 = vmand %vm1508, %vm1172
      %vm1517 = vmand %vm1509, %vm1173
      %vm1518 = vmand %vm1510, %vm1174
      %vm1519 = vmand %vm1511, %vm1175
      %vm1520 = vmand %vm1512, %vm1176
      %vm1521 = vmand %vm1513, %vm1177
      %v1522 = vsel %vm1514, %v810, 0.0
      %v1523 = vsel %vm1515, %v811, 0.0
      %v1524 = vsel %vm1516, %v812, 0.0
      %v1525 = vsel %vm1517, %v813, 0.0
      %v1526 = vsel %vm1518, %v814, 0.0
      %v1527 = vsel %vm1519, %v815, 0.0
      %v1528 = vsel %vm1520, %v816, 0.0
      %v1529 = vsel %vm1521, %v817, 0.0
      %v1530 = vadd.s32 %v1378, %v1195
      %v1531 = vadd.s32 %v1379, %v1197
      %v1532 = vadd.s32 %v1380, %v1199
      %v1533 = vadd.s32 %v1381, %v1201
      %v1534 = vadd.s32 %v1382, %v1203
      %v1535 = vadd.s32 %v1383, %v1205
      %v1536 = vadd.s32 %v1384, %v1207
      %v1537 = vadd.s32 %v1385, %v1209
      %1538 = vset.pattern.permute.xlu0 0
      %1539 = vperm.xlu0 %1538, %v1530
      %v1540 = vpop.permute.xlu0 %1539
      %1541 = vset.pattern.permute.xlu0 0
      %1542 = vperm.xlu0 %1541, %v1531
      %v1543 = vpop.permute.xlu0 %1542
      %1544 = vset.pattern.permute.xlu0 0
      %1545 = vperm.xlu0 %1544, %v1532
      %v1546 = vpop.permute.xlu0 %1545
      %1547 = vset.pattern.permute.xlu0 0
      %1548 = vperm.xlu0 %1547, %v1533
      %v1549 = vpop.permute.xlu0 %1548
      %1550 = vset.pattern.permute.xlu0 0
      %1551 = vperm.xlu0 %1550, %v1534
      %v1552 = vpop.permute.xlu0 %1551
      %1553 = vset.pattern.permute.xlu0 0
      %1554 = vperm.xlu0 %1553, %v1535
      %v1555 = vpop.permute.xlu0 %1554
      %1556 = vset.pattern.permute.xlu0 0
      %1557 = vperm.xlu0 %1556, %v1536
      %v1558 = vpop.permute.xlu0 %1557
      %1559 = vset.pattern.permute.xlu0 0
      %1560 = vperm.xlu0 %1559, %v1537
      %v1561 = vpop.permute.xlu0 %1560
      %vm1562 = vcmp.eq.s32.totalorder %v592, %v1540
      %vm1563 = vcmp.eq.s32.totalorder %v593, %v1540
      %vm1564 = vcmp.eq.s32.totalorder %v592, %v1543
      %vm1565 = vcmp.eq.s32.totalorder %v593, %v1543
      %vm1566 = vcmp.eq.s32.totalorder %v592, %v1546
      %vm1567 = vcmp.eq.s32.totalorder %v593, %v1546
      %vm1568 = vcmp.eq.s32.totalorder %v592, %v1549
      %vm1569 = vcmp.eq.s32.totalorder %v593, %v1549
      %vm1570 = vcmp.eq.s32.totalorder %v592, %v1552
      %vm1571 = vcmp.eq.s32.totalorder %v593, %v1552
      %vm1572 = vcmp.eq.s32.totalorder %v592, %v1555
      %vm1573 = vcmp.eq.s32.totalorder %v593, %v1555
      %vm1574 = vcmp.eq.s32.totalorder %v592, %v1558
      %vm1575 = vcmp.eq.s32.totalorder %v593, %v1558
      %vm1576 = vcmp.eq.s32.totalorder %v592, %v1561
      %vm1577 = vcmp.eq.s32.totalorder %v593, %v1561
      %1579 = vset.pattern.permute.xlu0 0
      %1580 = vperm.xlu0 %1579, %v1522
      %v1581 = vpop.permute.xlu0 %1580
      %1584 = vset.pattern.permute.xlu0 0
      %1585 = vperm.xlu0 %1584, %v1523
      %v1586 = vpop.permute.xlu0 %1585
      %1589 = vset.pattern.permute.xlu0 0
      %1590 = vperm.xlu0 %1589, %v1524
      %v1591 = vpop.permute.xlu0 %1590
      %1594 = vset.pattern.permute.xlu0 0
      %1595 = vperm.xlu0 %1594, %v1525
      %v1596 = vpop.permute.xlu0 %1595
      %1599 = vset.pattern.permute.xlu0 0
      %1600 = vperm.xlu0 %1599, %v1526
      %v1601 = vpop.permute.xlu0 %1600
      %1604 = vset.pattern.permute.xlu0 0
      %1605 = vperm.xlu0 %1604, %v1527
      %v1606 = vpop.permute.xlu0 %1605
      %1609 = vset.pattern.permute.xlu0 0
      %1610 = vperm.xlu0 %1609, %v1528
      %v1611 = vpop.permute.xlu0 %1610
      %1614 = vset.pattern.permute.xlu0 0
      %1615 = vperm.xlu0 %1614, %v1529
      %v1616 = vpop.permute.xlu0 %1615
      %v1618 = vsel %vm1562, %v1581, 0.0
      %v1619 = vsel %vm1563, %v1581, 0.0
      %v1620 = vsel %vm1564, %v1586, 0.0
      %v1621 = vsel %vm1565, %v1586, 0.0
      %v1622 = vsel %vm1566, %v1591, 0.0
      %v1623 = vsel %vm1567, %v1591, 0.0
      %v1624 = vsel %vm1568, %v1596, 0.0
      %v1625 = vsel %vm1569, %v1596, 0.0
      %v1626 = vsel %vm1570, %v1601, 0.0
      %v1627 = vsel %vm1571, %v1601, 0.0
      %v1628 = vsel %vm1572, %v1606, 0.0
      %v1629 = vsel %vm1573, %v1606, 0.0
      %v1630 = vsel %vm1574, %v1611, 0.0
      %v1631 = vsel %vm1575, %v1611, 0.0
      %v1632 = vsel %vm1576, %v1616, 0.0
      %v1633 = vsel %vm1577, %v1616, 0.0
      %v1634 = vadd.f32 %v1490, %v1618
      %v1635 = vadd.f32 %v1491, %v1619
      %v1636 = vadd.f32 %v1492, %v1620
      %v1637 = vadd.f32 %v1493, %v1621
      %v1638 = vadd.f32 %v1494, %v1622
      %v1639 = vadd.f32 %v1495, %v1623
      %v1640 = vadd.f32 %v1496, %v1624
      %v1641 = vadd.f32 %v1497, %v1625
      %v1642 = vadd.f32 %v1498, %v1626
      %v1643 = vadd.f32 %v1499, %v1627
      %v1644 = vadd.f32 %v1500, %v1628
      %v1645 = vadd.f32 %v1501, %v1629
      %v1646 = vadd.f32 %v1502, %v1630
      %v1647 = vadd.f32 %v1503, %v1631
      %v1648 = vadd.f32 %v1504, %v1632
      %v1649 = vadd.f32 %v1505, %v1633
      %1650 = vmatprep.subr.mxu0 0.0
      %1651 = vmatpush1.msra.mxu0 %v339
      %1652 = vmatprep.subr.mxu0 0.0
      %1653 = vmatpush1.msra.mxu0 %v340
      %1654 = vmatprep.subr.mxu0 0.0
      %1655 = vmatpush1.msra.mxu0 %v341
      %1656 = vmatprep.subr.mxu0 0.0
      %1657 = vmatpush1.msra.mxu0 %v342
      %1658 = vmatprep.subr.mxu0 0.0
      %1659 = vmatpush1.msra.mxu0 %v343
      %1660 = vmatprep.subr.mxu0 0.0
      %1661 = vmatpush1.msra.mxu0 %v344
      %1662 = vmatprep.subr.mxu0 0.0
      %1663 = vmatpush1.msra.mxu0 %v345
      %1664 = vmatprep.subr.mxu0 0.0
      %1665 = vmatpush1.msra.mxu0 %v346
      %1666 = vmatprep.subr.mxu0 0.0
      %1667 = vmatpush1.msra.mxu0 %v347
      %1668 = vmatprep.subr.mxu0 0.0
      %1669 = vmatpush1.msra.mxu0 %v348
      %1670 = vmatprep.subr.mxu0 0.0
      %1671 = vmatpush1.msra.mxu0 %v349
      %1672 = vmatprep.subr.mxu0 0.0
      %1673 = vmatpush1.msra.mxu0 %v350
      %1674 = vmatprep.subr.mxu0 0.0
      %1675 = vmatpush1.msra.mxu0 %v351
      %1676 = vmatprep.subr.mxu0 0.0
      %1677 = vmatpush1.msra.mxu0 %v352
      %1678 = vmatprep.subr.mxu0 0.0
      %1679 = vmatpush1.msra.mxu0 %v353
      %1680 = vmatprep.subr.mxu0 0.0
      %1681 = vmatpush1.msra.mxu0 %v354
      %1682 = vmatprep.subr.mxu0 0.0
      %1683 = vmatpush1.msra.mxu0 %v355
      %1684 = vmatprep.subr.mxu0 0.0
      %1685 = vmatpush1.msra.mxu0 %v356
      %1686 = vmatprep.subr.mxu0 0.0
      %1687 = vmatpush1.msra.mxu0 %v357
      %1688 = vmatprep.subr.mxu0 0.0
      %1689 = vmatpush1.msra.mxu0 %v358
      %1690 = vmatprep.subr.mxu0 0.0
      %1691 = vmatpush1.msra.mxu0 %v359
      %1692 = vmatprep.subr.mxu0 0.0
      %1693 = vmatpush1.msra.mxu0 %v360
      %1694 = vmatprep.subr.mxu0 0.0
      %1695 = vmatpush1.msra.mxu0 %v361
      %1696 = vmatprep.subr.mxu0 0.0
      %1697 = vmatpush1.msra.mxu0 %v362
      %1698 = vmatprep.subr.mxu0 0.0
      %1699 = vmatpush1.msra.mxu0 %v363
      %1700 = vmatprep.subr.mxu0 0.0
      %1701 = vmatpush1.msra.mxu0 %v364
      %1702 = vmatprep.subr.mxu0 0.0
      %1703 = vmatpush1.msra.mxu0 %v365
      %1704 = vmatprep.subr.mxu0 0.0
      %1705 = vmatpush1.msra.mxu0 %v366
      %1706 = vmatprep.subr.mxu0 0.0
      %1707 = vmatpush1.msra.mxu0 %v367
      %1708 = vmatprep.subr.mxu0 0.0
      %1709 = vmatpush1.msra.mxu0 %v368
      %1710 = vmatprep.subr.mxu0 0.0
      %1711 = vmatpush1.msra.mxu0 %v369
      %1712 = vmatprep.subr.mxu0 0.0
      %1713 = vmatpush1.msra.mxu0 %v370
      %1714 = vmatprep.mubr.f32.mxu0 %v1635
      %1715 = vmatmul.mubr.f32.gmra.mrb[0].mxu0 %v1634
      %v1716 = vpop.f32.mrb[0].mxu0
      %v1717 = vadd.f32 0.0, %v1716
      %v1718 = vpop.f32.mrb[0].mxu0
      %1719 = vmatprep.mubr.f32.mxu0 %v1637
      %1720 = vmatmul.mubr.f32.gmra.mrb[0].mxu0 %v1636
      %v1721 = vpop.f32.mrb[0].mxu0
      %v1722 = vadd.f32 0.0, %v1721
      %v1723 = vpop.f32.mrb[0].mxu0
      %1724 = vmatprep.mubr.f32.mxu0 %v1639
      %1725 = vmatmul.mubr.f32.gmra.mrb[0].mxu0 %v1638
      %v1726 = vpop.f32.mrb[0].mxu0
      %v1727 = vadd.f32 0.0, %v1726
      %v1728 = vpop.f32.mrb[0].mxu0
      %1729 = vmatprep.mubr.f32.mxu0 %v1641
      %1730 = vmatmul.mubr.f32.gmra.mrb[0].mxu0 %v1640
      %v1731 = vpop.f32.mrb[0].mxu0
      %v1732 = vadd.f32 0.0, %v1731
      %v1733 = vpop.f32.mrb[0].mxu0
      %1734 = vmatprep.mubr.f32.mxu0 %v1643
      %1735 = vmatmul.mubr.f32.gmra.mrb[0].mxu0 %v1642
      %v1736 = vpop.f32.mrb[0].mxu0
      %v1737 = vadd.f32 0.0, %v1736
      %v1738 = vpop.f32.mrb[0].mxu0
      %1739 = vmatprep.mubr.f32.mxu0 %v1645
      %1740 = vmatmul.mubr.f32.gmra.mrb[0].mxu0 %v1644
      %v1741 = vpop.f32.mrb[0].mxu0
      %v1742 = vadd.f32 0.0, %v1741
      %v1743 = vpop.f32.mrb[0].mxu0
      %1744 = vmatprep.mubr.f32.mxu0 %v1647
      %1745 = vmatmul.mubr.f32.gmra.mrb[0].mxu0 %v1646
      %v1746 = vpop.f32.mrb[0].mxu0
      %v1747 = vadd.f32 0.0, %v1746
      %v1748 = vpop.f32.mrb[0].mxu0
      %1749 = vmatprep.mubr.f32.mxu0 %v1649
      %1750 = vmatmul.mubr.f32.gmra.mrb[0].mxu0 %v1648
      %v1751 = vpop.f32.mrb[0].mxu0
      %v1752 = vadd.f32 0.0, %v1751
      %v1753 = vpop.f32.mrb[0].mxu0
      %1754 = vdwg.mxu0
      %v1755 = vadd.f32 %v618, 1.0
      %v1756 = vadd.f32 %v619, 1.0
      %v1757 = vadd.f32 %v620, 1.0
      %v1758 = vadd.f32 %v621, 1.0
      %v1759 = vadd.f32 %v622, 1.0
      %v1760 = vadd.f32 %v623, 1.0
      %v1761 = vadd.f32 %v624, 1.0
      %v1762 = vadd.f32 %v625, 1.0
      %v1763 = vadd.f32 %v1755, %v486
      %v1764 = vadd.f32 %v1756, %v491
      %v1765 = vadd.f32 %v1757, %v496
      %v1766 = vadd.f32 %v1758, %v501
      %v1767 = vadd.f32 %v1759, %v506
      %v1768 = vadd.f32 %v1760, %v511
      %v1769 = vadd.f32 %v1761, %v516
      %v1770 = vadd.f32 %v1762, %v521
      %v1771 = vfloor.f32 %v1763
      %v1772 = vfloor.f32 %v1764
      %v1773 = vfloor.f32 %v1765
      %v1774 = vfloor.f32 %v1766
      %v1775 = vfloor.f32 %v1767
      %v1776 = vfloor.f32 %v1768
      %v1777 = vfloor.f32 %v1769
      %v1778 = vfloor.f32 %v1770
      %v1779 = vsub.f32 %v1763, %v1771
      %v1780 = vsub.f32 %v1764, %v1772
      %v1781 = vsub.f32 %v1765, %v1773
      %v1782 = vsub.f32 %v1766, %v1774
      %v1783 = vsub.f32 %v1767, %v1775
      %v1784 = vsub.f32 %v1768, %v1776
      %v1785 = vsub.f32 %v1769, %v1777
      %v1786 = vsub.f32 %v1770, %v1778
      %v1787 = vcvt.f32.s32.to.zero.pseudo %v1771
      %v1788 = vcvt.f32.s32.to.zero.pseudo %v1772
      %v1789 = vcvt.f32.s32.to.zero.pseudo %v1773
      %v1790 = vcvt.f32.s32.to.zero.pseudo %v1774
      %v1791 = vcvt.f32.s32.to.zero.pseudo %v1775
      %v1792 = vcvt.f32.s32.to.zero.pseudo %v1776
      %v1793 = vcvt.f32.s32.to.zero.pseudo %v1777
      %v1794 = vcvt.f32.s32.to.zero.pseudo %v1778
      %v1795 = vsub.f32 1.0, %v1779
      %v1796 = vsub.f32 1.0, %v1780
      %v1797 = vsub.f32 1.0, %v1781
      %v1798 = vsub.f32 1.0, %v1782
      %v1799 = vsub.f32 1.0, %v1783
      %v1800 = vsub.f32 1.0, %v1784
      %v1801 = vsub.f32 1.0, %v1785
      %v1802 = vsub.f32 1.0, %v1786
      %1811 = vrot.lane.b32.xlu0 %v1795, 127
      %v1812 = vpop.permute.xlu0 %1811
      %1813 = vrot.lane.b32.xlu0 %v1796, 127
      %v1814 = vpop.permute.xlu0 %1813
      %1815 = vrot.lane.b32.xlu0 %v1797, 127
      %v1816 = vpop.permute.xlu0 %1815
      %1817 = vrot.lane.b32.xlu0 %v1798, 127
      %v1818 = vpop.permute.xlu0 %1817
      %1819 = vrot.lane.b32.xlu0 %v1799, 127
      %v1820 = vpop.permute.xlu0 %1819
      %1821 = vrot.lane.b32.xlu0 %v1800, 127
      %v1822 = vpop.permute.xlu0 %1821
      %1823 = vrot.lane.b32.xlu0 %v1801, 127
      %v1824 = vpop.permute.xlu0 %1823
      %1825 = vrot.lane.b32.xlu0 %v1802, 127
      %v1826 = vpop.permute.xlu0 %1825
      %v1835 = vmul.f32 %v690, %v1812
      %v1836 = vmul.f32 %v691, %v1814
      %v1837 = vmul.f32 %v692, %v1816
      %v1838 = vmul.f32 %v693, %v1818
      %v1839 = vmul.f32 %v694, %v1820
      %v1840 = vmul.f32 %v695, %v1822
      %v1841 = vmul.f32 %v696, %v1824
      %v1842 = vmul.f32 %v697, %v1826
      %v1843 = vadd.s32 %v1787, 1
      %v1844 = vadd.s32 %v1788, 1
      %v1845 = vadd.s32 %v1789, 1
      %v1846 = vadd.s32 %v1790, 1
      %v1847 = vadd.s32 %v1791, 1
      %v1848 = vadd.s32 %v1792, 1
      %v1849 = vadd.s32 %v1793, 1
      %v1850 = vadd.s32 %v1794, 1
      %1859 = vrot.lane.b32.xlu0 %v1779, 127
      %v1860 = vpop.permute.xlu0 %1859
      %1861 = vrot.lane.b32.xlu0 %v1780, 127
      %v1862 = vpop.permute.xlu0 %1861
      %1863 = vrot.lane.b32.xlu0 %v1781, 127
      %v1864 = vpop.permute.xlu0 %1863
      %1865 = vrot.lane.b32.xlu0 %v1782, 127
      %v1866 = vpop.permute.xlu0 %1865
      %1867 = vrot.lane.b32.xlu0 %v1783, 127
      %v1868 = vpop.permute.xlu0 %1867
      %1869 = vrot.lane.b32.xlu0 %v1784, 127
      %v1870 = vpop.permute.xlu0 %1869
      %1871 = vrot.lane.b32.xlu0 %v1785, 127
      %v1872 = vpop.permute.xlu0 %1871
      %1873 = vrot.lane.b32.xlu0 %v1786, 127
      %v1874 = vpop.permute.xlu0 %1873
      %v1883 = vmul.f32 %v690, %v1860
      %v1884 = vmul.f32 %v691, %v1862
      %v1885 = vmul.f32 %v692, %v1864
      %v1886 = vmul.f32 %v693, %v1866
      %v1887 = vmul.f32 %v694, %v1868
      %v1888 = vmul.f32 %v695, %v1870
      %v1889 = vmul.f32 %v696, %v1872
      %v1890 = vmul.f32 %v697, %v1874
      %v1891 = vmul.f32 %v658, %v1812
      %v1892 = vmul.f32 %v659, %v1814
      %v1893 = vmul.f32 %v660, %v1816
      %v1894 = vmul.f32 %v661, %v1818
      %v1895 = vmul.f32 %v662, %v1820
      %v1896 = vmul.f32 %v663, %v1822
      %v1897 = vmul.f32 %v664, %v1824
      %v1898 = vmul.f32 %v665, %v1826
      %v1899 = vmul.f32 %v658, %v1860
      %v1900 = vmul.f32 %v659, %v1862
      %v1901 = vmul.f32 %v660, %v1864
      %v1902 = vmul.f32 %v661, %v1866
      %v1903 = vmul.f32 %v662, %v1868
      %v1904 = vmul.f32 %v663, %v1870
      %v1905 = vmul.f32 %v664, %v1872
      %v1906 = vmul.f32 %v665, %v1874
      %vm1907 = vcmp.ge.s32.totalorder %v1787, 0
      %vm1908 = vcmp.ge.s32.totalorder %v1788, 0
      %vm1909 = vcmp.ge.s32.totalorder %v1789, 0
      %vm1910 = vcmp.ge.s32.totalorder %v1790, 0
      %vm1911 = vcmp.ge.s32.totalorder %v1791, 0
      %vm1912 = vcmp.ge.s32.totalorder %v1792, 0
      %vm1913 = vcmp.ge.s32.totalorder %v1793, 0
      %vm1914 = vcmp.ge.s32.totalorder %v1794, 0
      %v1915 = vsel %vm1907, 1, 0
      %v1916 = vsel %vm1908, 1, 0
      %v1917 = vsel %vm1909, 1, 0
      %v1918 = vsel %vm1910, 1, 0
      %v1919 = vsel %vm1911, 1, 0
      %v1920 = vsel %vm1912, 1, 0
      %v1921 = vsel %vm1913, 1, 0
      %v1922 = vsel %vm1914, 1, 0
      %1923 = vrot.lane.b32.xlu0 %v1915, 127
      %v1924 = vpop.permute.xlu0 %1923
      %1925 = vrot.lane.b32.xlu0 %v1916, 127
      %v1926 = vpop.permute.xlu0 %1925
      %1927 = vrot.lane.b32.xlu0 %v1917, 127
      %v1928 = vpop.permute.xlu0 %1927
      %1929 = vrot.lane.b32.xlu0 %v1918, 127
      %v1930 = vpop.permute.xlu0 %1929
      %1931 = vrot.lane.b32.xlu0 %v1919, 127
      %v1932 = vpop.permute.xlu0 %1931
      %1933 = vrot.lane.b32.xlu0 %v1920, 127
      %v1934 = vpop.permute.xlu0 %1933
      %1935 = vrot.lane.b32.xlu0 %v1921, 127
      %v1936 = vpop.permute.xlu0 %1935
      %1937 = vrot.lane.b32.xlu0 %v1922, 127
      %v1938 = vpop.permute.xlu0 %1937
      %vm1939 = vcmp.ne.s32.totalorder %v1924, 0
      %vm1940 = vcmp.ne.s32.totalorder %v1926, 0
      %vm1941 = vcmp.ne.s32.totalorder %v1928, 0
      %vm1942 = vcmp.ne.s32.totalorder %v1930, 0
      %vm1943 = vcmp.ne.s32.totalorder %v1932, 0
      %vm1944 = vcmp.ne.s32.totalorder %v1934, 0
      %vm1945 = vcmp.ne.s32.totalorder %v1936, 0
      %vm1946 = vcmp.ne.s32.totalorder %v1938, 0
      %vm1947 = vmand %vm834, %vm1939
      %vm1948 = vmand %vm835, %vm1940
      %vm1949 = vmand %vm836, %vm1941
      %vm1950 = vmand %vm837, %vm1942
      %vm1951 = vmand %vm838, %vm1943
      %vm1952 = vmand %vm839, %vm1944
      %vm1953 = vmand %vm840, %vm1945
      %vm1954 = vmand %vm841, %vm1946
      %vm1955 = vcmp.lt.s32.totalorder %v1787, 16
      %vm1956 = vcmp.lt.s32.totalorder %v1788, 16
      %vm1957 = vcmp.lt.s32.totalorder %v1789, 16
      %vm1958 = vcmp.lt.s32.totalorder %v1790, 16
      %vm1959 = vcmp.lt.s32.totalorder %v1791, 16
      %vm1960 = vcmp.lt.s32.totalorder %v1792, 16
      %vm1961 = vcmp.lt.s32.totalorder %v1793, 16
      %vm1962 = vcmp.lt.s32.totalorder %v1794, 16
      %v1963 = vsel %vm1955, 1, 0
      %v1964 = vsel %vm1956, 1, 0
      %v1965 = vsel %vm1957, 1, 0
      %v1966 = vsel %vm1958, 1, 0
      %v1967 = vsel %vm1959, 1, 0
      %v1968 = vsel %vm1960, 1, 0
      %v1969 = vsel %vm1961, 1, 0
      %v1970 = vsel %vm1962, 1, 0
      %1971 = vrot.lane.b32.xlu0 %v1963, 127
      %v1972 = vpop.permute.xlu0 %1971
      %1973 = vrot.lane.b32.xlu0 %v1964, 127
      %v1974 = vpop.permute.xlu0 %1973
      %1975 = vrot.lane.b32.xlu0 %v1965, 127
      %v1976 = vpop.permute.xlu0 %1975
      %1977 = vrot.lane.b32.xlu0 %v1966, 127
      %v1978 = vpop.permute.xlu0 %1977
      %1979 = vrot.lane.b32.xlu0 %v1967, 127
      %v1980 = vpop.permute.xlu0 %1979
      %1981 = vrot.lane.b32.xlu0 %v1968, 127
      %v1982 = vpop.permute.xlu0 %1981
      %1983 = vrot.lane.b32.xlu0 %v1969, 127
      %v1984 = vpop.permute.xlu0 %1983
      %1985 = vrot.lane.b32.xlu0 %v1970, 127
      %v1986 = vpop.permute.xlu0 %1985
      %vm1987 = vcmp.ne.s32.totalorder %v1972, 0
      %vm1988 = vcmp.ne.s32.totalorder %v1974, 0
      %vm1989 = vcmp.ne.s32.totalorder %v1976, 0
      %vm1990 = vcmp.ne.s32.totalorder %v1978, 0
      %vm1991 = vcmp.ne.s32.totalorder %v1980, 0
      %vm1992 = vcmp.ne.s32.totalorder %v1982, 0
      %vm1993 = vcmp.ne.s32.totalorder %v1984, 0
      %vm1994 = vcmp.ne.s32.totalorder %v1986, 0
      %vm1995 = vmand %vm1947, %vm1987
      %vm1996 = vmand %vm1948, %vm1988
      %vm1997 = vmand %vm1949, %vm1989
      %vm1998 = vmand %vm1950, %vm1990
      %vm1999 = vmand %vm1951, %vm1991
      %vm2000 = vmand %vm1952, %vm1992
      %vm2001 = vmand %vm1953, %vm1993
      %vm2002 = vmand %vm1954, %vm1994
      %v2003 = vsel %vm1995, %v1835, 0.0
      %v2004 = vsel %vm1996, %v1836, 0.0
      %v2005 = vsel %vm1997, %v1837, 0.0
      %v2006 = vsel %vm1998, %v1838, 0.0
      %v2007 = vsel %vm1999, %v1839, 0.0
      %v2008 = vsel %vm2000, %v1840, 0.0
      %v2009 = vsel %vm2001, %v1841, 0.0
      %v2010 = vsel %vm2002, %v1842, 0.0
      %2011 = vrot.lane.b32.xlu0 %v1787, 127
      %v2012 = vpop.permute.xlu0 %2011
      %2013 = vrot.lane.b32.xlu0 %v1788, 127
      %v2014 = vpop.permute.xlu0 %2013
      %2015 = vrot.lane.b32.xlu0 %v1789, 127
      %v2016 = vpop.permute.xlu0 %2015
      %2017 = vrot.lane.b32.xlu0 %v1790, 127
      %v2018 = vpop.permute.xlu0 %2017
      %2019 = vrot.lane.b32.xlu0 %v1791, 127
      %v2020 = vpop.permute.xlu0 %2019
      %2021 = vrot.lane.b32.xlu0 %v1792, 127
      %v2022 = vpop.permute.xlu0 %2021
      %2023 = vrot.lane.b32.xlu0 %v1793, 127
      %v2024 = vpop.permute.xlu0 %2023
      %2025 = vrot.lane.b32.xlu0 %v1794, 127
      %v2026 = vpop.permute.xlu0 %2025
      %v2027 = vadd.s32 %v946, %v2012
      %v2028 = vadd.s32 %v947, %v2014
      %v2029 = vadd.s32 %v948, %v2016
      %v2030 = vadd.s32 %v949, %v2018
      %v2031 = vadd.s32 %v950, %v2020
      %v2032 = vadd.s32 %v951, %v2022
      %v2033 = vadd.s32 %v952, %v2024
      %v2034 = vadd.s32 %v953, %v2026
      %2035 = vset.pattern.permute.xlu0 2
      %2036 = vperm.xlu0 %2035, %v2027
      %v2037 = vpop.permute.xlu0 %2036
      %2038 = vset.pattern.permute.xlu0 2
      %2039 = vperm.xlu0 %2038, %v2028
      %v2040 = vpop.permute.xlu0 %2039
      %2041 = vset.pattern.permute.xlu0 2
      %2042 = vperm.xlu0 %2041, %v2029
      %v2043 = vpop.permute.xlu0 %2042
      %2044 = vset.pattern.permute.xlu0 2
      %2045 = vperm.xlu0 %2044, %v2030
      %v2046 = vpop.permute.xlu0 %2045
      %2047 = vset.pattern.permute.xlu0 2
      %2048 = vperm.xlu0 %2047, %v2031
      %v2049 = vpop.permute.xlu0 %2048
      %2050 = vset.pattern.permute.xlu0 2
      %2051 = vperm.xlu0 %2050, %v2032
      %v2052 = vpop.permute.xlu0 %2051
      %2053 = vset.pattern.permute.xlu0 2
      %2054 = vperm.xlu0 %2053, %v2033
      %v2055 = vpop.permute.xlu0 %2054
      %2056 = vset.pattern.permute.xlu0 2
      %2057 = vperm.xlu0 %2056, %v2034
      %v2058 = vpop.permute.xlu0 %2057
      %vm2059 = vcmp.eq.s32.totalorder %v592, %v2037
      %vm2060 = vcmp.eq.s32.totalorder %v593, %v2037
      %vm2061 = vcmp.eq.s32.totalorder %v592, %v2040
      %vm2062 = vcmp.eq.s32.totalorder %v593, %v2040
      %vm2063 = vcmp.eq.s32.totalorder %v592, %v2043
      %vm2064 = vcmp.eq.s32.totalorder %v593, %v2043
      %vm2065 = vcmp.eq.s32.totalorder %v592, %v2046
      %vm2066 = vcmp.eq.s32.totalorder %v593, %v2046
      %vm2067 = vcmp.eq.s32.totalorder %v592, %v2049
      %vm2068 = vcmp.eq.s32.totalorder %v593, %v2049
      %vm2069 = vcmp.eq.s32.totalorder %v592, %v2052
      %vm2070 = vcmp.eq.s32.totalorder %v593, %v2052
      %vm2071 = vcmp.eq.s32.totalorder %v592, %v2055
      %vm2072 = vcmp.eq.s32.totalorder %v593, %v2055
      %vm2073 = vcmp.eq.s32.totalorder %v592, %v2058
      %vm2074 = vcmp.eq.s32.totalorder %v593, %v2058
      %2076 = vset.pattern.permute.xlu0 2
      %2077 = vperm.xlu0 %2076, %v2003
      %v2078 = vpop.permute.xlu0 %2077
      %2081 = vset.pattern.permute.xlu0 2
      %2082 = vperm.xlu0 %2081, %v2004
      %v2083 = vpop.permute.xlu0 %2082
      %2086 = vset.pattern.permute.xlu0 2
      %2087 = vperm.xlu0 %2086, %v2005
      %v2088 = vpop.permute.xlu0 %2087
      %2091 = vset.pattern.permute.xlu0 2
      %2092 = vperm.xlu0 %2091, %v2006
      %v2093 = vpop.permute.xlu0 %2092
      %2096 = vset.pattern.permute.xlu0 2
      %2097 = vperm.xlu0 %2096, %v2007
      %v2098 = vpop.permute.xlu0 %2097
      %2101 = vset.pattern.permute.xlu0 2
      %2102 = vperm.xlu0 %2101, %v2008
      %v2103 = vpop.permute.xlu0 %2102
      %2106 = vset.pattern.permute.xlu0 2
      %2107 = vperm.xlu0 %2106, %v2009
      %v2108 = vpop.permute.xlu0 %2107
      %2111 = vset.pattern.permute.xlu0 2
      %2112 = vperm.xlu0 %2111, %v2010
      %v2113 = vpop.permute.xlu0 %2112
      %v2115 = vsel %vm2059, %v2078, 0.0
      %v2116 = vsel %vm2060, %v2078, 0.0
      %v2117 = vsel %vm2061, %v2083, 0.0
      %v2118 = vsel %vm2062, %v2083, 0.0
      %v2119 = vsel %vm2063, %v2088, 0.0
      %v2120 = vsel %vm2064, %v2088, 0.0
      %v2121 = vsel %vm2065, %v2093, 0.0
      %v2122 = vsel %vm2066, %v2093, 0.0
      %v2123 = vsel %vm2067, %v2098, 0.0
      %v2124 = vsel %vm2068, %v2098, 0.0
      %v2125 = vsel %vm2069, %v2103, 0.0
      %v2126 = vsel %vm2070, %v2103, 0.0
      %v2127 = vsel %vm2071, %v2108, 0.0
      %v2128 = vsel %vm2072, %v2108, 0.0
      %v2129 = vsel %vm2073, %v2113, 0.0
      %v2130 = vsel %vm2074, %v2113, 0.0
      %v2131 = vadd.f32 %v2115, 0.0
      %v2132 = vadd.f32 %v2116, 0.0
      %v2133 = vadd.f32 %v2117, 0.0
      %v2134 = vadd.f32 %v2118, 0.0
      %v2135 = vadd.f32 %v2119, 0.0
      %v2136 = vadd.f32 %v2120, 0.0
      %v2137 = vadd.f32 %v2121, 0.0
      %v2138 = vadd.f32 %v2122, 0.0
      %v2139 = vadd.f32 %v2123, 0.0
      %v2140 = vadd.f32 %v2124, 0.0
      %v2141 = vadd.f32 %v2125, 0.0
      %v2142 = vadd.f32 %v2126, 0.0
      %v2143 = vadd.f32 %v2127, 0.0
      %v2144 = vadd.f32 %v2128, 0.0
      %v2145 = vadd.f32 %v2129, 0.0
      %v2146 = vadd.f32 %v2130, 0.0
      %vm2147 = vcmp.ge.s32.totalorder %v1843, 0
      %vm2148 = vcmp.ge.s32.totalorder %v1844, 0
      %vm2149 = vcmp.ge.s32.totalorder %v1845, 0
      %vm2150 = vcmp.ge.s32.totalorder %v1846, 0
      %vm2151 = vcmp.ge.s32.totalorder %v1847, 0
      %vm2152 = vcmp.ge.s32.totalorder %v1848, 0
      %vm2153 = vcmp.ge.s32.totalorder %v1849, 0
      %vm2154 = vcmp.ge.s32.totalorder %v1850, 0
      %v2155 = vsel %vm2147, 1, 0
      %v2156 = vsel %vm2148, 1, 0
      %v2157 = vsel %vm2149, 1, 0
      %v2158 = vsel %vm2150, 1, 0
      %v2159 = vsel %vm2151, 1, 0
      %v2160 = vsel %vm2152, 1, 0
      %v2161 = vsel %vm2153, 1, 0
      %v2162 = vsel %vm2154, 1, 0
      %2163 = vrot.lane.b32.xlu0 %v2155, 127
      %v2164 = vpop.permute.xlu0 %2163
      %2165 = vrot.lane.b32.xlu0 %v2156, 127
      %v2166 = vpop.permute.xlu0 %2165
      %2167 = vrot.lane.b32.xlu0 %v2157, 127
      %v2168 = vpop.permute.xlu0 %2167
      %2169 = vrot.lane.b32.xlu0 %v2158, 127
      %v2170 = vpop.permute.xlu0 %2169
      %2171 = vrot.lane.b32.xlu0 %v2159, 127
      %v2172 = vpop.permute.xlu0 %2171
      %2173 = vrot.lane.b32.xlu0 %v2160, 127
      %v2174 = vpop.permute.xlu0 %2173
      %2175 = vrot.lane.b32.xlu0 %v2161, 127
      %v2176 = vpop.permute.xlu0 %2175
      %2177 = vrot.lane.b32.xlu0 %v2162, 127
      %v2178 = vpop.permute.xlu0 %2177
      %vm2179 = vcmp.ne.s32.totalorder %v2164, 0
      %vm2180 = vcmp.ne.s32.totalorder %v2166, 0
      %vm2181 = vcmp.ne.s32.totalorder %v2168, 0
      %vm2182 = vcmp.ne.s32.totalorder %v2170, 0
      %vm2183 = vcmp.ne.s32.totalorder %v2172, 0
      %vm2184 = vcmp.ne.s32.totalorder %v2174, 0
      %vm2185 = vcmp.ne.s32.totalorder %v2176, 0
      %vm2186 = vcmp.ne.s32.totalorder %v2178, 0
      %vm2187 = vmand %vm834, %vm2179
      %vm2188 = vmand %vm835, %vm2180
      %vm2189 = vmand %vm836, %vm2181
      %vm2190 = vmand %vm837, %vm2182
      %vm2191 = vmand %vm838, %vm2183
      %vm2192 = vmand %vm839, %vm2184
      %vm2193 = vmand %vm840, %vm2185
      %vm2194 = vmand %vm841, %vm2186
      %vm2195 = vcmp.lt.s32.totalorder %v1843, 16
      %vm2196 = vcmp.lt.s32.totalorder %v1844, 16
      %vm2197 = vcmp.lt.s32.totalorder %v1845, 16
      %vm2198 = vcmp.lt.s32.totalorder %v1846, 16
      %vm2199 = vcmp.lt.s32.totalorder %v1847, 16
      %vm2200 = vcmp.lt.s32.totalorder %v1848, 16
      %vm2201 = vcmp.lt.s32.totalorder %v1849, 16
      %vm2202 = vcmp.lt.s32.totalorder %v1850, 16
      %v2203 = vsel %vm2195, 1, 0
      %v2204 = vsel %vm2196, 1, 0
      %v2205 = vsel %vm2197, 1, 0
      %v2206 = vsel %vm2198, 1, 0
      %v2207 = vsel %vm2199, 1, 0
      %v2208 = vsel %vm2200, 1, 0
      %v2209 = vsel %vm2201, 1, 0
      %v2210 = vsel %vm2202, 1, 0
      %2211 = vrot.lane.b32.xlu0 %v2203, 127
      %v2212 = vpop.permute.xlu0 %2211
      %2213 = vrot.lane.b32.xlu0 %v2204, 127
      %v2214 = vpop.permute.xlu0 %2213
      %2215 = vrot.lane.b32.xlu0 %v2205, 127
      %v2216 = vpop.permute.xlu0 %2215
      %2217 = vrot.lane.b32.xlu0 %v2206, 127
      %v2218 = vpop.permute.xlu0 %2217
      %2219 = vrot.lane.b32.xlu0 %v2207, 127
      %v2220 = vpop.permute.xlu0 %2219
      %2221 = vrot.lane.b32.xlu0 %v2208, 127
      %v2222 = vpop.permute.xlu0 %2221
      %2223 = vrot.lane.b32.xlu0 %v2209, 127
      %v2224 = vpop.permute.xlu0 %2223
      %2225 = vrot.lane.b32.xlu0 %v2210, 127
      %v2226 = vpop.permute.xlu0 %2225
      %vm2227 = vcmp.ne.s32.totalorder %v2212, 0
      %vm2228 = vcmp.ne.s32.totalorder %v2214, 0
      %vm2229 = vcmp.ne.s32.totalorder %v2216, 0
      %vm2230 = vcmp.ne.s32.totalorder %v2218, 0
      %vm2231 = vcmp.ne.s32.totalorder %v2220, 0
      %vm2232 = vcmp.ne.s32.totalorder %v2222, 0
      %vm2233 = vcmp.ne.s32.totalorder %v2224, 0
      %vm2234 = vcmp.ne.s32.totalorder %v2226, 0
      %vm2235 = vmand %vm2187, %vm2227
      %vm2236 = vmand %vm2188, %vm2228
      %vm2237 = vmand %vm2189, %vm2229
      %vm2238 = vmand %vm2190, %vm2230
      %vm2239 = vmand %vm2191, %vm2231
      %vm2240 = vmand %vm2192, %vm2232
      %vm2241 = vmand %vm2193, %vm2233
      %vm2242 = vmand %vm2194, %vm2234
      %v2243 = vsel %vm2235, %v1883, 0.0
      %v2244 = vsel %vm2236, %v1884, 0.0
      %v2245 = vsel %vm2237, %v1885, 0.0
      %v2246 = vsel %vm2238, %v1886, 0.0
      %v2247 = vsel %vm2239, %v1887, 0.0
      %v2248 = vsel %vm2240, %v1888, 0.0
      %v2249 = vsel %vm2241, %v1889, 0.0
      %v2250 = vsel %vm2242, %v1890, 0.0
      %2251 = vrot.lane.b32.xlu0 %v1843, 127
      %v2252 = vpop.permute.xlu0 %2251
      %2253 = vrot.lane.b32.xlu0 %v1844, 127
      %v2254 = vpop.permute.xlu0 %2253
      %2255 = vrot.lane.b32.xlu0 %v1845, 127
      %v2256 = vpop.permute.xlu0 %2255
      %2257 = vrot.lane.b32.xlu0 %v1846, 127
      %v2258 = vpop.permute.xlu0 %2257
      %2259 = vrot.lane.b32.xlu0 %v1847, 127
      %v2260 = vpop.permute.xlu0 %2259
      %2261 = vrot.lane.b32.xlu0 %v1848, 127
      %v2262 = vpop.permute.xlu0 %2261
      %2263 = vrot.lane.b32.xlu0 %v1849, 127
      %v2264 = vpop.permute.xlu0 %2263
      %2265 = vrot.lane.b32.xlu0 %v1850, 127
      %v2266 = vpop.permute.xlu0 %2265
      %v2267 = vadd.s32 %v946, %v2252
      %v2268 = vadd.s32 %v947, %v2254
      %v2269 = vadd.s32 %v948, %v2256
      %v2270 = vadd.s32 %v949, %v2258
      %v2271 = vadd.s32 %v950, %v2260
      %v2272 = vadd.s32 %v951, %v2262
      %v2273 = vadd.s32 %v952, %v2264
      %v2274 = vadd.s32 %v953, %v2266
      %2275 = vset.pattern.permute.xlu0 2
      %2276 = vperm.xlu0 %2275, %v2267
      %v2277 = vpop.permute.xlu0 %2276
      %2278 = vset.pattern.permute.xlu0 2
      %2279 = vperm.xlu0 %2278, %v2268
      %v2280 = vpop.permute.xlu0 %2279
      %2281 = vset.pattern.permute.xlu0 2
      %2282 = vperm.xlu0 %2281, %v2269
      %v2283 = vpop.permute.xlu0 %2282
      %2284 = vset.pattern.permute.xlu0 2
      %2285 = vperm.xlu0 %2284, %v2270
      %v2286 = vpop.permute.xlu0 %2285
      %2287 = vset.pattern.permute.xlu0 2
      %2288 = vperm.xlu0 %2287, %v2271
      %v2289 = vpop.permute.xlu0 %2288
      %2290 = vset.pattern.permute.xlu0 2
      %2291 = vperm.xlu0 %2290, %v2272
      %v2292 = vpop.permute.xlu0 %2291
      %2293 = vset.pattern.permute.xlu0 2
      %2294 = vperm.xlu0 %2293, %v2273
      %v2295 = vpop.permute.xlu0 %2294
      %2296 = vset.pattern.permute.xlu0 2
      %2297 = vperm.xlu0 %2296, %v2274
      %v2298 = vpop.permute.xlu0 %2297
      %vm2299 = vcmp.eq.s32.totalorder %v592, %v2277
      %vm2300 = vcmp.eq.s32.totalorder %v593, %v2277
      %vm2301 = vcmp.eq.s32.totalorder %v592, %v2280
      %vm2302 = vcmp.eq.s32.totalorder %v593, %v2280
      %vm2303 = vcmp.eq.s32.totalorder %v592, %v2283
      %vm2304 = vcmp.eq.s32.totalorder %v593, %v2283
      %vm2305 = vcmp.eq.s32.totalorder %v592, %v2286
      %vm2306 = vcmp.eq.s32.totalorder %v593, %v2286
      %vm2307 = vcmp.eq.s32.totalorder %v592, %v2289
      %vm2308 = vcmp.eq.s32.totalorder %v593, %v2289
      %vm2309 = vcmp.eq.s32.totalorder %v592, %v2292
      %vm2310 = vcmp.eq.s32.totalorder %v593, %v2292
      %vm2311 = vcmp.eq.s32.totalorder %v592, %v2295
      %vm2312 = vcmp.eq.s32.totalorder %v593, %v2295
      %vm2313 = vcmp.eq.s32.totalorder %v592, %v2298
      %vm2314 = vcmp.eq.s32.totalorder %v593, %v2298
      %2316 = vset.pattern.permute.xlu0 2
      %2317 = vperm.xlu0 %2316, %v2243
      %v2318 = vpop.permute.xlu0 %2317
      %2321 = vset.pattern.permute.xlu0 2
      %2322 = vperm.xlu0 %2321, %v2244
      %v2323 = vpop.permute.xlu0 %2322
      %2326 = vset.pattern.permute.xlu0 2
      %2327 = vperm.xlu0 %2326, %v2245
      %v2328 = vpop.permute.xlu0 %2327
      %2331 = vset.pattern.permute.xlu0 2
      %2332 = vperm.xlu0 %2331, %v2246
      %v2333 = vpop.permute.xlu0 %2332
      %2336 = vset.pattern.permute.xlu0 2
      %2337 = vperm.xlu0 %2336, %v2247
      %v2338 = vpop.permute.xlu0 %2337
      %2341 = vset.pattern.permute.xlu0 2
      %2342 = vperm.xlu0 %2341, %v2248
      %v2343 = vpop.permute.xlu0 %2342
      %2346 = vset.pattern.permute.xlu0 2
      %2347 = vperm.xlu0 %2346, %v2249
      %v2348 = vpop.permute.xlu0 %2347
      %2351 = vset.pattern.permute.xlu0 2
      %2352 = vperm.xlu0 %2351, %v2250
      %v2353 = vpop.permute.xlu0 %2352
      %v2355 = vsel %vm2299, %v2318, 0.0
      %v2356 = vsel %vm2300, %v2318, 0.0
      %v2357 = vsel %vm2301, %v2323, 0.0
      %v2358 = vsel %vm2302, %v2323, 0.0
      %v2359 = vsel %vm2303, %v2328, 0.0
      %v2360 = vsel %vm2304, %v2328, 0.0
      %v2361 = vsel %vm2305, %v2333, 0.0
      %v2362 = vsel %vm2306, %v2333, 0.0
      %v2363 = vsel %vm2307, %v2338, 0.0
      %v2364 = vsel %vm2308, %v2338, 0.0
      %v2365 = vsel %vm2309, %v2343, 0.0
      %v2366 = vsel %vm2310, %v2343, 0.0
      %v2367 = vsel %vm2311, %v2348, 0.0
      %v2368 = vsel %vm2312, %v2348, 0.0
      %v2369 = vsel %vm2313, %v2353, 0.0
      %v2370 = vsel %vm2314, %v2353, 0.0
      %v2371 = vadd.f32 %v2131, %v2355
      %v2372 = vadd.f32 %v2132, %v2356
      %v2373 = vadd.f32 %v2133, %v2357
      %v2374 = vadd.f32 %v2134, %v2358
      %v2375 = vadd.f32 %v2135, %v2359
      %v2376 = vadd.f32 %v2136, %v2360
      %v2377 = vadd.f32 %v2137, %v2361
      %v2378 = vadd.f32 %v2138, %v2362
      %v2379 = vadd.f32 %v2139, %v2363
      %v2380 = vadd.f32 %v2140, %v2364
      %v2381 = vadd.f32 %v2141, %v2365
      %v2382 = vadd.f32 %v2142, %v2366
      %v2383 = vadd.f32 %v2143, %v2367
      %v2384 = vadd.f32 %v2144, %v2368
      %v2385 = vadd.f32 %v2145, %v2369
      %v2386 = vadd.f32 %v2146, %v2370
      %vm2387 = vmand %vm1346, %vm1939
      %vm2388 = vmand %vm1347, %vm1940
      %vm2389 = vmand %vm1348, %vm1941
      %vm2390 = vmand %vm1349, %vm1942
      %vm2391 = vmand %vm1350, %vm1943
      %vm2392 = vmand %vm1351, %vm1944
      %vm2393 = vmand %vm1352, %vm1945
      %vm2394 = vmand %vm1353, %vm1946
      %vm2395 = vmand %vm2387, %vm1987
      %vm2396 = vmand %vm2388, %vm1988
      %vm2397 = vmand %vm2389, %vm1989
      %vm2398 = vmand %vm2390, %vm1990
      %vm2399 = vmand %vm2391, %vm1991
      %vm2400 = vmand %vm2392, %vm1992
      %vm2401 = vmand %vm2393, %vm1993
      %vm2402 = vmand %vm2394, %vm1994
      %v2403 = vsel %vm2395, %v1891, 0.0
      %v2404 = vsel %vm2396, %v1892, 0.0
      %v2405 = vsel %vm2397, %v1893, 0.0
      %v2406 = vsel %vm2398, %v1894, 0.0
      %v2407 = vsel %vm2399, %v1895, 0.0
      %v2408 = vsel %vm2400, %v1896, 0.0
      %v2409 = vsel %vm2401, %v1897, 0.0
      %v2410 = vsel %vm2402, %v1898, 0.0
      %v2411 = vadd.s32 %v1378, %v2012
      %v2412 = vadd.s32 %v1379, %v2014
      %v2413 = vadd.s32 %v1380, %v2016
      %v2414 = vadd.s32 %v1381, %v2018
      %v2415 = vadd.s32 %v1382, %v2020
      %v2416 = vadd.s32 %v1383, %v2022
      %v2417 = vadd.s32 %v1384, %v2024
      %v2418 = vadd.s32 %v1385, %v2026
      %2419 = vset.pattern.permute.xlu0 2
      %2420 = vperm.xlu0 %2419, %v2411
      %v2421 = vpop.permute.xlu0 %2420
      %2422 = vset.pattern.permute.xlu0 2
      %2423 = vperm.xlu0 %2422, %v2412
      %v2424 = vpop.permute.xlu0 %2423
      %2425 = vset.pattern.permute.xlu0 2
      %2426 = vperm.xlu0 %2425, %v2413
      %v2427 = vpop.permute.xlu0 %2426
      %2428 = vset.pattern.permute.xlu0 2
      %2429 = vperm.xlu0 %2428, %v2414
      %v2430 = vpop.permute.xlu0 %2429
      %2431 = vset.pattern.permute.xlu0 2
      %2432 = vperm.xlu0 %2431, %v2415
      %v2433 = vpop.permute.xlu0 %2432
      %2434 = vset.pattern.permute.xlu0 2
      %2435 = vperm.xlu0 %2434, %v2416
      %v2436 = vpop.permute.xlu0 %2435
      %2437 = vset.pattern.permute.xlu0 2
      %2438 = vperm.xlu0 %2437, %v2417
      %v2439 = vpop.permute.xlu0 %2438
      %2440 = vset.pattern.permute.xlu0 2
      %2441 = vperm.xlu0 %2440, %v2418
      %v2442 = vpop.permute.xlu0 %2441
      %vm2443 = vcmp.eq.s32.totalorder %v592, %v2421
      %vm2444 = vcmp.eq.s32.totalorder %v593, %v2421
      %vm2445 = vcmp.eq.s32.totalorder %v592, %v2424
      %vm2446 = vcmp.eq.s32.totalorder %v593, %v2424
      %vm2447 = vcmp.eq.s32.totalorder %v592, %v2427
      %vm2448 = vcmp.eq.s32.totalorder %v593, %v2427
      %vm2449 = vcmp.eq.s32.totalorder %v592, %v2430
      %vm2450 = vcmp.eq.s32.totalorder %v593, %v2430
      %vm2451 = vcmp.eq.s32.totalorder %v592, %v2433
      %vm2452 = vcmp.eq.s32.totalorder %v593, %v2433
      %vm2453 = vcmp.eq.s32.totalorder %v592, %v2436
      %vm2454 = vcmp.eq.s32.totalorder %v593, %v2436
      %vm2455 = vcmp.eq.s32.totalorder %v592, %v2439
      %vm2456 = vcmp.eq.s32.totalorder %v593, %v2439
      %vm2457 = vcmp.eq.s32.totalorder %v592, %v2442
      %vm2458 = vcmp.eq.s32.totalorder %v593, %v2442
      %2460 = vset.pattern.permute.xlu0 2
      %2461 = vperm.xlu0 %2460, %v2403
      %v2462 = vpop.permute.xlu0 %2461
      %2465 = vset.pattern.permute.xlu0 2
      %2466 = vperm.xlu0 %2465, %v2404
      %v2467 = vpop.permute.xlu0 %2466
      %2470 = vset.pattern.permute.xlu0 2
      %2471 = vperm.xlu0 %2470, %v2405
      %v2472 = vpop.permute.xlu0 %2471
      %2475 = vset.pattern.permute.xlu0 2
      %2476 = vperm.xlu0 %2475, %v2406
      %v2477 = vpop.permute.xlu0 %2476
      %2480 = vset.pattern.permute.xlu0 2
      %2481 = vperm.xlu0 %2480, %v2407
      %v2482 = vpop.permute.xlu0 %2481
      %2485 = vset.pattern.permute.xlu0 2
      %2486 = vperm.xlu0 %2485, %v2408
      %v2487 = vpop.permute.xlu0 %2486
      %2490 = vset.pattern.permute.xlu0 2
      %2491 = vperm.xlu0 %2490, %v2409
      %v2492 = vpop.permute.xlu0 %2491
      %2495 = vset.pattern.permute.xlu0 2
      %2496 = vperm.xlu0 %2495, %v2410
      %v2497 = vpop.permute.xlu0 %2496
      %v2499 = vsel %vm2443, %v2462, 0.0
      %v2500 = vsel %vm2444, %v2462, 0.0
      %v2501 = vsel %vm2445, %v2467, 0.0
      %v2502 = vsel %vm2446, %v2467, 0.0
      %v2503 = vsel %vm2447, %v2472, 0.0
      %v2504 = vsel %vm2448, %v2472, 0.0
      %v2505 = vsel %vm2449, %v2477, 0.0
      %v2506 = vsel %vm2450, %v2477, 0.0
      %v2507 = vsel %vm2451, %v2482, 0.0
      %v2508 = vsel %vm2452, %v2482, 0.0
      %v2509 = vsel %vm2453, %v2487, 0.0
      %v2510 = vsel %vm2454, %v2487, 0.0
      %v2511 = vsel %vm2455, %v2492, 0.0
      %v2512 = vsel %vm2456, %v2492, 0.0
      %v2513 = vsel %vm2457, %v2497, 0.0
      %v2514 = vsel %vm2458, %v2497, 0.0
      %v2515 = vadd.f32 %v2371, %v2499
      %v2516 = vadd.f32 %v2372, %v2500
      %v2517 = vadd.f32 %v2373, %v2501
      %v2518 = vadd.f32 %v2374, %v2502
      %v2519 = vadd.f32 %v2375, %v2503
      %v2520 = vadd.f32 %v2376, %v2504
      %v2521 = vadd.f32 %v2377, %v2505
      %v2522 = vadd.f32 %v2378, %v2506
      %v2523 = vadd.f32 %v2379, %v2507
      %v2524 = vadd.f32 %v2380, %v2508
      %v2525 = vadd.f32 %v2381, %v2509
      %v2526 = vadd.f32 %v2382, %v2510
      %v2527 = vadd.f32 %v2383, %v2511
      %v2528 = vadd.f32 %v2384, %v2512
      %v2529 = vadd.f32 %v2385, %v2513
      %v2530 = vadd.f32 %v2386, %v2514
      %vm2531 = vmand %vm1346, %vm2179
      %vm2532 = vmand %vm1347, %vm2180
      %vm2533 = vmand %vm1348, %vm2181
      %vm2534 = vmand %vm1349, %vm2182
      %vm2535 = vmand %vm1350, %vm2183
      %vm2536 = vmand %vm1351, %vm2184
      %vm2537 = vmand %vm1352, %vm2185
      %vm2538 = vmand %vm1353, %vm2186
      %vm2539 = vmand %vm2531, %vm2227
      %vm2540 = vmand %vm2532, %vm2228
      %vm2541 = vmand %vm2533, %vm2229
      %vm2542 = vmand %vm2534, %vm2230
      %vm2543 = vmand %vm2535, %vm2231
      %vm2544 = vmand %vm2536, %vm2232
      %vm2545 = vmand %vm2537, %vm2233
      %vm2546 = vmand %vm2538, %vm2234
      %v2547 = vsel %vm2539, %v1899, 0.0
      %v2548 = vsel %vm2540, %v1900, 0.0
      %v2549 = vsel %vm2541, %v1901, 0.0
      %v2550 = vsel %vm2542, %v1902, 0.0
      %v2551 = vsel %vm2543, %v1903, 0.0
      %v2552 = vsel %vm2544, %v1904, 0.0
      %v2553 = vsel %vm2545, %v1905, 0.0
      %v2554 = vsel %vm2546, %v1906, 0.0
      %v2555 = vadd.s32 %v1378, %v2252
      %v2556 = vadd.s32 %v1379, %v2254
      %v2557 = vadd.s32 %v1380, %v2256
      %v2558 = vadd.s32 %v1381, %v2258
      %v2559 = vadd.s32 %v1382, %v2260
      %v2560 = vadd.s32 %v1383, %v2262
      %v2561 = vadd.s32 %v1384, %v2264
      %v2562 = vadd.s32 %v1385, %v2266
      %2563 = vset.pattern.permute.xlu0 2
      %2564 = vperm.xlu0 %2563, %v2555
      %v2565 = vpop.permute.xlu0 %2564
      %2566 = vset.pattern.permute.xlu0 2
      %2567 = vperm.xlu0 %2566, %v2556
      %v2568 = vpop.permute.xlu0 %2567
      %2569 = vset.pattern.permute.xlu0 2
      %2570 = vperm.xlu0 %2569, %v2557
      %v2571 = vpop.permute.xlu0 %2570
      %2572 = vset.pattern.permute.xlu0 2
      %2573 = vperm.xlu0 %2572, %v2558
      %v2574 = vpop.permute.xlu0 %2573
      %2575 = vset.pattern.permute.xlu0 2
      %2576 = vperm.xlu0 %2575, %v2559
      %v2577 = vpop.permute.xlu0 %2576
      %2578 = vset.pattern.permute.xlu0 2
      %2579 = vperm.xlu0 %2578, %v2560
      %v2580 = vpop.permute.xlu0 %2579
      %2581 = vset.pattern.permute.xlu0 2
      %2582 = vperm.xlu0 %2581, %v2561
      %v2583 = vpop.permute.xlu0 %2582
      %2584 = vset.pattern.permute.xlu0 2
      %2585 = vperm.xlu0 %2584, %v2562
      %v2586 = vpop.permute.xlu0 %2585
      %vm2587 = vcmp.eq.s32.totalorder %v592, %v2565
      %vm2588 = vcmp.eq.s32.totalorder %v593, %v2565
      %vm2589 = vcmp.eq.s32.totalorder %v592, %v2568
      %vm2590 = vcmp.eq.s32.totalorder %v593, %v2568
      %vm2591 = vcmp.eq.s32.totalorder %v592, %v2571
      %vm2592 = vcmp.eq.s32.totalorder %v593, %v2571
      %vm2593 = vcmp.eq.s32.totalorder %v592, %v2574
      %vm2594 = vcmp.eq.s32.totalorder %v593, %v2574
      %vm2595 = vcmp.eq.s32.totalorder %v592, %v2577
      %vm2596 = vcmp.eq.s32.totalorder %v593, %v2577
      %vm2597 = vcmp.eq.s32.totalorder %v592, %v2580
      %vm2598 = vcmp.eq.s32.totalorder %v593, %v2580
      %vm2599 = vcmp.eq.s32.totalorder %v592, %v2583
      %vm2600 = vcmp.eq.s32.totalorder %v593, %v2583
      %vm2601 = vcmp.eq.s32.totalorder %v592, %v2586
      %vm2602 = vcmp.eq.s32.totalorder %v593, %v2586
      %2604 = vset.pattern.permute.xlu0 2
      %2605 = vperm.xlu0 %2604, %v2547
      %v2606 = vpop.permute.xlu0 %2605
      %2609 = vset.pattern.permute.xlu0 2
      %2610 = vperm.xlu0 %2609, %v2548
      %v2611 = vpop.permute.xlu0 %2610
      %2614 = vset.pattern.permute.xlu0 2
      %2615 = vperm.xlu0 %2614, %v2549
      %v2616 = vpop.permute.xlu0 %2615
      %2619 = vset.pattern.permute.xlu0 2
      %2620 = vperm.xlu0 %2619, %v2550
      %v2621 = vpop.permute.xlu0 %2620
      %2624 = vset.pattern.permute.xlu0 2
      %2625 = vperm.xlu0 %2624, %v2551
      %v2626 = vpop.permute.xlu0 %2625
      %2629 = vset.pattern.permute.xlu0 2
      %2630 = vperm.xlu0 %2629, %v2552
      %v2631 = vpop.permute.xlu0 %2630
      %2634 = vset.pattern.permute.xlu0 2
      %2635 = vperm.xlu0 %2634, %v2553
      %v2636 = vpop.permute.xlu0 %2635
      %2639 = vset.pattern.permute.xlu0 2
      %2640 = vperm.xlu0 %2639, %v2554
      %v2641 = vpop.permute.xlu0 %2640
      %v2643 = vsel %vm2587, %v2606, 0.0
      %v2644 = vsel %vm2588, %v2606, 0.0
      %v2645 = vsel %vm2589, %v2611, 0.0
      %v2646 = vsel %vm2590, %v2611, 0.0
      %v2647 = vsel %vm2591, %v2616, 0.0
      %v2648 = vsel %vm2592, %v2616, 0.0
      %v2649 = vsel %vm2593, %v2621, 0.0
      %v2650 = vsel %vm2594, %v2621, 0.0
      %v2651 = vsel %vm2595, %v2626, 0.0
      %v2652 = vsel %vm2596, %v2626, 0.0
      %v2653 = vsel %vm2597, %v2631, 0.0
      %v2654 = vsel %vm2598, %v2631, 0.0
      %v2655 = vsel %vm2599, %v2636, 0.0
      %v2656 = vsel %vm2600, %v2636, 0.0
      %v2657 = vsel %vm2601, %v2641, 0.0
      %v2658 = vsel %vm2602, %v2641, 0.0
      %v2659 = vadd.f32 %v2515, %v2643
      %v2660 = vadd.f32 %v2516, %v2644
      %v2661 = vadd.f32 %v2517, %v2645
      %v2662 = vadd.f32 %v2518, %v2646
      %v2663 = vadd.f32 %v2519, %v2647
      %v2664 = vadd.f32 %v2520, %v2648
      %v2665 = vadd.f32 %v2521, %v2649
      %v2666 = vadd.f32 %v2522, %v2650
      %v2667 = vadd.f32 %v2523, %v2651
      %v2668 = vadd.f32 %v2524, %v2652
      %v2669 = vadd.f32 %v2525, %v2653
      %v2670 = vadd.f32 %v2526, %v2654
      %v2671 = vadd.f32 %v2527, %v2655
      %v2672 = vadd.f32 %v2528, %v2656
      %v2673 = vadd.f32 %v2529, %v2657
      %v2674 = vadd.f32 %v2530, %v2658
      %2675 = vmatprep.subr.mxu0 0.0
      %2676 = vmatpush1.msra.mxu0 %v339
      %2677 = vmatprep.subr.mxu0 0.0
      %2678 = vmatpush1.msra.mxu0 %v340
      %2679 = vmatprep.subr.mxu0 0.0
      %2680 = vmatpush1.msra.mxu0 %v341
      %2681 = vmatprep.subr.mxu0 0.0
      %2682 = vmatpush1.msra.mxu0 %v342
      %2683 = vmatprep.subr.mxu0 0.0
      %2684 = vmatpush1.msra.mxu0 %v343
      %2685 = vmatprep.subr.mxu0 0.0
      %2686 = vmatpush1.msra.mxu0 %v344
      %2687 = vmatprep.subr.mxu0 0.0
      %2688 = vmatpush1.msra.mxu0 %v345
      %2689 = vmatprep.subr.mxu0 0.0
      %2690 = vmatpush1.msra.mxu0 %v346
      %2691 = vmatprep.subr.mxu0 0.0
      %2692 = vmatpush1.msra.mxu0 %v347
      %2693 = vmatprep.subr.mxu0 0.0
      %2694 = vmatpush1.msra.mxu0 %v348
      %2695 = vmatprep.subr.mxu0 0.0
      %2696 = vmatpush1.msra.mxu0 %v349
      %2697 = vmatprep.subr.mxu0 0.0
      %2698 = vmatpush1.msra.mxu0 %v350
      %2699 = vmatprep.subr.mxu0 0.0
      %2700 = vmatpush1.msra.mxu0 %v351
      %2701 = vmatprep.subr.mxu0 0.0
      %2702 = vmatpush1.msra.mxu0 %v352
      %2703 = vmatprep.subr.mxu0 0.0
      %2704 = vmatpush1.msra.mxu0 %v353
      %2705 = vmatprep.subr.mxu0 0.0
      %2706 = vmatpush1.msra.mxu0 %v354
      %2707 = vmatprep.subr.mxu0 0.0
      %2708 = vmatpush1.msra.mxu0 %v355
      %2709 = vmatprep.subr.mxu0 0.0
      %2710 = vmatpush1.msra.mxu0 %v356
      %2711 = vmatprep.subr.mxu0 0.0
      %2712 = vmatpush1.msra.mxu0 %v357
      %2713 = vmatprep.subr.mxu0 0.0
      %2714 = vmatpush1.msra.mxu0 %v358
      %2715 = vmatprep.subr.mxu0 0.0
      %2716 = vmatpush1.msra.mxu0 %v359
      %2717 = vmatprep.subr.mxu0 0.0
      %2718 = vmatpush1.msra.mxu0 %v360
      %2719 = vmatprep.subr.mxu0 0.0
      %2720 = vmatpush1.msra.mxu0 %v361
      %2721 = vmatprep.subr.mxu0 0.0
      %2722 = vmatpush1.msra.mxu0 %v362
      %2723 = vmatprep.subr.mxu0 0.0
      %2724 = vmatpush1.msra.mxu0 %v363
      %2725 = vmatprep.subr.mxu0 0.0
      %2726 = vmatpush1.msra.mxu0 %v364
      %2727 = vmatprep.subr.mxu0 0.0
      %2728 = vmatpush1.msra.mxu0 %v365
      %2729 = vmatprep.subr.mxu0 0.0
      %2730 = vmatpush1.msra.mxu0 %v366
      %2731 = vmatprep.subr.mxu0 0.0
      %2732 = vmatpush1.msra.mxu0 %v367
      %2733 = vmatprep.subr.mxu0 0.0
      %2734 = vmatpush1.msra.mxu0 %v368
      %2735 = vmatprep.subr.mxu0 0.0
      %2736 = vmatpush1.msra.mxu0 %v369
      %2737 = vmatprep.subr.mxu0 0.0
      %2738 = vmatpush1.msra.mxu0 %v370
      %2739 = vmatprep.mubr.f32.mxu0 %v2660
      %2740 = vmatmul.mubr.f32.gmra.mrb[0].mxu0 %v2659
      %v2741 = vpop.f32.mrb[0].mxu0
      %v2742 = vadd.f32 0.0, %v2741
      %v2743 = vpop.f32.mrb[0].mxu0
      %2744 = vmatprep.mubr.f32.mxu0 %v2662
      %2745 = vmatmul.mubr.f32.gmra.mrb[0].mxu0 %v2661
      %v2746 = vpop.f32.mrb[0].mxu0
      %v2747 = vadd.f32 0.0, %v2746
      %v2748 = vpop.f32.mrb[0].mxu0
      %2749 = vmatprep.mubr.f32.mxu0 %v2664
      %2750 = vmatmul.mubr.f32.gmra.mrb[0].mxu0 %v2663
      %v2751 = vpop.f32.mrb[0].mxu0
      %v2752 = vadd.f32 0.0, %v2751
      %v2753 = vpop.f32.mrb[0].mxu0
      %2754 = vmatprep.mubr.f32.mxu0 %v2666
      %2755 = vmatmul.mubr.f32.gmra.mrb[0].mxu0 %v2665
      %v2756 = vpop.f32.mrb[0].mxu0
      %v2757 = vadd.f32 0.0, %v2756
      %v2758 = vpop.f32.mrb[0].mxu0
      %2759 = vmatprep.mubr.f32.mxu0 %v2668
      %2760 = vmatmul.mubr.f32.gmra.mrb[0].mxu0 %v2667
      %v2761 = vpop.f32.mrb[0].mxu0
      %v2762 = vadd.f32 0.0, %v2761
      %v2763 = vpop.f32.mrb[0].mxu0
      %2764 = vmatprep.mubr.f32.mxu0 %v2670
      %2765 = vmatmul.mubr.f32.gmra.mrb[0].mxu0 %v2669
      %v2766 = vpop.f32.mrb[0].mxu0
      %v2767 = vadd.f32 0.0, %v2766
      %v2768 = vpop.f32.mrb[0].mxu0
      %2769 = vmatprep.mubr.f32.mxu0 %v2672
      %2770 = vmatmul.mubr.f32.gmra.mrb[0].mxu0 %v2671
      %v2771 = vpop.f32.mrb[0].mxu0
      %v2772 = vadd.f32 0.0, %v2771
      %v2773 = vpop.f32.mrb[0].mxu0
      %2774 = vmatprep.mubr.f32.mxu0 %v2674
      %2775 = vmatmul.mubr.f32.gmra.mrb[0].mxu0 %v2673
      %v2776 = vpop.f32.mrb[0].mxu0
      %v2777 = vadd.f32 0.0, %v2776
      %v2778 = vpop.f32.mrb[0].mxu0
      %2779 = vdwg.mxu0
      %v2780 = vadd.f32 %v594, 1.0
      %v2781 = vadd.f32 %v595, 1.0
      %v2782 = vadd.f32 %v596, 1.0
      %v2783 = vadd.f32 %v597, 1.0
      %v2784 = vadd.f32 %v598, 1.0
      %v2785 = vadd.f32 %v599, 1.0
      %v2786 = vadd.f32 %v600, 1.0
      %v2787 = vadd.f32 %v601, 1.0
      %v2788 = vadd.f32 %v2780, %v486
      %v2789 = vadd.f32 %v2781, %v491
      %v2790 = vadd.f32 %v2782, %v496
      %v2791 = vadd.f32 %v2783, %v501
      %v2792 = vadd.f32 %v2784, %v506
      %v2793 = vadd.f32 %v2785, %v511
      %v2794 = vadd.f32 %v2786, %v516
      %v2795 = vadd.f32 %v2787, %v521
      %v2796 = vfloor.f32 %v2788
      %v2797 = vfloor.f32 %v2789
      %v2798 = vfloor.f32 %v2790
      %v2799 = vfloor.f32 %v2791
      %v2800 = vfloor.f32 %v2792
      %v2801 = vfloor.f32 %v2793
      %v2802 = vfloor.f32 %v2794
      %v2803 = vfloor.f32 %v2795
      %v2804 = vsub.f32 %v2788, %v2796
      %v2805 = vsub.f32 %v2789, %v2797
      %v2806 = vsub.f32 %v2790, %v2798
      %v2807 = vsub.f32 %v2791, %v2799
      %v2808 = vsub.f32 %v2792, %v2800
      %v2809 = vsub.f32 %v2793, %v2801
      %v2810 = vsub.f32 %v2794, %v2802
      %v2811 = vsub.f32 %v2795, %v2803
      %v2812 = vcvt.f32.s32.to.zero.pseudo %v2796
      %v2813 = vcvt.f32.s32.to.zero.pseudo %v2797
      %v2814 = vcvt.f32.s32.to.zero.pseudo %v2798
      %v2815 = vcvt.f32.s32.to.zero.pseudo %v2799
      %v2816 = vcvt.f32.s32.to.zero.pseudo %v2800
      %v2817 = vcvt.f32.s32.to.zero.pseudo %v2801
      %v2818 = vcvt.f32.s32.to.zero.pseudo %v2802
      %v2819 = vcvt.f32.s32.to.zero.pseudo %v2803
      %v2820 = vsub.f32 1.0, %v2804
      %v2821 = vsub.f32 1.0, %v2805
      %v2822 = vsub.f32 1.0, %v2806
      %v2823 = vsub.f32 1.0, %v2807
      %v2824 = vsub.f32 1.0, %v2808
      %v2825 = vsub.f32 1.0, %v2809
      %v2826 = vsub.f32 1.0, %v2810
      %v2827 = vsub.f32 1.0, %v2811
      %v2828 = vmul.f32 %v2820, %v715
      %v2829 = vmul.f32 %v2821, %v717
      %v2830 = vmul.f32 %v2822, %v719
      %v2831 = vmul.f32 %v2823, %v721
      %v2832 = vmul.f32 %v2824, %v723
      %v2833 = vmul.f32 %v2825, %v725
      %v2834 = vmul.f32 %v2826, %v727
      %v2835 = vmul.f32 %v2827, %v729
      %v2836 = vmul.f32 %v2820, %v763
      %v2837 = vmul.f32 %v2821, %v765
      %v2838 = vmul.f32 %v2822, %v767
      %v2839 = vmul.f32 %v2823, %v769
      %v2840 = vmul.f32 %v2824, %v771
      %v2841 = vmul.f32 %v2825, %v773
      %v2842 = vmul.f32 %v2826, %v775
      %v2843 = vmul.f32 %v2827, %v777
      %v2844 = vadd.s32 %v2812, 1
      %v2845 = vadd.s32 %v2813, 1
      %v2846 = vadd.s32 %v2814, 1
      %v2847 = vadd.s32 %v2815, 1
      %v2848 = vadd.s32 %v2816, 1
      %v2849 = vadd.s32 %v2817, 1
      %v2850 = vadd.s32 %v2818, 1
      %v2851 = vadd.s32 %v2819, 1
      %v2852 = vmul.f32 %v2804, %v715
      %v2853 = vmul.f32 %v2805, %v717
      %v2854 = vmul.f32 %v2806, %v719
      %v2855 = vmul.f32 %v2807, %v721
      %v2856 = vmul.f32 %v2808, %v723
      %v2857 = vmul.f32 %v2809, %v725
      %v2858 = vmul.f32 %v2810, %v727
      %v2859 = vmul.f32 %v2811, %v729
      %v2860 = vmul.f32 %v2804, %v763
      %v2861 = vmul.f32 %v2805, %v765
      %v2862 = vmul.f32 %v2806, %v767
      %v2863 = vmul.f32 %v2807, %v769
      %v2864 = vmul.f32 %v2808, %v771
      %v2865 = vmul.f32 %v2809, %v773
      %v2866 = vmul.f32 %v2810, %v775
      %v2867 = vmul.f32 %v2811, %v777
      %vm2868 = vcmp.ge.s32.totalorder %v2812, 0
      %vm2869 = vcmp.ge.s32.totalorder %v2813, 0
      %vm2870 = vcmp.ge.s32.totalorder %v2814, 0
      %vm2871 = vcmp.ge.s32.totalorder %v2815, 0
      %vm2872 = vcmp.ge.s32.totalorder %v2816, 0
      %vm2873 = vcmp.ge.s32.totalorder %v2817, 0
      %vm2874 = vcmp.ge.s32.totalorder %v2818, 0
      %vm2875 = vcmp.ge.s32.totalorder %v2819, 0
      %vm2876 = vcmp.lt.s32.totalorder %v2812, 16
      %vm2877 = vcmp.lt.s32.totalorder %v2813, 16
      %vm2878 = vcmp.lt.s32.totalorder %v2814, 16
      %vm2879 = vcmp.lt.s32.totalorder %v2815, 16
      %vm2880 = vcmp.lt.s32.totalorder %v2816, 16
      %vm2881 = vcmp.lt.s32.totalorder %v2817, 16
      %vm2882 = vcmp.lt.s32.totalorder %v2818, 16
      %vm2883 = vcmp.lt.s32.totalorder %v2819, 16
      %vm2884 = vmand %vm2868, %vm2876
      %vm2885 = vmand %vm2869, %vm2877
      %vm2886 = vmand %vm2870, %vm2878
      %vm2887 = vmand %vm2871, %vm2879
      %vm2888 = vmand %vm2872, %vm2880
      %vm2889 = vmand %vm2873, %vm2881
      %vm2890 = vmand %vm2874, %vm2882
      %vm2891 = vmand %vm2875, %vm2883
      %vm2892 = vmand %vm2884, %vm874
      %vm2893 = vmand %vm2885, %vm875
      %vm2894 = vmand %vm2886, %vm876
      %vm2895 = vmand %vm2887, %vm877
      %vm2896 = vmand %vm2888, %vm878
      %vm2897 = vmand %vm2889, %vm879
      %vm2898 = vmand %vm2890, %vm880
      %vm2899 = vmand %vm2891, %vm881
      %vm2900 = vmand %vm2892, %vm922
      %vm2901 = vmand %vm2893, %vm923
      %vm2902 = vmand %vm2894, %vm924
      %vm2903 = vmand %vm2895, %vm925
      %vm2904 = vmand %vm2896, %vm926
      %vm2905 = vmand %vm2897, %vm927
      %vm2906 = vmand %vm2898, %vm928
      %vm2907 = vmand %vm2899, %vm929
      %v2908 = vsel %vm2900, %v2828, 0.0
      %v2909 = vsel %vm2901, %v2829, 0.0
      %v2910 = vsel %vm2902, %v2830, 0.0
      %v2911 = vsel %vm2903, %v2831, 0.0
      %v2912 = vsel %vm2904, %v2832, 0.0
      %v2913 = vsel %vm2905, %v2833, 0.0
      %v2914 = vsel %vm2906, %v2834, 0.0
      %v2915 = vsel %vm2907, %v2835, 0.0
      %v2916 = vmul.u32 %v2812, 16
      %v2917 = vmul.u32 %v2813, 16
      %v2918 = vmul.u32 %v2814, 16
      %v2919 = vmul.u32 %v2815, 16
      %v2920 = vmul.u32 %v2816, 16
      %v2921 = vmul.u32 %v2817, 16
      %v2922 = vmul.u32 %v2818, 16
      %v2923 = vmul.u32 %v2819, 16
      %v2924 = vadd.s32 %v2916, %v955
      %v2925 = vadd.s32 %v2917, %v957
      %v2926 = vadd.s32 %v2918, %v959
      %v2927 = vadd.s32 %v2919, %v961
      %v2928 = vadd.s32 %v2920, %v963
      %v2929 = vadd.s32 %v2921, %v965
      %v2930 = vadd.s32 %v2922, %v967
      %v2931 = vadd.s32 %v2923, %v969
      %2932 = vset.pattern.permute.xlu0 4
      %2933 = vperm.xlu0 %2932, %v2924
      %v2934 = vpop.permute.xlu0 %2933
      %2935 = vset.pattern.permute.xlu0 4
      %2936 = vperm.xlu0 %2935, %v2925
      %v2937 = vpop.permute.xlu0 %2936
      %2938 = vset.pattern.permute.xlu0 4
      %2939 = vperm.xlu0 %2938, %v2926
      %v2940 = vpop.permute.xlu0 %2939
      %2941 = vset.pattern.permute.xlu0 4
      %2942 = vperm.xlu0 %2941, %v2927
      %v2943 = vpop.permute.xlu0 %2942
      %2944 = vset.pattern.permute.xlu0 4
      %2945 = vperm.xlu0 %2944, %v2928
      %v2946 = vpop.permute.xlu0 %2945
      %2947 = vset.pattern.permute.xlu0 4
      %2948 = vperm.xlu0 %2947, %v2929
      %v2949 = vpop.permute.xlu0 %2948
      %2950 = vset.pattern.permute.xlu0 4
      %2951 = vperm.xlu0 %2950, %v2930
      %v2952 = vpop.permute.xlu0 %2951
      %2953 = vset.pattern.permute.xlu0 4
      %2954 = vperm.xlu0 %2953, %v2931
      %v2955 = vpop.permute.xlu0 %2954
      %vm2956 = vcmp.eq.s32.totalorder %v592, %v2934
      %vm2957 = vcmp.eq.s32.totalorder %v593, %v2934
      %vm2958 = vcmp.eq.s32.totalorder %v592, %v2937
      %vm2959 = vcmp.eq.s32.totalorder %v593, %v2937
      %vm2960 = vcmp.eq.s32.totalorder %v592, %v2940
      %vm2961 = vcmp.eq.s32.totalorder %v593, %v2940
      %vm2962 = vcmp.eq.s32.totalorder %v592, %v2943
      %vm2963 = vcmp.eq.s32.totalorder %v593, %v2943
      %vm2964 = vcmp.eq.s32.totalorder %v592, %v2946
      %vm2965 = vcmp.eq.s32.totalorder %v593, %v2946
      %vm2966 = vcmp.eq.s32.totalorder %v592, %v2949
      %vm2967 = vcmp.eq.s32.totalorder %v593, %v2949
      %vm2968 = vcmp.eq.s32.totalorder %v592, %v2952
      %vm2969 = vcmp.eq.s32.totalorder %v593, %v2952
      %vm2970 = vcmp.eq.s32.totalorder %v592, %v2955
      %vm2971 = vcmp.eq.s32.totalorder %v593, %v2955
      %2973 = vset.pattern.permute.xlu0 4
      %2974 = vperm.xlu0 %2973, %v2908
      %v2975 = vpop.permute.xlu0 %2974
      %2978 = vset.pattern.permute.xlu0 4
      %2979 = vperm.xlu0 %2978, %v2909
      %v2980 = vpop.permute.xlu0 %2979
      %2983 = vset.pattern.permute.xlu0 4
      %2984 = vperm.xlu0 %2983, %v2910
      %v2985 = vpop.permute.xlu0 %2984
      %2988 = vset.pattern.permute.xlu0 4
      %2989 = vperm.xlu0 %2988, %v2911
      %v2990 = vpop.permute.xlu0 %2989
      %2993 = vset.pattern.permute.xlu0 4
      %2994 = vperm.xlu0 %2993, %v2912
      %v2995 = vpop.permute.xlu0 %2994
      %2998 = vset.pattern.permute.xlu0 4
      %2999 = vperm.xlu0 %2998, %v2913
      %v3000 = vpop.permute.xlu0 %2999
      %3003 = vset.pattern.permute.xlu0 4
      %3004 = vperm.xlu0 %3003, %v2914
      %v3005 = vpop.permute.xlu0 %3004
      %3008 = vset.pattern.permute.xlu0 4
      %3009 = vperm.xlu0 %3008, %v2915
      %v3010 = vpop.permute.xlu0 %3009
      %v3012 = vsel %vm2956, %v2975, 0.0
      %v3013 = vsel %vm2957, %v2975, 0.0
      %v3014 = vsel %vm2958, %v2980, 0.0
      %v3015 = vsel %vm2959, %v2980, 0.0
      %v3016 = vsel %vm2960, %v2985, 0.0
      %v3017 = vsel %vm2961, %v2985, 0.0
      %v3018 = vsel %vm2962, %v2990, 0.0
      %v3019 = vsel %vm2963, %v2990, 0.0
      %v3020 = vsel %vm2964, %v2995, 0.0
      %v3021 = vsel %vm2965, %v2995, 0.0
      %v3022 = vsel %vm2966, %v3000, 0.0
      %v3023 = vsel %vm2967, %v3000, 0.0
      %v3024 = vsel %vm2968, %v3005, 0.0
      %v3025 = vsel %vm2969, %v3005, 0.0
      %v3026 = vsel %vm2970, %v3010, 0.0
      %v3027 = vsel %vm2971, %v3010, 0.0
      %v3028 = vadd.f32 %v3012, 0.0
      %v3029 = vadd.f32 %v3013, 0.0
      %v3030 = vadd.f32 %v3014, 0.0
      %v3031 = vadd.f32 %v3015, 0.0
      %v3032 = vadd.f32 %v3016, 0.0
      %v3033 = vadd.f32 %v3017, 0.0
      %v3034 = vadd.f32 %v3018, 0.0
      %v3035 = vadd.f32 %v3019, 0.0
      %v3036 = vadd.f32 %v3020, 0.0
      %v3037 = vadd.f32 %v3021, 0.0
      %v3038 = vadd.f32 %v3022, 0.0
      %v3039 = vadd.f32 %v3023, 0.0
      %v3040 = vadd.f32 %v3024, 0.0
      %v3041 = vadd.f32 %v3025, 0.0
      %v3042 = vadd.f32 %v3026, 0.0
      %v3043 = vadd.f32 %v3027, 0.0
      %vm3044 = vmand %vm2884, %vm1122
      %vm3045 = vmand %vm2885, %vm1123
      %vm3046 = vmand %vm2886, %vm1124
      %vm3047 = vmand %vm2887, %vm1125
      %vm3048 = vmand %vm2888, %vm1126
      %vm3049 = vmand %vm2889, %vm1127
      %vm3050 = vmand %vm2890, %vm1128
      %vm3051 = vmand %vm2891, %vm1129
      %vm3052 = vmand %vm3044, %vm1170
      %vm3053 = vmand %vm3045, %vm1171
      %vm3054 = vmand %vm3046, %vm1172
      %vm3055 = vmand %vm3047, %vm1173
      %vm3056 = vmand %vm3048, %vm1174
      %vm3057 = vmand %vm3049, %vm1175
      %vm3058 = vmand %vm3050, %vm1176
      %vm3059 = vmand %vm3051, %vm1177
      %v3060 = vsel %vm3052, %v2836, 0.0
      %v3061 = vsel %vm3053, %v2837, 0.0
      %v3062 = vsel %vm3054, %v2838, 0.0
      %v3063 = vsel %vm3055, %v2839, 0.0
      %v3064 = vsel %vm3056, %v2840, 0.0
      %v3065 = vsel %vm3057, %v2841, 0.0
      %v3066 = vsel %vm3058, %v2842, 0.0
      %v3067 = vsel %vm3059, %v2843, 0.0
      %v3068 = vadd.s32 %v2916, %v1195
      %v3069 = vadd.s32 %v2917, %v1197
      %v3070 = vadd.s32 %v2918, %v1199
      %v3071 = vadd.s32 %v2919, %v1201
      %v3072 = vadd.s32 %v2920, %v1203
      %v3073 = vadd.s32 %v2921, %v1205
      %v3074 = vadd.s32 %v2922, %v1207
      %v3075 = vadd.s32 %v2923, %v1209
      %3076 = vset.pattern.permute.xlu0 4
      %3077 = vperm.xlu0 %3076, %v3068
      %v3078 = vpop.permute.xlu0 %3077
      %3079 = vset.pattern.permute.xlu0 4
      %3080 = vperm.xlu0 %3079, %v3069
      %v3081 = vpop.permute.xlu0 %3080
      %3082 = vset.pattern.permute.xlu0 4
      %3083 = vperm.xlu0 %3082, %v3070
      %v3084 = vpop.permute.xlu0 %3083
      %3085 = vset.pattern.permute.xlu0 4
      %3086 = vperm.xlu0 %3085, %v3071
      %v3087 = vpop.permute.xlu0 %3086
      %3088 = vset.pattern.permute.xlu0 4
      %3089 = vperm.xlu0 %3088, %v3072
      %v3090 = vpop.permute.xlu0 %3089
      %3091 = vset.pattern.permute.xlu0 4
      %3092 = vperm.xlu0 %3091, %v3073
      %v3093 = vpop.permute.xlu0 %3092
      %3094 = vset.pattern.permute.xlu0 4
      %3095 = vperm.xlu0 %3094, %v3074
      %v3096 = vpop.permute.xlu0 %3095
      %3097 = vset.pattern.permute.xlu0 4
      %3098 = vperm.xlu0 %3097, %v3075
      %v3099 = vpop.permute.xlu0 %3098
      %vm3100 = vcmp.eq.s32.totalorder %v592, %v3078
      %vm3101 = vcmp.eq.s32.totalorder %v593, %v3078
      %vm3102 = vcmp.eq.s32.totalorder %v592, %v3081
      %vm3103 = vcmp.eq.s32.totalorder %v593, %v3081
      %vm3104 = vcmp.eq.s32.totalorder %v592, %v3084
      %vm3105 = vcmp.eq.s32.totalorder %v593, %v3084
      %vm3106 = vcmp.eq.s32.totalorder %v592, %v3087
      %vm3107 = vcmp.eq.s32.totalorder %v593, %v3087
      %vm3108 = vcmp.eq.s32.totalorder %v592, %v3090
      %vm3109 = vcmp.eq.s32.totalorder %v593, %v3090
      %vm3110 = vcmp.eq.s32.totalorder %v592, %v3093
      %vm3111 = vcmp.eq.s32.totalorder %v593, %v3093
      %vm3112 = vcmp.eq.s32.totalorder %v592, %v3096
      %vm3113 = vcmp.eq.s32.totalorder %v593, %v3096
      %vm3114 = vcmp.eq.s32.totalorder %v592, %v3099
      %vm3115 = vcmp.eq.s32.totalorder %v593, %v3099
      %3117 = vset.pattern.permute.xlu0 4
      %3118 = vperm.xlu0 %3117, %v3060
      %v3119 = vpop.permute.xlu0 %3118
      %3122 = vset.pattern.permute.xlu0 4
      %3123 = vperm.xlu0 %3122, %v3061
      %v3124 = vpop.permute.xlu0 %3123
      %3127 = vset.pattern.permute.xlu0 4
      %3128 = vperm.xlu0 %3127, %v3062
      %v3129 = vpop.permute.xlu0 %3128
      %3132 = vset.pattern.permute.xlu0 4
      %3133 = vperm.xlu0 %3132, %v3063
      %v3134 = vpop.permute.xlu0 %3133
      %3137 = vset.pattern.permute.xlu0 4
      %3138 = vperm.xlu0 %3137, %v3064
      %v3139 = vpop.permute.xlu0 %3138
      %3142 = vset.pattern.permute.xlu0 4
      %3143 = vperm.xlu0 %3142, %v3065
      %v3144 = vpop.permute.xlu0 %3143
      %3147 = vset.pattern.permute.xlu0 4
      %3148 = vperm.xlu0 %3147, %v3066
      %v3149 = vpop.permute.xlu0 %3148
      %3152 = vset.pattern.permute.xlu0 4
      %3153 = vperm.xlu0 %3152, %v3067
      %v3154 = vpop.permute.xlu0 %3153
      %v3156 = vsel %vm3100, %v3119, 0.0
      %v3157 = vsel %vm3101, %v3119, 0.0
      %v3158 = vsel %vm3102, %v3124, 0.0
      %v3159 = vsel %vm3103, %v3124, 0.0
      %v3160 = vsel %vm3104, %v3129, 0.0
      %v3161 = vsel %vm3105, %v3129, 0.0
      %v3162 = vsel %vm3106, %v3134, 0.0
      %v3163 = vsel %vm3107, %v3134, 0.0
      %v3164 = vsel %vm3108, %v3139, 0.0
      %v3165 = vsel %vm3109, %v3139, 0.0
      %v3166 = vsel %vm3110, %v3144, 0.0
      %v3167 = vsel %vm3111, %v3144, 0.0
      %v3168 = vsel %vm3112, %v3149, 0.0
      %v3169 = vsel %vm3113, %v3149, 0.0
      %v3170 = vsel %vm3114, %v3154, 0.0
      %v3171 = vsel %vm3115, %v3154, 0.0
      %v3172 = vadd.f32 %v3028, %v3156
      %v3173 = vadd.f32 %v3029, %v3157
      %v3174 = vadd.f32 %v3030, %v3158
      %v3175 = vadd.f32 %v3031, %v3159
      %v3176 = vadd.f32 %v3032, %v3160
      %v3177 = vadd.f32 %v3033, %v3161
      %v3178 = vadd.f32 %v3034, %v3162
      %v3179 = vadd.f32 %v3035, %v3163
      %v3180 = vadd.f32 %v3036, %v3164
      %v3181 = vadd.f32 %v3037, %v3165
      %v3182 = vadd.f32 %v3038, %v3166
      %v3183 = vadd.f32 %v3039, %v3167
      %v3184 = vadd.f32 %v3040, %v3168
      %v3185 = vadd.f32 %v3041, %v3169
      %v3186 = vadd.f32 %v3042, %v3170
      %v3187 = vadd.f32 %v3043, %v3171
      %vm3188 = vcmp.ge.s32.totalorder %v2844, 0
      %vm3189 = vcmp.ge.s32.totalorder %v2845, 0
      %vm3190 = vcmp.ge.s32.totalorder %v2846, 0
      %vm3191 = vcmp.ge.s32.totalorder %v2847, 0
      %vm3192 = vcmp.ge.s32.totalorder %v2848, 0
      %vm3193 = vcmp.ge.s32.totalorder %v2849, 0
      %vm3194 = vcmp.ge.s32.totalorder %v2850, 0
      %vm3195 = vcmp.ge.s32.totalorder %v2851, 0
      %vm3196 = vcmp.lt.s32.totalorder %v2844, 16
      %vm3197 = vcmp.lt.s32.totalorder %v2845, 16
      %vm3198 = vcmp.lt.s32.totalorder %v2846, 16
      %vm3199 = vcmp.lt.s32.totalorder %v2847, 16
      %vm3200 = vcmp.lt.s32.totalorder %v2848, 16
      %vm3201 = vcmp.lt.s32.totalorder %v2849, 16
      %vm3202 = vcmp.lt.s32.totalorder %v2850, 16
      %vm3203 = vcmp.lt.s32.totalorder %v2851, 16
      %vm3204 = vmand %vm3188, %vm3196
      %vm3205 = vmand %vm3189, %vm3197
      %vm3206 = vmand %vm3190, %vm3198
      %vm3207 = vmand %vm3191, %vm3199
      %vm3208 = vmand %vm3192, %vm3200
      %vm3209 = vmand %vm3193, %vm3201
      %vm3210 = vmand %vm3194, %vm3202
      %vm3211 = vmand %vm3195, %vm3203
      %vm3212 = vmand %vm3204, %vm874
      %vm3213 = vmand %vm3205, %vm875
      %vm3214 = vmand %vm3206, %vm876
      %vm3215 = vmand %vm3207, %vm877
      %vm3216 = vmand %vm3208, %vm878
      %vm3217 = vmand %vm3209, %vm879
      %vm3218 = vmand %vm3210, %vm880
      %vm3219 = vmand %vm3211, %vm881
      %vm3220 = vmand %vm3212, %vm922
      %vm3221 = vmand %vm3213, %vm923
      %vm3222 = vmand %vm3214, %vm924
      %vm3223 = vmand %vm3215, %vm925
      %vm3224 = vmand %vm3216, %vm926
      %vm3225 = vmand %vm3217, %vm927
      %vm3226 = vmand %vm3218, %vm928
      %vm3227 = vmand %vm3219, %vm929
      %v3228 = vsel %vm3220, %v2852, 0.0
      %v3229 = vsel %vm3221, %v2853, 0.0
      %v3230 = vsel %vm3222, %v2854, 0.0
      %v3231 = vsel %vm3223, %v2855, 0.0
      %v3232 = vsel %vm3224, %v2856, 0.0
      %v3233 = vsel %vm3225, %v2857, 0.0
      %v3234 = vsel %vm3226, %v2858, 0.0
      %v3235 = vsel %vm3227, %v2859, 0.0
      %v3236 = vmul.u32 %v2844, 16
      %v3237 = vmul.u32 %v2845, 16
      %v3238 = vmul.u32 %v2846, 16
      %v3239 = vmul.u32 %v2847, 16
      %v3240 = vmul.u32 %v2848, 16
      %v3241 = vmul.u32 %v2849, 16
      %v3242 = vmul.u32 %v2850, 16
      %v3243 = vmul.u32 %v2851, 16
      %v3244 = vadd.s32 %v3236, %v955
      %v3245 = vadd.s32 %v3237, %v957
      %v3246 = vadd.s32 %v3238, %v959
      %v3247 = vadd.s32 %v3239, %v961
      %v3248 = vadd.s32 %v3240, %v963
      %v3249 = vadd.s32 %v3241, %v965
      %v3250 = vadd.s32 %v3242, %v967
      %v3251 = vadd.s32 %v3243, %v969
      %3252 = vset.pattern.permute.xlu0 4
      %3253 = vperm.xlu0 %3252, %v3244
      %v3254 = vpop.permute.xlu0 %3253
      %3255 = vset.pattern.permute.xlu0 4
      %3256 = vperm.xlu0 %3255, %v3245
      %v3257 = vpop.permute.xlu0 %3256
      %3258 = vset.pattern.permute.xlu0 4
      %3259 = vperm.xlu0 %3258, %v3246
      %v3260 = vpop.permute.xlu0 %3259
      %3261 = vset.pattern.permute.xlu0 4
      %3262 = vperm.xlu0 %3261, %v3247
      %v3263 = vpop.permute.xlu0 %3262
      %3264 = vset.pattern.permute.xlu0 4
      %3265 = vperm.xlu0 %3264, %v3248
      %v3266 = vpop.permute.xlu0 %3265
      %3267 = vset.pattern.permute.xlu0 4
      %3268 = vperm.xlu0 %3267, %v3249
      %v3269 = vpop.permute.xlu0 %3268
      %3270 = vset.pattern.permute.xlu0 4
      %3271 = vperm.xlu0 %3270, %v3250
      %v3272 = vpop.permute.xlu0 %3271
      %3273 = vset.pattern.permute.xlu0 4
      %3274 = vperm.xlu0 %3273, %v3251
      %v3275 = vpop.permute.xlu0 %3274
      %vm3276 = vcmp.eq.s32.totalorder %v592, %v3254
      %vm3277 = vcmp.eq.s32.totalorder %v593, %v3254
      %vm3278 = vcmp.eq.s32.totalorder %v592, %v3257
      %vm3279 = vcmp.eq.s32.totalorder %v593, %v3257
      %vm3280 = vcmp.eq.s32.totalorder %v592, %v3260
      %vm3281 = vcmp.eq.s32.totalorder %v593, %v3260
      %vm3282 = vcmp.eq.s32.totalorder %v592, %v3263
      %vm3283 = vcmp.eq.s32.totalorder %v593, %v3263
      %vm3284 = vcmp.eq.s32.totalorder %v592, %v3266
      %vm3285 = vcmp.eq.s32.totalorder %v593, %v3266
      %vm3286 = vcmp.eq.s32.totalorder %v592, %v3269
      %vm3287 = vcmp.eq.s32.totalorder %v593, %v3269
      %vm3288 = vcmp.eq.s32.totalorder %v592, %v3272
      %vm3289 = vcmp.eq.s32.totalorder %v593, %v3272
      %vm3290 = vcmp.eq.s32.totalorder %v592, %v3275
      %vm3291 = vcmp.eq.s32.totalorder %v593, %v3275
      %3293 = vset.pattern.permute.xlu0 4
      %3294 = vperm.xlu0 %3293, %v3228
      %v3295 = vpop.permute.xlu0 %3294
      %3298 = vset.pattern.permute.xlu0 4
      %3299 = vperm.xlu0 %3298, %v3229
      %v3300 = vpop.permute.xlu0 %3299
      %3303 = vset.pattern.permute.xlu0 4
      %3304 = vperm.xlu0 %3303, %v3230
      %v3305 = vpop.permute.xlu0 %3304
      %3308 = vset.pattern.permute.xlu0 4
      %3309 = vperm.xlu0 %3308, %v3231
      %v3310 = vpop.permute.xlu0 %3309
      %3313 = vset.pattern.permute.xlu0 4
      %3314 = vperm.xlu0 %3313, %v3232
      %v3315 = vpop.permute.xlu0 %3314
      %3318 = vset.pattern.permute.xlu0 4
      %3319 = vperm.xlu0 %3318, %v3233
      %v3320 = vpop.permute.xlu0 %3319
      %3323 = vset.pattern.permute.xlu0 4
      %3324 = vperm.xlu0 %3323, %v3234
      %v3325 = vpop.permute.xlu0 %3324
      %3328 = vset.pattern.permute.xlu0 4
      %3329 = vperm.xlu0 %3328, %v3235
      %v3330 = vpop.permute.xlu0 %3329
      %v3332 = vsel %vm3276, %v3295, 0.0
      %v3333 = vsel %vm3277, %v3295, 0.0
      %v3334 = vsel %vm3278, %v3300, 0.0
      %v3335 = vsel %vm3279, %v3300, 0.0
      %v3336 = vsel %vm3280, %v3305, 0.0
      %v3337 = vsel %vm3281, %v3305, 0.0
      %v3338 = vsel %vm3282, %v3310, 0.0
      %v3339 = vsel %vm3283, %v3310, 0.0
      %v3340 = vsel %vm3284, %v3315, 0.0
      %v3341 = vsel %vm3285, %v3315, 0.0
      %v3342 = vsel %vm3286, %v3320, 0.0
      %v3343 = vsel %vm3287, %v3320, 0.0
      %v3344 = vsel %vm3288, %v3325, 0.0
      %v3345 = vsel %vm3289, %v3325, 0.0
      %v3346 = vsel %vm3290, %v3330, 0.0
      %v3347 = vsel %vm3291, %v3330, 0.0
      %v3348 = vadd.f32 %v3172, %v3332
      %v3349 = vadd.f32 %v3173, %v3333
      %v3350 = vadd.f32 %v3174, %v3334
      %v3351 = vadd.f32 %v3175, %v3335
      %v3352 = vadd.f32 %v3176, %v3336
      %v3353 = vadd.f32 %v3177, %v3337
      %v3354 = vadd.f32 %v3178, %v3338
      %v3355 = vadd.f32 %v3179, %v3339
      %v3356 = vadd.f32 %v3180, %v3340
      %v3357 = vadd.f32 %v3181, %v3341
      %v3358 = vadd.f32 %v3182, %v3342
      %v3359 = vadd.f32 %v3183, %v3343
      %v3360 = vadd.f32 %v3184, %v3344
      %v3361 = vadd.f32 %v3185, %v3345
      %v3362 = vadd.f32 %v3186, %v3346
      %v3363 = vadd.f32 %v3187, %v3347
      %vm3364 = vmand %vm3204, %vm1122
      %vm3365 = vmand %vm3205, %vm1123
      %vm3366 = vmand %vm3206, %vm1124
      %vm3367 = vmand %vm3207, %vm1125
      %vm3368 = vmand %vm3208, %vm1126
      %vm3369 = vmand %vm3209, %vm1127
      %vm3370 = vmand %vm3210, %vm1128
      %vm3371 = vmand %vm3211, %vm1129
      %vm3372 = vmand %vm3364, %vm1170
      %vm3373 = vmand %vm3365, %vm1171
      %vm3374 = vmand %vm3366, %vm1172
      %vm3375 = vmand %vm3367, %vm1173
      %vm3376 = vmand %vm3368, %vm1174
      %vm3377 = vmand %vm3369, %vm1175
      %vm3378 = vmand %vm3370, %vm1176
      %vm3379 = vmand %vm3371, %vm1177
      %v3380 = vsel %vm3372, %v2860, 0.0
      %v3381 = vsel %vm3373, %v2861, 0.0
      %v3382 = vsel %vm3374, %v2862, 0.0
      %v3383 = vsel %vm3375, %v2863, 0.0
      %v3384 = vsel %vm3376, %v2864, 0.0
      %v3385 = vsel %vm3377, %v2865, 0.0
      %v3386 = vsel %vm3378, %v2866, 0.0
      %v3387 = vsel %vm3379, %v2867, 0.0
      %v3388 = vadd.s32 %v3236, %v1195
      %v3389 = vadd.s32 %v3237, %v1197
      %v3390 = vadd.s32 %v3238, %v1199
      %v3391 = vadd.s32 %v3239, %v1201
      %v3392 = vadd.s32 %v3240, %v1203
      %v3393 = vadd.s32 %v3241, %v1205
      %v3394 = vadd.s32 %v3242, %v1207
      %v3395 = vadd.s32 %v3243, %v1209
      %3396 = vset.pattern.permute.xlu0 4
      %3397 = vperm.xlu0 %3396, %v3388
      %v3398 = vpop.permute.xlu0 %3397
      %3399 = vset.pattern.permute.xlu0 4
      %3400 = vperm.xlu0 %3399, %v3389
      %v3401 = vpop.permute.xlu0 %3400
      %3402 = vset.pattern.permute.xlu0 4
      %3403 = vperm.xlu0 %3402, %v3390
      %v3404 = vpop.permute.xlu0 %3403
      %3405 = vset.pattern.permute.xlu0 4
      %3406 = vperm.xlu0 %3405, %v3391
      %v3407 = vpop.permute.xlu0 %3406
      %3408 = vset.pattern.permute.xlu0 4
      %3409 = vperm.xlu0 %3408, %v3392
      %v3410 = vpop.permute.xlu0 %3409
      %3411 = vset.pattern.permute.xlu0 4
      %3412 = vperm.xlu0 %3411, %v3393
      %v3413 = vpop.permute.xlu0 %3412
      %3414 = vset.pattern.permute.xlu0 4
      %3415 = vperm.xlu0 %3414, %v3394
      %v3416 = vpop.permute.xlu0 %3415
      %3417 = vset.pattern.permute.xlu0 4
      %3418 = vperm.xlu0 %3417, %v3395
      %v3419 = vpop.permute.xlu0 %3418
      %vm3420 = vcmp.eq.s32.totalorder %v592, %v3398
      %vm3421 = vcmp.eq.s32.totalorder %v593, %v3398
      %vm3422 = vcmp.eq.s32.totalorder %v592, %v3401
      %vm3423 = vcmp.eq.s32.totalorder %v593, %v3401
      %vm3424 = vcmp.eq.s32.totalorder %v592, %v3404
      %vm3425 = vcmp.eq.s32.totalorder %v593, %v3404
      %vm3426 = vcmp.eq.s32.totalorder %v592, %v3407
      %vm3427 = vcmp.eq.s32.totalorder %v593, %v3407
      %vm3428 = vcmp.eq.s32.totalorder %v592, %v3410
      %vm3429 = vcmp.eq.s32.totalorder %v593, %v3410
      %vm3430 = vcmp.eq.s32.totalorder %v592, %v3413
      %vm3431 = vcmp.eq.s32.totalorder %v593, %v3413
      %vm3432 = vcmp.eq.s32.totalorder %v592, %v3416
      %vm3433 = vcmp.eq.s32.totalorder %v593, %v3416
      %vm3434 = vcmp.eq.s32.totalorder %v592, %v3419
      %vm3435 = vcmp.eq.s32.totalorder %v593, %v3419
      %3437 = vset.pattern.permute.xlu0 4
      %3438 = vperm.xlu0 %3437, %v3380
      %v3439 = vpop.permute.xlu0 %3438
      %3442 = vset.pattern.permute.xlu0 4
      %3443 = vperm.xlu0 %3442, %v3381
      %v3444 = vpop.permute.xlu0 %3443
      %3447 = vset.pattern.permute.xlu0 4
      %3448 = vperm.xlu0 %3447, %v3382
      %v3449 = vpop.permute.xlu0 %3448
      %3452 = vset.pattern.permute.xlu0 4
      %3453 = vperm.xlu0 %3452, %v3383
      %v3454 = vpop.permute.xlu0 %3453
      %3457 = vset.pattern.permute.xlu0 4
      %3458 = vperm.xlu0 %3457, %v3384
      %v3459 = vpop.permute.xlu0 %3458
      %3462 = vset.pattern.permute.xlu0 4
      %3463 = vperm.xlu0 %3462, %v3385
      %v3464 = vpop.permute.xlu0 %3463
      %3467 = vset.pattern.permute.xlu0 4
      %3468 = vperm.xlu0 %3467, %v3386
      %v3469 = vpop.permute.xlu0 %3468
      %3472 = vset.pattern.permute.xlu0 4
      %3473 = vperm.xlu0 %3472, %v3387
      %v3474 = vpop.permute.xlu0 %3473
      %v3476 = vsel %vm3420, %v3439, 0.0
      %v3477 = vsel %vm3421, %v3439, 0.0
      %v3478 = vsel %vm3422, %v3444, 0.0
      %v3479 = vsel %vm3423, %v3444, 0.0
      %v3480 = vsel %vm3424, %v3449, 0.0
      %v3481 = vsel %vm3425, %v3449, 0.0
      %v3482 = vsel %vm3426, %v3454, 0.0
      %v3483 = vsel %vm3427, %v3454, 0.0
      %v3484 = vsel %vm3428, %v3459, 0.0
      %v3485 = vsel %vm3429, %v3459, 0.0
      %v3486 = vsel %vm3430, %v3464, 0.0
      %v3487 = vsel %vm3431, %v3464, 0.0
      %v3488 = vsel %vm3432, %v3469, 0.0
      %v3489 = vsel %vm3433, %v3469, 0.0
      %v3490 = vsel %vm3434, %v3474, 0.0
      %v3491 = vsel %vm3435, %v3474, 0.0
      %v3492 = vadd.f32 %v3348, %v3476
      %v3493 = vadd.f32 %v3349, %v3477
      %v3494 = vadd.f32 %v3350, %v3478
      %v3495 = vadd.f32 %v3351, %v3479
      %v3496 = vadd.f32 %v3352, %v3480
      %v3497 = vadd.f32 %v3353, %v3481
      %v3498 = vadd.f32 %v3354, %v3482
      %v3499 = vadd.f32 %v3355, %v3483
      %v3500 = vadd.f32 %v3356, %v3484
      %v3501 = vadd.f32 %v3357, %v3485
      %v3502 = vadd.f32 %v3358, %v3486
      %v3503 = vadd.f32 %v3359, %v3487
      %v3504 = vadd.f32 %v3360, %v3488
      %v3505 = vadd.f32 %v3361, %v3489
      %v3506 = vadd.f32 %v3362, %v3490
      %v3507 = vadd.f32 %v3363, %v3491
      %3508 = vmatprep.subr.mxu0 0.0
      %3509 = vmatpush1.msra.mxu0 %v339
      %3510 = vmatprep.subr.mxu0 0.0
      %3511 = vmatpush1.msra.mxu0 %v340
      %3512 = vmatprep.subr.mxu0 0.0
      %3513 = vmatpush1.msra.mxu0 %v341
      %3514 = vmatprep.subr.mxu0 0.0
      %3515 = vmatpush1.msra.mxu0 %v342
      %3516 = vmatprep.subr.mxu0 0.0
      %3517 = vmatpush1.msra.mxu0 %v343
      %3518 = vmatprep.subr.mxu0 0.0
      %3519 = vmatpush1.msra.mxu0 %v344
      %3520 = vmatprep.subr.mxu0 0.0
      %3521 = vmatpush1.msra.mxu0 %v345
      %3522 = vmatprep.subr.mxu0 0.0
      %3523 = vmatpush1.msra.mxu0 %v346
      %3524 = vmatprep.subr.mxu0 0.0
      %3525 = vmatpush1.msra.mxu0 %v347
      %3526 = vmatprep.subr.mxu0 0.0
      %3527 = vmatpush1.msra.mxu0 %v348
      %3528 = vmatprep.subr.mxu0 0.0
      %3529 = vmatpush1.msra.mxu0 %v349
      %3530 = vmatprep.subr.mxu0 0.0
      %3531 = vmatpush1.msra.mxu0 %v350
      %3532 = vmatprep.subr.mxu0 0.0
      %3533 = vmatpush1.msra.mxu0 %v351
      %3534 = vmatprep.subr.mxu0 0.0
      %3535 = vmatpush1.msra.mxu0 %v352
      %3536 = vmatprep.subr.mxu0 0.0
      %3537 = vmatpush1.msra.mxu0 %v353
      %3538 = vmatprep.subr.mxu0 0.0
      %3539 = vmatpush1.msra.mxu0 %v354
      %3540 = vmatprep.subr.mxu0 0.0
      %3541 = vmatpush1.msra.mxu0 %v355
      %3542 = vmatprep.subr.mxu0 0.0
      %3543 = vmatpush1.msra.mxu0 %v356
      %3544 = vmatprep.subr.mxu0 0.0
      %3545 = vmatpush1.msra.mxu0 %v357
      %3546 = vmatprep.subr.mxu0 0.0
      %3547 = vmatpush1.msra.mxu0 %v358
      %3548 = vmatprep.subr.mxu0 0.0
      %3549 = vmatpush1.msra.mxu0 %v359
      %3550 = vmatprep.subr.mxu0 0.0
      %3551 = vmatpush1.msra.mxu0 %v360
      %3552 = vmatprep.subr.mxu0 0.0
      %3553 = vmatpush1.msra.mxu0 %v361
      %3554 = vmatprep.subr.mxu0 0.0
      %3555 = vmatpush1.msra.mxu0 %v362
      %3556 = vmatprep.subr.mxu0 0.0
      %3557 = vmatpush1.msra.mxu0 %v363
      %3558 = vmatprep.subr.mxu0 0.0
      %3559 = vmatpush1.msra.mxu0 %v364
      %3560 = vmatprep.subr.mxu0 0.0
      %3561 = vmatpush1.msra.mxu0 %v365
      %3562 = vmatprep.subr.mxu0 0.0
      %3563 = vmatpush1.msra.mxu0 %v366
      %3564 = vmatprep.subr.mxu0 0.0
      %3565 = vmatpush1.msra.mxu0 %v367
      %3566 = vmatprep.subr.mxu0 0.0
      %3567 = vmatpush1.msra.mxu0 %v368
      %3568 = vmatprep.subr.mxu0 0.0
      %3569 = vmatpush1.msra.mxu0 %v369
      %3570 = vmatprep.subr.mxu0 0.0
      %3571 = vmatpush1.msra.mxu0 %v370
      %3572 = vmatprep.mubr.f32.mxu0 %v3493
      %3573 = vmatmul.mubr.f32.gmra.mrb[0].mxu0 %v3492
      %v3574 = vpop.f32.mrb[0].mxu0
      %v3575 = vadd.f32 0.0, %v3574
      %v3576 = vpop.f32.mrb[0].mxu0
      %3577 = vmatprep.mubr.f32.mxu0 %v3495
      %3578 = vmatmul.mubr.f32.gmra.mrb[0].mxu0 %v3494
      %v3579 = vpop.f32.mrb[0].mxu0
      %v3580 = vadd.f32 0.0, %v3579
      %v3581 = vpop.f32.mrb[0].mxu0
      %3582 = vmatprep.mubr.f32.mxu0 %v3497
      %3583 = vmatmul.mubr.f32.gmra.mrb[0].mxu0 %v3496
      %v3584 = vpop.f32.mrb[0].mxu0
      %v3585 = vadd.f32 0.0, %v3584
      %v3586 = vpop.f32.mrb[0].mxu0
      %3587 = vmatprep.mubr.f32.mxu0 %v3499
      %3588 = vmatmul.mubr.f32.gmra.mrb[0].mxu0 %v3498
      %v3589 = vpop.f32.mrb[0].mxu0
      %v3590 = vadd.f32 0.0, %v3589
      %v3591 = vpop.f32.mrb[0].mxu0
      %3592 = vmatprep.mubr.f32.mxu0 %v3501
      %3593 = vmatmul.mubr.f32.gmra.mrb[0].mxu0 %v3500
      %v3594 = vpop.f32.mrb[0].mxu0
      %v3595 = vadd.f32 0.0, %v3594
      %v3596 = vpop.f32.mrb[0].mxu0
      %3597 = vmatprep.mubr.f32.mxu0 %v3503
      %3598 = vmatmul.mubr.f32.gmra.mrb[0].mxu0 %v3502
      %v3599 = vpop.f32.mrb[0].mxu0
      %v3600 = vadd.f32 0.0, %v3599
      %v3601 = vpop.f32.mrb[0].mxu0
      %3602 = vmatprep.mubr.f32.mxu0 %v3505
      %3603 = vmatmul.mubr.f32.gmra.mrb[0].mxu0 %v3504
      %v3604 = vpop.f32.mrb[0].mxu0
      %v3605 = vadd.f32 0.0, %v3604
      %v3606 = vpop.f32.mrb[0].mxu0
      %3607 = vmatprep.mubr.f32.mxu0 %v3507
      %3608 = vmatmul.mubr.f32.gmra.mrb[0].mxu0 %v3506
      %v3609 = vpop.f32.mrb[0].mxu0
      %v3610 = vadd.f32 0.0, %v3609
      %v3611 = vpop.f32.mrb[0].mxu0
      %3612 = vdwg.mxu0
      %v3613 = vmul.f32 %v2820, %v1812
      %v3614 = vmul.f32 %v2821, %v1814
      %v3615 = vmul.f32 %v2822, %v1816
      %v3616 = vmul.f32 %v2823, %v1818
      %v3617 = vmul.f32 %v2824, %v1820
      %v3618 = vmul.f32 %v2825, %v1822
      %v3619 = vmul.f32 %v2826, %v1824
      %v3620 = vmul.f32 %v2827, %v1826
      %v3621 = vmul.f32 %v2820, %v1860
      %v3622 = vmul.f32 %v2821, %v1862
      %v3623 = vmul.f32 %v2822, %v1864
      %v3624 = vmul.f32 %v2823, %v1866
      %v3625 = vmul.f32 %v2824, %v1868
      %v3626 = vmul.f32 %v2825, %v1870
      %v3627 = vmul.f32 %v2826, %v1872
      %v3628 = vmul.f32 %v2827, %v1874
      %v3629 = vmul.f32 %v2804, %v1812
      %v3630 = vmul.f32 %v2805, %v1814
      %v3631 = vmul.f32 %v2806, %v1816
      %v3632 = vmul.f32 %v2807, %v1818
      %v3633 = vmul.f32 %v2808, %v1820
      %v3634 = vmul.f32 %v2809, %v1822
      %v3635 = vmul.f32 %v2810, %v1824
      %v3636 = vmul.f32 %v2811, %v1826
      %v3637 = vmul.f32 %v2804, %v1860
      %v3638 = vmul.f32 %v2805, %v1862
      %v3639 = vmul.f32 %v2806, %v1864
      %v3640 = vmul.f32 %v2807, %v1866
      %v3641 = vmul.f32 %v2808, %v1868
      %v3642 = vmul.f32 %v2809, %v1870
      %v3643 = vmul.f32 %v2810, %v1872
      %v3644 = vmul.f32 %v2811, %v1874
      %vm3645 = vmand %vm2884, %vm1939
      %vm3646 = vmand %vm2885, %vm1940
      %vm3647 = vmand %vm2886, %vm1941
      %vm3648 = vmand %vm2887, %vm1942
      %vm3649 = vmand %vm2888, %vm1943
      %vm3650 = vmand %vm2889, %vm1944
      %vm3651 = vmand %vm2890, %vm1945
      %vm3652 = vmand %vm2891, %vm1946
      %vm3653 = vmand %vm3645, %vm1987
      %vm3654 = vmand %vm3646, %vm1988
      %vm3655 = vmand %vm3647, %vm1989
      %vm3656 = vmand %vm3648, %vm1990
      %vm3657 = vmand %vm3649, %vm1991
      %vm3658 = vmand %vm3650, %vm1992
      %vm3659 = vmand %vm3651, %vm1993
      %vm3660 = vmand %vm3652, %vm1994
      %v3661 = vsel %vm3653, %v3613, 0.0
      %v3662 = vsel %vm3654, %v3614, 0.0
      %v3663 = vsel %vm3655, %v3615, 0.0
      %v3664 = vsel %vm3656, %v3616, 0.0
      %v3665 = vsel %vm3657, %v3617, 0.0
      %v3666 = vsel %vm3658, %v3618, 0.0
      %v3667 = vsel %vm3659, %v3619, 0.0
      %v3668 = vsel %vm3660, %v3620, 0.0
      %v3669 = vadd.s32 %v2916, %v2012
      %v3670 = vadd.s32 %v2917, %v2014
      %v3671 = vadd.s32 %v2918, %v2016
      %v3672 = vadd.s32 %v2919, %v2018
      %v3673 = vadd.s32 %v2920, %v2020
      %v3674 = vadd.s32 %v2921, %v2022
      %v3675 = vadd.s32 %v2922, %v2024
      %v3676 = vadd.s32 %v2923, %v2026
      %3677 = vset.pattern.permute.xlu0 6
      %3678 = vperm.xlu0 %3677, %v3669
      %v3679 = vpop.permute.xlu0 %3678
      %3680 = vset.pattern.permute.xlu0 6
      %3681 = vperm.xlu0 %3680, %v3670
      %v3682 = vpop.permute.xlu0 %3681
      %3683 = vset.pattern.permute.xlu0 6
      %3684 = vperm.xlu0 %3683, %v3671
      %v3685 = vpop.permute.xlu0 %3684
      %3686 = vset.pattern.permute.xlu0 6
      %3687 = vperm.xlu0 %3686, %v3672
      %v3688 = vpop.permute.xlu0 %3687
      %3689 = vset.pattern.permute.xlu0 6
      %3690 = vperm.xlu0 %3689, %v3673
      %v3691 = vpop.permute.xlu0 %3690
      %3692 = vset.pattern.permute.xlu0 6
      %3693 = vperm.xlu0 %3692, %v3674
      %v3694 = vpop.permute.xlu0 %3693
      %3695 = vset.pattern.permute.xlu0 6
      %3696 = vperm.xlu0 %3695, %v3675
      %v3697 = vpop.permute.xlu0 %3696
      %3698 = vset.pattern.permute.xlu0 6
      %3699 = vperm.xlu0 %3698, %v3676
      %v3700 = vpop.permute.xlu0 %3699
      %vm3701 = vcmp.eq.s32.totalorder %v592, %v3679
      %vm3702 = vcmp.eq.s32.totalorder %v593, %v3679
      %vm3703 = vcmp.eq.s32.totalorder %v592, %v3682
      %vm3704 = vcmp.eq.s32.totalorder %v593, %v3682
      %vm3705 = vcmp.eq.s32.totalorder %v592, %v3685
      %vm3706 = vcmp.eq.s32.totalorder %v593, %v3685
      %vm3707 = vcmp.eq.s32.totalorder %v592, %v3688
      %vm3708 = vcmp.eq.s32.totalorder %v593, %v3688
      %vm3709 = vcmp.eq.s32.totalorder %v592, %v3691
      %vm3710 = vcmp.eq.s32.totalorder %v593, %v3691
      %vm3711 = vcmp.eq.s32.totalorder %v592, %v3694
      %vm3712 = vcmp.eq.s32.totalorder %v593, %v3694
      %vm3713 = vcmp.eq.s32.totalorder %v592, %v3697
      %vm3714 = vcmp.eq.s32.totalorder %v593, %v3697
      %vm3715 = vcmp.eq.s32.totalorder %v592, %v3700
      %vm3716 = vcmp.eq.s32.totalorder %v593, %v3700
      %3718 = vset.pattern.permute.xlu0 6
      %3719 = vperm.xlu0 %3718, %v3661
      %v3720 = vpop.permute.xlu0 %3719
      %3723 = vset.pattern.permute.xlu0 6
      %3724 = vperm.xlu0 %3723, %v3662
      %v3725 = vpop.permute.xlu0 %3724
      %3728 = vset.pattern.permute.xlu0 6
      %3729 = vperm.xlu0 %3728, %v3663
      %v3730 = vpop.permute.xlu0 %3729
      %3733 = vset.pattern.permute.xlu0 6
      %3734 = vperm.xlu0 %3733, %v3664
      %v3735 = vpop.permute.xlu0 %3734
      %3738 = vset.pattern.permute.xlu0 6
      %3739 = vperm.xlu0 %3738, %v3665
      %v3740 = vpop.permute.xlu0 %3739
      %3743 = vset.pattern.permute.xlu0 6
      %3744 = vperm.xlu0 %3743, %v3666
      %v3745 = vpop.permute.xlu0 %3744
      %3748 = vset.pattern.permute.xlu0 6
      %3749 = vperm.xlu0 %3748, %v3667
      %v3750 = vpop.permute.xlu0 %3749
      %3753 = vset.pattern.permute.xlu0 6
      %3754 = vperm.xlu0 %3753, %v3668
      %v3755 = vpop.permute.xlu0 %3754
      %v3757 = vsel %vm3701, %v3720, 0.0
      %v3758 = vsel %vm3702, %v3720, 0.0
      %v3759 = vsel %vm3703, %v3725, 0.0
      %v3760 = vsel %vm3704, %v3725, 0.0
      %v3761 = vsel %vm3705, %v3730, 0.0
      %v3762 = vsel %vm3706, %v3730, 0.0
      %v3763 = vsel %vm3707, %v3735, 0.0
      %v3764 = vsel %vm3708, %v3735, 0.0
      %v3765 = vsel %vm3709, %v3740, 0.0
      %v3766 = vsel %vm3710, %v3740, 0.0
      %v3767 = vsel %vm3711, %v3745, 0.0
      %v3768 = vsel %vm3712, %v3745, 0.0
      %v3769 = vsel %vm3713, %v3750, 0.0
      %v3770 = vsel %vm3714, %v3750, 0.0
      %v3771 = vsel %vm3715, %v3755, 0.0
      %v3772 = vsel %vm3716, %v3755, 0.0
      %v3773 = vadd.f32 %v3757, 0.0
      %v3774 = vadd.f32 %v3758, 0.0
      %v3775 = vadd.f32 %v3759, 0.0
      %v3776 = vadd.f32 %v3760, 0.0
      %v3777 = vadd.f32 %v3761, 0.0
      %v3778 = vadd.f32 %v3762, 0.0
      %v3779 = vadd.f32 %v3763, 0.0
      %v3780 = vadd.f32 %v3764, 0.0
      %v3781 = vadd.f32 %v3765, 0.0
      %v3782 = vadd.f32 %v3766, 0.0
      %v3783 = vadd.f32 %v3767, 0.0
      %v3784 = vadd.f32 %v3768, 0.0
      %v3785 = vadd.f32 %v3769, 0.0
      %v3786 = vadd.f32 %v3770, 0.0
      %v3787 = vadd.f32 %v3771, 0.0
      %v3788 = vadd.f32 %v3772, 0.0
      %vm3789 = vmand %vm2884, %vm2179
      %vm3790 = vmand %vm2885, %vm2180
      %vm3791 = vmand %vm2886, %vm2181
      %vm3792 = vmand %vm2887, %vm2182
      %vm3793 = vmand %vm2888, %vm2183
      %vm3794 = vmand %vm2889, %vm2184
      %vm3795 = vmand %vm2890, %vm2185
      %vm3796 = vmand %vm2891, %vm2186
      %vm3797 = vmand %vm3789, %vm2227
      %vm3798 = vmand %vm3790, %vm2228
      %vm3799 = vmand %vm3791, %vm2229
      %vm3800 = vmand %vm3792, %vm2230
      %vm3801 = vmand %vm3793, %vm2231
      %vm3802 = vmand %vm3794, %vm2232
      %vm3803 = vmand %vm3795, %vm2233
      %vm3804 = vmand %vm3796, %vm2234
      %v3805 = vsel %vm3797, %v3621, 0.0
      %v3806 = vsel %vm3798, %v3622, 0.0
      %v3807 = vsel %vm3799, %v3623, 0.0
      %v3808 = vsel %vm3800, %v3624, 0.0
      %v3809 = vsel %vm3801, %v3625, 0.0
      %v3810 = vsel %vm3802, %v3626, 0.0
      %v3811 = vsel %vm3803, %v3627, 0.0
      %v3812 = vsel %vm3804, %v3628, 0.0
      %v3813 = vadd.s32 %v2916, %v2252
      %v3814 = vadd.s32 %v2917, %v2254
      %v3815 = vadd.s32 %v2918, %v2256
      %v3816 = vadd.s32 %v2919, %v2258
      %v3817 = vadd.s32 %v2920, %v2260
      %v3818 = vadd.s32 %v2921, %v2262
      %v3819 = vadd.s32 %v2922, %v2264
      %v3820 = vadd.s32 %v2923, %v2266
      %3821 = vset.pattern.permute.xlu0 6
      %3822 = vperm.xlu0 %3821, %v3813
      %v3823 = vpop.permute.xlu0 %3822
      %3824 = vset.pattern.permute.xlu0 6
      %3825 = vperm.xlu0 %3824, %v3814
      %v3826 = vpop.permute.xlu0 %3825
      %3827 = vset.pattern.permute.xlu0 6
      %3828 = vperm.xlu0 %3827, %v3815
      %v3829 = vpop.permute.xlu0 %3828
      %3830 = vset.pattern.permute.xlu0 6
      %3831 = vperm.xlu0 %3830, %v3816
      %v3832 = vpop.permute.xlu0 %3831
      %3833 = vset.pattern.permute.xlu0 6
      %3834 = vperm.xlu0 %3833, %v3817
      %v3835 = vpop.permute.xlu0 %3834
      %3836 = vset.pattern.permute.xlu0 6
      %3837 = vperm.xlu0 %3836, %v3818
      %v3838 = vpop.permute.xlu0 %3837
      %3839 = vset.pattern.permute.xlu0 6
      %3840 = vperm.xlu0 %3839, %v3819
      %v3841 = vpop.permute.xlu0 %3840
      %3842 = vset.pattern.permute.xlu0 6
      %3843 = vperm.xlu0 %3842, %v3820
      %v3844 = vpop.permute.xlu0 %3843
      %vm3845 = vcmp.eq.s32.totalorder %v592, %v3823
      %vm3846 = vcmp.eq.s32.totalorder %v593, %v3823
      %vm3847 = vcmp.eq.s32.totalorder %v592, %v3826
      %vm3848 = vcmp.eq.s32.totalorder %v593, %v3826
      %vm3849 = vcmp.eq.s32.totalorder %v592, %v3829
      %vm3850 = vcmp.eq.s32.totalorder %v593, %v3829
      %vm3851 = vcmp.eq.s32.totalorder %v592, %v3832
      %vm3852 = vcmp.eq.s32.totalorder %v593, %v3832
      %vm3853 = vcmp.eq.s32.totalorder %v592, %v3835
      %vm3854 = vcmp.eq.s32.totalorder %v593, %v3835
      %vm3855 = vcmp.eq.s32.totalorder %v592, %v3838
      %vm3856 = vcmp.eq.s32.totalorder %v593, %v3838
      %vm3857 = vcmp.eq.s32.totalorder %v592, %v3841
      %vm3858 = vcmp.eq.s32.totalorder %v593, %v3841
      %vm3859 = vcmp.eq.s32.totalorder %v592, %v3844
      %vm3860 = vcmp.eq.s32.totalorder %v593, %v3844
      %3862 = vset.pattern.permute.xlu0 6
      %3863 = vperm.xlu0 %3862, %v3805
      %v3864 = vpop.permute.xlu0 %3863
      %3867 = vset.pattern.permute.xlu0 6
      %3868 = vperm.xlu0 %3867, %v3806
      %v3869 = vpop.permute.xlu0 %3868
      %3872 = vset.pattern.permute.xlu0 6
      %3873 = vperm.xlu0 %3872, %v3807
      %v3874 = vpop.permute.xlu0 %3873
      %3877 = vset.pattern.permute.xlu0 6
      %3878 = vperm.xlu0 %3877, %v3808
      %v3879 = vpop.permute.xlu0 %3878
      %3882 = vset.pattern.permute.xlu0 6
      %3883 = vperm.xlu0 %3882, %v3809
      %v3884 = vpop.permute.xlu0 %3883
      %3887 = vset.pattern.permute.xlu0 6
      %3888 = vperm.xlu0 %3887, %v3810
      %v3889 = vpop.permute.xlu0 %3888
      %3892 = vset.pattern.permute.xlu0 6
      %3893 = vperm.xlu0 %3892, %v3811
      %v3894 = vpop.permute.xlu0 %3893
      %3897 = vset.pattern.permute.xlu0 6
      %3898 = vperm.xlu0 %3897, %v3812
      %v3899 = vpop.permute.xlu0 %3898
      %v3901 = vsel %vm3845, %v3864, 0.0
      %v3902 = vsel %vm3846, %v3864, 0.0
      %v3903 = vsel %vm3847, %v3869, 0.0
      %v3904 = vsel %vm3848, %v3869, 0.0
      %v3905 = vsel %vm3849, %v3874, 0.0
      %v3906 = vsel %vm3850, %v3874, 0.0
      %v3907 = vsel %vm3851, %v3879, 0.0
      %v3908 = vsel %vm3852, %v3879, 0.0
      %v3909 = vsel %vm3853, %v3884, 0.0
      %v3910 = vsel %vm3854, %v3884, 0.0
      %v3911 = vsel %vm3855, %v3889, 0.0
      %v3912 = vsel %vm3856, %v3889, 0.0
      %v3913 = vsel %vm3857, %v3894, 0.0
      %v3914 = vsel %vm3858, %v3894, 0.0
      %v3915 = vsel %vm3859, %v3899, 0.0
      %v3916 = vsel %vm3860, %v3899, 0.0
      %v3917 = vadd.f32 %v3773, %v3901
      %v3918 = vadd.f32 %v3774, %v3902
      %v3919 = vadd.f32 %v3775, %v3903
      %v3920 = vadd.f32 %v3776, %v3904
      %v3921 = vadd.f32 %v3777, %v3905
      %v3922 = vadd.f32 %v3778, %v3906
      %v3923 = vadd.f32 %v3779, %v3907
      %v3924 = vadd.f32 %v3780, %v3908
      %v3925 = vadd.f32 %v3781, %v3909
      %v3926 = vadd.f32 %v3782, %v3910
      %v3927 = vadd.f32 %v3783, %v3911
      %v3928 = vadd.f32 %v3784, %v3912
      %v3929 = vadd.f32 %v3785, %v3913
      %v3930 = vadd.f32 %v3786, %v3914
      %v3931 = vadd.f32 %v3787, %v3915
      %v3932 = vadd.f32 %v3788, %v3916
      %vm3933 = vmand %vm3204, %vm1939
      %vm3934 = vmand %vm3205, %vm1940
      %vm3935 = vmand %vm3206, %vm1941
      %vm3936 = vmand %vm3207, %vm1942
      %vm3937 = vmand %vm3208, %vm1943
      %vm3938 = vmand %vm3209, %vm1944
      %vm3939 = vmand %vm3210, %vm1945
      %vm3940 = vmand %vm3211, %vm1946
      %vm3941 = vmand %vm3933, %vm1987
      %vm3942 = vmand %vm3934, %vm1988
      %vm3943 = vmand %vm3935, %vm1989
      %vm3944 = vmand %vm3936, %vm1990
      %vm3945 = vmand %vm3937, %vm1991
      %vm3946 = vmand %vm3938, %vm1992
      %vm3947 = vmand %vm3939, %vm1993
      %vm3948 = vmand %vm3940, %vm1994
      %v3949 = vsel %vm3941, %v3629, 0.0
      %v3950 = vsel %vm3942, %v3630, 0.0
      %v3951 = vsel %vm3943, %v3631, 0.0
      %v3952 = vsel %vm3944, %v3632, 0.0
      %v3953 = vsel %vm3945, %v3633, 0.0
      %v3954 = vsel %vm3946, %v3634, 0.0
      %v3955 = vsel %vm3947, %v3635, 0.0
      %v3956 = vsel %vm3948, %v3636, 0.0
      %v3957 = vadd.s32 %v3236, %v2012
      %v3958 = vadd.s32 %v3237, %v2014
      %v3959 = vadd.s32 %v3238, %v2016
      %v3960 = vadd.s32 %v3239, %v2018
      %v3961 = vadd.s32 %v3240, %v2020
      %v3962 = vadd.s32 %v3241, %v2022
      %v3963 = vadd.s32 %v3242, %v2024
      %v3964 = vadd.s32 %v3243, %v2026
      %3965 = vset.pattern.permute.xlu0 6
      %3966 = vperm.xlu0 %3965, %v3957
      %v3967 = vpop.permute.xlu0 %3966
      %3968 = vset.pattern.permute.xlu0 6
      %3969 = vperm.xlu0 %3968, %v3958
      %v3970 = vpop.permute.xlu0 %3969
      %3971 = vset.pattern.permute.xlu0 6
      %3972 = vperm.xlu0 %3971, %v3959
      %v3973 = vpop.permute.xlu0 %3972
      %3974 = vset.pattern.permute.xlu0 6
      %3975 = vperm.xlu0 %3974, %v3960
      %v3976 = vpop.permute.xlu0 %3975
      %3977 = vset.pattern.permute.xlu0 6
      %3978 = vperm.xlu0 %3977, %v3961
      %v3979 = vpop.permute.xlu0 %3978
      %3980 = vset.pattern.permute.xlu0 6
      %3981 = vperm.xlu0 %3980, %v3962
      %v3982 = vpop.permute.xlu0 %3981
      %3983 = vset.pattern.permute.xlu0 6
      %3984 = vperm.xlu0 %3983, %v3963
      %v3985 = vpop.permute.xlu0 %3984
      %3986 = vset.pattern.permute.xlu0 6
      %3987 = vperm.xlu0 %3986, %v3964
      %v3988 = vpop.permute.xlu0 %3987
      %vm3989 = vcmp.eq.s32.totalorder %v592, %v3967
      %vm3990 = vcmp.eq.s32.totalorder %v593, %v3967
      %vm3991 = vcmp.eq.s32.totalorder %v592, %v3970
      %vm3992 = vcmp.eq.s32.totalorder %v593, %v3970
      %vm3993 = vcmp.eq.s32.totalorder %v592, %v3973
      %vm3994 = vcmp.eq.s32.totalorder %v593, %v3973
      %vm3995 = vcmp.eq.s32.totalorder %v592, %v3976
      %vm3996 = vcmp.eq.s32.totalorder %v593, %v3976
      %vm3997 = vcmp.eq.s32.totalorder %v592, %v3979
      %vm3998 = vcmp.eq.s32.totalorder %v593, %v3979
      %vm3999 = vcmp.eq.s32.totalorder %v592, %v3982
      %vm4000 = vcmp.eq.s32.totalorder %v593, %v3982
      %vm4001 = vcmp.eq.s32.totalorder %v592, %v3985
      %vm4002 = vcmp.eq.s32.totalorder %v593, %v3985
      %vm4003 = vcmp.eq.s32.totalorder %v592, %v3988
      %vm4004 = vcmp.eq.s32.totalorder %v593, %v3988
      %4006 = vset.pattern.permute.xlu0 6
      %4007 = vperm.xlu0 %4006, %v3949
      %v4008 = vpop.permute.xlu0 %4007
      %4011 = vset.pattern.permute.xlu0 6
      %4012 = vperm.xlu0 %4011, %v3950
      %v4013 = vpop.permute.xlu0 %4012
      %4016 = vset.pattern.permute.xlu0 6
      %4017 = vperm.xlu0 %4016, %v3951
      %v4018 = vpop.permute.xlu0 %4017
      %4021 = vset.pattern.permute.xlu0 6
      %4022 = vperm.xlu0 %4021, %v3952
      %v4023 = vpop.permute.xlu0 %4022
      %4026 = vset.pattern.permute.xlu0 6
      %4027 = vperm.xlu0 %4026, %v3953
      %v4028 = vpop.permute.xlu0 %4027
      %4031 = vset.pattern.permute.xlu0 6
      %4032 = vperm.xlu0 %4031, %v3954
      %v4033 = vpop.permute.xlu0 %4032
      %4036 = vset.pattern.permute.xlu0 6
      %4037 = vperm.xlu0 %4036, %v3955
      %v4038 = vpop.permute.xlu0 %4037
      %4041 = vset.pattern.permute.xlu0 6
      %4042 = vperm.xlu0 %4041, %v3956
      %v4043 = vpop.permute.xlu0 %4042
      %v4045 = vsel %vm3989, %v4008, 0.0
      %v4046 = vsel %vm3990, %v4008, 0.0
      %v4047 = vsel %vm3991, %v4013, 0.0
      %v4048 = vsel %vm3992, %v4013, 0.0
      %v4049 = vsel %vm3993, %v4018, 0.0
      %v4050 = vsel %vm3994, %v4018, 0.0
      %v4051 = vsel %vm3995, %v4023, 0.0
      %v4052 = vsel %vm3996, %v4023, 0.0
      %v4053 = vsel %vm3997, %v4028, 0.0
      %v4054 = vsel %vm3998, %v4028, 0.0
      %v4055 = vsel %vm3999, %v4033, 0.0
      %v4056 = vsel %vm4000, %v4033, 0.0
      %v4057 = vsel %vm4001, %v4038, 0.0
      %v4058 = vsel %vm4002, %v4038, 0.0
      %v4059 = vsel %vm4003, %v4043, 0.0
      %v4060 = vsel %vm4004, %v4043, 0.0
      %v4061 = vadd.f32 %v3917, %v4045
      %v4062 = vadd.f32 %v3918, %v4046
      %v4063 = vadd.f32 %v3919, %v4047
      %v4064 = vadd.f32 %v3920, %v4048
      %v4065 = vadd.f32 %v3921, %v4049
      %v4066 = vadd.f32 %v3922, %v4050
      %v4067 = vadd.f32 %v3923, %v4051
      %v4068 = vadd.f32 %v3924, %v4052
      %v4069 = vadd.f32 %v3925, %v4053
      %v4070 = vadd.f32 %v3926, %v4054
      %v4071 = vadd.f32 %v3927, %v4055
      %v4072 = vadd.f32 %v3928, %v4056
      %v4073 = vadd.f32 %v3929, %v4057
      %v4074 = vadd.f32 %v3930, %v4058
      %v4075 = vadd.f32 %v3931, %v4059
      %v4076 = vadd.f32 %v3932, %v4060
      %vm4077 = vmand %vm3204, %vm2179
      %vm4078 = vmand %vm3205, %vm2180
      %vm4079 = vmand %vm3206, %vm2181
      %vm4080 = vmand %vm3207, %vm2182
      %vm4081 = vmand %vm3208, %vm2183
      %vm4082 = vmand %vm3209, %vm2184
      %vm4083 = vmand %vm3210, %vm2185
      %vm4084 = vmand %vm3211, %vm2186
      %vm4085 = vmand %vm4077, %vm2227
      %vm4086 = vmand %vm4078, %vm2228
      %vm4087 = vmand %vm4079, %vm2229
      %vm4088 = vmand %vm4080, %vm2230
      %vm4089 = vmand %vm4081, %vm2231
      %vm4090 = vmand %vm4082, %vm2232
      %vm4091 = vmand %vm4083, %vm2233
      %vm4092 = vmand %vm4084, %vm2234
      %v4093 = vsel %vm4085, %v3637, 0.0
      %v4094 = vsel %vm4086, %v3638, 0.0
      %v4095 = vsel %vm4087, %v3639, 0.0
      %v4096 = vsel %vm4088, %v3640, 0.0
      %v4097 = vsel %vm4089, %v3641, 0.0
      %v4098 = vsel %vm4090, %v3642, 0.0
      %v4099 = vsel %vm4091, %v3643, 0.0
      %v4100 = vsel %vm4092, %v3644, 0.0
      %v4101 = vadd.s32 %v3236, %v2252
      %v4102 = vadd.s32 %v3237, %v2254
      %v4103 = vadd.s32 %v3238, %v2256
      %v4104 = vadd.s32 %v3239, %v2258
      %v4105 = vadd.s32 %v3240, %v2260
      %v4106 = vadd.s32 %v3241, %v2262
      %v4107 = vadd.s32 %v3242, %v2264
      %v4108 = vadd.s32 %v3243, %v2266
      %4109 = vset.pattern.permute.xlu0 6
      %4110 = vperm.xlu0 %4109, %v4101
      %v4111 = vpop.permute.xlu0 %4110
      %4112 = vset.pattern.permute.xlu0 6
      %4113 = vperm.xlu0 %4112, %v4102
      %v4114 = vpop.permute.xlu0 %4113
      %4115 = vset.pattern.permute.xlu0 6
      %4116 = vperm.xlu0 %4115, %v4103
      %v4117 = vpop.permute.xlu0 %4116
      %4118 = vset.pattern.permute.xlu0 6
      %4119 = vperm.xlu0 %4118, %v4104
      %v4120 = vpop.permute.xlu0 %4119
      %4121 = vset.pattern.permute.xlu0 6
      %4122 = vperm.xlu0 %4121, %v4105
      %v4123 = vpop.permute.xlu0 %4122
      %4124 = vset.pattern.permute.xlu0 6
      %4125 = vperm.xlu0 %4124, %v4106
      %v4126 = vpop.permute.xlu0 %4125
      %4127 = vset.pattern.permute.xlu0 6
      %4128 = vperm.xlu0 %4127, %v4107
      %v4129 = vpop.permute.xlu0 %4128
      %4130 = vset.pattern.permute.xlu0 6
      %4131 = vperm.xlu0 %4130, %v4108
      %v4132 = vpop.permute.xlu0 %4131
      %vm4133 = vcmp.eq.s32.totalorder %v592, %v4111
      %vm4134 = vcmp.eq.s32.totalorder %v593, %v4111
      %vm4135 = vcmp.eq.s32.totalorder %v592, %v4114
      %vm4136 = vcmp.eq.s32.totalorder %v593, %v4114
      %vm4137 = vcmp.eq.s32.totalorder %v592, %v4117
      %vm4138 = vcmp.eq.s32.totalorder %v593, %v4117
      %vm4139 = vcmp.eq.s32.totalorder %v592, %v4120
      %vm4140 = vcmp.eq.s32.totalorder %v593, %v4120
      %vm4141 = vcmp.eq.s32.totalorder %v592, %v4123
      %vm4142 = vcmp.eq.s32.totalorder %v593, %v4123
      %vm4143 = vcmp.eq.s32.totalorder %v592, %v4126
      %vm4144 = vcmp.eq.s32.totalorder %v593, %v4126
      %vm4145 = vcmp.eq.s32.totalorder %v592, %v4129
      %vm4146 = vcmp.eq.s32.totalorder %v593, %v4129
      %vm4147 = vcmp.eq.s32.totalorder %v592, %v4132
      %vm4148 = vcmp.eq.s32.totalorder %v593, %v4132
      %4150 = vset.pattern.permute.xlu0 6
      %4151 = vperm.xlu0 %4150, %v4093
      %v4152 = vpop.permute.xlu0 %4151
      %4155 = vset.pattern.permute.xlu0 6
      %4156 = vperm.xlu0 %4155, %v4094
      %v4157 = vpop.permute.xlu0 %4156
      %4160 = vset.pattern.permute.xlu0 6
      %4161 = vperm.xlu0 %4160, %v4095
      %v4162 = vpop.permute.xlu0 %4161
      %4165 = vset.pattern.permute.xlu0 6
      %4166 = vperm.xlu0 %4165, %v4096
      %v4167 = vpop.permute.xlu0 %4166
      %4170 = vset.pattern.permute.xlu0 6
      %4171 = vperm.xlu0 %4170, %v4097
      %v4172 = vpop.permute.xlu0 %4171
      %4175 = vset.pattern.permute.xlu0 6
      %4176 = vperm.xlu0 %4175, %v4098
      %v4177 = vpop.permute.xlu0 %4176
      %4180 = vset.pattern.permute.xlu0 6
      %4181 = vperm.xlu0 %4180, %v4099
      %v4182 = vpop.permute.xlu0 %4181
      %4185 = vset.pattern.permute.xlu0 6
      %4186 = vperm.xlu0 %4185, %v4100
      %v4187 = vpop.permute.xlu0 %4186
      %v4189 = vsel %vm4133, %v4152, 0.0
      %v4190 = vsel %vm4134, %v4152, 0.0
      %v4191 = vsel %vm4135, %v4157, 0.0
      %v4192 = vsel %vm4136, %v4157, 0.0
      %v4193 = vsel %vm4137, %v4162, 0.0
      %v4194 = vsel %vm4138, %v4162, 0.0
      %v4195 = vsel %vm4139, %v4167, 0.0
      %v4196 = vsel %vm4140, %v4167, 0.0
      %v4197 = vsel %vm4141, %v4172, 0.0
      %v4198 = vsel %vm4142, %v4172, 0.0
      %v4199 = vsel %vm4143, %v4177, 0.0
      %v4200 = vsel %vm4144, %v4177, 0.0
      %v4201 = vsel %vm4145, %v4182, 0.0
      %v4202 = vsel %vm4146, %v4182, 0.0
      %v4203 = vsel %vm4147, %v4187, 0.0
      %v4204 = vsel %vm4148, %v4187, 0.0
      %v4205 = vadd.f32 %v4061, %v4189
      %v4206 = vadd.f32 %v4062, %v4190
      %v4207 = vadd.f32 %v4063, %v4191
      %v4208 = vadd.f32 %v4064, %v4192
      %v4209 = vadd.f32 %v4065, %v4193
      %v4210 = vadd.f32 %v4066, %v4194
      %v4211 = vadd.f32 %v4067, %v4195
      %v4212 = vadd.f32 %v4068, %v4196
      %v4213 = vadd.f32 %v4069, %v4197
      %v4214 = vadd.f32 %v4070, %v4198
      %v4215 = vadd.f32 %v4071, %v4199
      %v4216 = vadd.f32 %v4072, %v4200
      %v4217 = vadd.f32 %v4073, %v4201
      %v4218 = vadd.f32 %v4074, %v4202
      %v4219 = vadd.f32 %v4075, %v4203
      %v4220 = vadd.f32 %v4076, %v4204
      %4221 = vmatprep.subr.mxu0 0.0
      %4222 = vmatpush1.msra.mxu0 %v339
      %4223 = vmatprep.subr.mxu0 0.0
      %4224 = vmatpush1.msra.mxu0 %v340
      %4225 = vmatprep.subr.mxu0 0.0
      %4226 = vmatpush1.msra.mxu0 %v341
      %4227 = vmatprep.subr.mxu0 0.0
      %4228 = vmatpush1.msra.mxu0 %v342
      %4229 = vmatprep.subr.mxu0 0.0
      %4230 = vmatpush1.msra.mxu0 %v343
      %4231 = vmatprep.subr.mxu0 0.0
      %4232 = vmatpush1.msra.mxu0 %v344
      %4233 = vmatprep.subr.mxu0 0.0
      %4234 = vmatpush1.msra.mxu0 %v345
      %4235 = vmatprep.subr.mxu0 0.0
      %4236 = vmatpush1.msra.mxu0 %v346
      %4237 = vmatprep.subr.mxu0 0.0
      %4238 = vmatpush1.msra.mxu0 %v347
      %4239 = vmatprep.subr.mxu0 0.0
      %4240 = vmatpush1.msra.mxu0 %v348
      %4241 = vmatprep.subr.mxu0 0.0
      %4242 = vmatpush1.msra.mxu0 %v349
      %4243 = vmatprep.subr.mxu0 0.0
      %4244 = vmatpush1.msra.mxu0 %v350
      %4245 = vmatprep.subr.mxu0 0.0
      %4246 = vmatpush1.msra.mxu0 %v351
      %4247 = vmatprep.subr.mxu0 0.0
      %4248 = vmatpush1.msra.mxu0 %v352
      %4249 = vmatprep.subr.mxu0 0.0
      %4250 = vmatpush1.msra.mxu0 %v353
      %4251 = vmatprep.subr.mxu0 0.0
      %4252 = vmatpush1.msra.mxu0 %v354
      %4253 = vmatprep.subr.mxu0 0.0
      %4254 = vmatpush1.msra.mxu0 %v355
      %4255 = vmatprep.subr.mxu0 0.0
      %4256 = vmatpush1.msra.mxu0 %v356
      %4257 = vmatprep.subr.mxu0 0.0
      %4258 = vmatpush1.msra.mxu0 %v357
      %4259 = vmatprep.subr.mxu0 0.0
      %4260 = vmatpush1.msra.mxu0 %v358
      %4261 = vmatprep.subr.mxu0 0.0
      %4262 = vmatpush1.msra.mxu0 %v359
      %4263 = vmatprep.subr.mxu0 0.0
      %4264 = vmatpush1.msra.mxu0 %v360
      %4265 = vmatprep.subr.mxu0 0.0
      %4266 = vmatpush1.msra.mxu0 %v361
      %4267 = vmatprep.subr.mxu0 0.0
      %4268 = vmatpush1.msra.mxu0 %v362
      %4269 = vmatprep.subr.mxu0 0.0
      %4270 = vmatpush1.msra.mxu0 %v363
      %4271 = vmatprep.subr.mxu0 0.0
      %4272 = vmatpush1.msra.mxu0 %v364
      %4273 = vmatprep.subr.mxu0 0.0
      %4274 = vmatpush1.msra.mxu0 %v365
      %4275 = vmatprep.subr.mxu0 0.0
      %4276 = vmatpush1.msra.mxu0 %v366
      %4277 = vmatprep.subr.mxu0 0.0
      %4278 = vmatpush1.msra.mxu0 %v367
      %4279 = vmatprep.subr.mxu0 0.0
      %4280 = vmatpush1.msra.mxu0 %v368
      %4281 = vmatprep.subr.mxu0 0.0
      %4282 = vmatpush1.msra.mxu0 %v369
      %4283 = vmatprep.subr.mxu0 0.0
      %4284 = vmatpush1.msra.mxu0 %v370
      %4285 = vmatprep.mubr.f32.mxu0 %v4206
      %4286 = vmatmul.mubr.f32.gmra.mrb[0].mxu0 %v4205
      %v4287 = vpop.f32.mrb[0].mxu0
      %v4288 = vadd.f32 0.0, %v4287
      %v4289 = vpop.f32.mrb[0].mxu0
      %4290 = vmatprep.mubr.f32.mxu0 %v4208
      %4291 = vmatmul.mubr.f32.gmra.mrb[0].mxu0 %v4207
      %v4292 = vpop.f32.mrb[0].mxu0
      %v4293 = vadd.f32 0.0, %v4292
      %v4294 = vpop.f32.mrb[0].mxu0
      %4295 = vmatprep.mubr.f32.mxu0 %v4210
      %4296 = vmatmul.mubr.f32.gmra.mrb[0].mxu0 %v4209
      %v4297 = vpop.f32.mrb[0].mxu0
      %v4298 = vadd.f32 0.0, %v4297
      %v4299 = vpop.f32.mrb[0].mxu0
      %4300 = vmatprep.mubr.f32.mxu0 %v4212
      %4301 = vmatmul.mubr.f32.gmra.mrb[0].mxu0 %v4211
      %v4302 = vpop.f32.mrb[0].mxu0
      %v4303 = vadd.f32 0.0, %v4302
      %v4304 = vpop.f32.mrb[0].mxu0
      %4305 = vmatprep.mubr.f32.mxu0 %v4214
      %4306 = vmatmul.mubr.f32.gmra.mrb[0].mxu0 %v4213
      %v4307 = vpop.f32.mrb[0].mxu0
      %v4308 = vadd.f32 0.0, %v4307
      %v4309 = vpop.f32.mrb[0].mxu0
      %4310 = vmatprep.mubr.f32.mxu0 %v4216
      %4311 = vmatmul.mubr.f32.gmra.mrb[0].mxu0 %v4215
      %v4312 = vpop.f32.mrb[0].mxu0
      %v4313 = vadd.f32 0.0, %v4312
      %v4314 = vpop.f32.mrb[0].mxu0
      %4315 = vmatprep.mubr.f32.mxu0 %v4218
      %4316 = vmatmul.mubr.f32.gmra.mrb[0].mxu0 %v4217
      %v4317 = vpop.f32.mrb[0].mxu0
      %v4318 = vadd.f32 0.0, %v4317
      %v4319 = vpop.f32.mrb[0].mxu0
      %4320 = vmatprep.mubr.f32.mxu0 %v4220
      %4321 = vmatmul.mubr.f32.gmra.mrb[0].mxu0 %v4219
      %v4322 = vpop.f32.mrb[0].mxu0
      %v4323 = vadd.f32 0.0, %v4322
      %v4324 = vpop.f32.mrb[0].mxu0
      %4325 = vdwg.mxu0
      %4334 = vrot.lane.b32.xlu0 %v2742, 16
      %v4335 = vpop.permute.xlu0 %4334
      %4336 = vrot.lane.b32.xlu0 %v2747, 16
      %v4337 = vpop.permute.xlu0 %4336
      %4338 = vrot.lane.b32.xlu0 %v2752, 16
      %v4339 = vpop.permute.xlu0 %4338
      %4340 = vrot.lane.b32.xlu0 %v2757, 16
      %v4341 = vpop.permute.xlu0 %4340
      %4342 = vrot.lane.b32.xlu0 %v2762, 16
      %v4343 = vpop.permute.xlu0 %4342
      %4344 = vrot.lane.b32.xlu0 %v2767, 16
      %v4345 = vpop.permute.xlu0 %4344
      %4346 = vrot.lane.b32.xlu0 %v2772, 16
      %v4347 = vpop.permute.xlu0 %4346
      %4348 = vrot.lane.b32.xlu0 %v2777, 16
      %v4349 = vpop.permute.xlu0 %4348
      %4366 = vrot.lane.b32.xlu0 %v3575, 32
      %v4367 = vpop.permute.xlu0 %4366
      %4368 = vrot.lane.b32.xlu0 %v3580, 32
      %v4369 = vpop.permute.xlu0 %4368
      %4370 = vrot.lane.b32.xlu0 %v3585, 32
      %v4371 = vpop.permute.xlu0 %4370
      %4372 = vrot.lane.b32.xlu0 %v3590, 32
      %v4373 = vpop.permute.xlu0 %4372
      %4374 = vrot.lane.b32.xlu0 %v3595, 32
      %v4375 = vpop.permute.xlu0 %4374
      %4376 = vrot.lane.b32.xlu0 %v3600, 32
      %v4377 = vpop.permute.xlu0 %4376
      %4378 = vrot.lane.b32.xlu0 %v3605, 32
      %v4379 = vpop.permute.xlu0 %4378
      %4380 = vrot.lane.b32.xlu0 %v3610, 32
      %v4381 = vpop.permute.xlu0 %4380
      %4398 = vrot.lane.b32.xlu0 %v4288, 48
      %v4399 = vpop.permute.xlu0 %4398
      %4400 = vrot.lane.b32.xlu0 %v4293, 48
      %v4401 = vpop.permute.xlu0 %4400
      %4402 = vrot.lane.b32.xlu0 %v4298, 48
      %v4403 = vpop.permute.xlu0 %4402
      %4404 = vrot.lane.b32.xlu0 %v4303, 48
      %v4405 = vpop.permute.xlu0 %4404
      %4406 = vrot.lane.b32.xlu0 %v4308, 48
      %v4407 = vpop.permute.xlu0 %4406
      %4408 = vrot.lane.b32.xlu0 %v4313, 48
      %v4409 = vpop.permute.xlu0 %4408
      %4410 = vrot.lane.b32.xlu0 %v4318, 48
      %v4411 = vpop.permute.xlu0 %4410
      %4412 = vrot.lane.b32.xlu0 %v4323, 48
      %v4413 = vpop.permute.xlu0 %4412
      %vm4422 = vcmask 130048
      %v4423 = vsel %vm4422, %v1717, %v4335
      %v4424 = vsel %vm4422, %v1722, %v4337
      %v4425 = vsel %vm4422, %v1727, %v4339
      %v4426 = vsel %vm4422, %v1732, %v4341
      %v4427 = vsel %vm4422, %v1737, %v4343
      %v4428 = vsel %vm4422, %v1742, %v4345
      %v4429 = vsel %vm4422, %v1747, %v4347
      %v4430 = vsel %vm4422, %v1752, %v4349
      %vm4431 = vcmask 261120
      %v4432 = vsel %vm4431, %v4423, %v4367
      %v4433 = vsel %vm4431, %v4424, %v4369
      %v4434 = vsel %vm4431, %v4425, %v4371
      %v4435 = vsel %vm4431, %v4426, %v4373
      %v4436 = vsel %vm4431, %v4427, %v4375
      %v4437 = vsel %vm4431, %v4428, %v4377
      %v4438 = vsel %vm4431, %v4429, %v4379
      %v4439 = vsel %vm4431, %v4430, %v4381
      %vm4440 = vcmask 392192
      %v4441 = vsel %vm4440, %v4432, %v4399
      %v4442 = vsel %vm4440, %v4433, %v4401
      %v4443 = vsel %vm4440, %v4434, %v4403
      %v4444 = vsel %vm4440, %v4435, %v4405
      %v4445 = vsel %vm4440, %v4436, %v4407
      %v4446 = vsel %vm4440, %v4437, %v4409
      %v4447 = vsel %vm4440, %v4438, %v4411
      %v4448 = vsel %vm4440, %v4439, %v4413
      %v4449 = vpack.c.bf16 %v4442, %v4441
      %v4450 = vpack.c.bf16 %v4444, %v4443
      %v4451 = vpack.c.bf16 %v4446, %v4445
      %v4452 = vpack.c.bf16 %v4448, %v4447
      %v4453 = vld [vmem:[%s4] sm:$0xf]
      %v4454 = vld [vmem:[%s4 + $0x4] sm:$0xf]
      %v4455 = vld [vmem:[%s4 + $0x8] sm:$0xf]
      %v4456 = vld [vmem:[%s4 + $0xc] sm:$0xf]
      %v4457 = vld [vmem:[%s4 + $0x10] sm:$0xf]
      %v4458 = vld [vmem:[%s4 + $0x14] sm:$0xf]
      %v4459 = vld [vmem:[%s4 + $0x18] sm:$0xf]
      %v4460 = vld [vmem:[%s4 + $0x1c] sm:$0xf]
      %v4469 = vunpack.c.l.b16 %v4453
      %v4470 = vunpack.c.l.b16 %v4454
      %v4471 = vunpack.c.l.b16 %v4455
      %v4472 = vunpack.c.l.b16 %v4456
      %v4473 = vunpack.c.l.b16 %v4457
      %v4474 = vunpack.c.l.b16 %v4458
      %v4475 = vunpack.c.l.b16 %v4459
      %v4476 = vunpack.c.l.b16 %v4460
      %v4477 = vpack.c.b16 %v4470, %v4469
      %v4478 = vpack.c.b16 %v4472, %v4471
      %v4479 = vpack.c.b16 %v4474, %v4473
      %v4480 = vpack.c.b16 %v4476, %v4475
      %v4486 = vsel %vm394, %v4449, 0
      %v4489 = vsel %vm394, %v4450, 0
      %v4492 = vsel %vm394, %v4451, 0
      %v4495 = vsel %vm394, %v4452, 0
      %4497 = vmatprep.subr.bf16.mxu0 0
      %4498 = vmatpush1.bf16.msra.mxu0 %v4477
      %4499 = vmatprep.subr.bf16.mxu0 0
      %4500 = vmatpush1.bf16.msra.mxu0 %v4478
      %4501 = vmatprep.subr.bf16.mxu0 0
      %4502 = vmatpush1.bf16.msra.mxu0 %v4479
      %4503 = vmatprep.subr.bf16.mxu0 0
      %4504 = vmatpush1.bf16.msra.mxu0 %v4480
      %4505 = vmatprep.subr.bf16.mxu0 0
      %4506 = vmatpush1.bf16.msra.mxu0 0
      %4507 = vmatprep.subr.bf16.mxu0 0
      %4508 = vmatpush1.bf16.msra.mxu0 0
      %4509 = vmatprep.subr.bf16.mxu0 0
      %4510 = vmatpush1.bf16.msra.mxu0 0
      %4511 = vmatprep.subr.bf16.mxu0 0
      %4512 = vmatpush1.bf16.msra.mxu0 0
      %4513 = vmatprep.subr.bf16.mxu0 0
      %4514 = vmatpush1.bf16.msra.mxu0 0
      %4515 = vmatprep.subr.bf16.mxu0 0
      %4516 = vmatpush1.bf16.msra.mxu0 0
      %4517 = vmatprep.subr.bf16.mxu0 0
      %4518 = vmatpush1.bf16.msra.mxu0 0
      %4519 = vmatprep.subr.bf16.mxu0 0
      %4520 = vmatpush1.bf16.msra.mxu0 0
      %4521 = vmatprep.subr.bf16.mxu0 0
      %4522 = vmatpush1.bf16.msra.mxu0 0
      %4523 = vmatprep.subr.bf16.mxu0 0
      %4524 = vmatpush1.bf16.msra.mxu0 0
      %4525 = vmatprep.subr.bf16.mxu0 0
      %4526 = vmatpush1.bf16.msra.mxu0 0
      %4527 = vmatprep.subr.bf16.mxu0 0
      %4528 = vmatpush1.bf16.msra.mxu0 0
      %4529 = vmatprep.mubr.bf16.mxu0 0
      %4530 = vmatmul.mubr.bf16.gmra.mrb[0].mxu0 %v4486
      %v4531 = vpop.f32.mrb[0].mxu0
      %v4532 = vadd.f32 0.0, %v4531
      %v4533 = vpop.f32.mrb[0].mxu0
      %v4534 = vpop.f32.mrb[0].mxu0
      %v4535 = vadd.f32 0.0, %v4534
      %v4536 = vpop.f32.mrb[0].mxu0
      %4537 = vmatprep.mubr.bf16.mxu0 0
      %4538 = vmatmul.mubr.bf16.gmra.mrb[0].mxu0 %v4489
      %v4539 = vpop.f32.mrb[0].mxu0
      %v4540 = vadd.f32 0.0, %v4539
      %v4541 = vpop.f32.mrb[0].mxu0
      %v4542 = vpop.f32.mrb[0].mxu0
      %v4543 = vadd.f32 0.0, %v4542
      %v4544 = vpop.f32.mrb[0].mxu0
      %4545 = vmatprep.mubr.bf16.mxu0 0
      %4546 = vmatmul.mubr.bf16.gmra.mrb[0].mxu0 %v4492
      %v4547 = vpop.f32.mrb[0].mxu0
      %v4548 = vadd.f32 0.0, %v4547
      %v4549 = vpop.f32.mrb[0].mxu0
      %v4550 = vpop.f32.mrb[0].mxu0
      %v4551 = vadd.f32 0.0, %v4550
      %v4552 = vpop.f32.mrb[0].mxu0
      %4553 = vmatprep.mubr.bf16.mxu0 0
      %4554 = vmatmul.mubr.bf16.gmra.mrb[0].mxu0 %v4495
      %v4555 = vpop.f32.mrb[0].mxu0
      %v4556 = vadd.f32 0.0, %v4555
      %v4557 = vpop.f32.mrb[0].mxu0
      %v4558 = vpop.f32.mrb[0].mxu0
      %v4559 = vadd.f32 0.0, %v4558
      %v4560 = vpop.f32.mrb[0].mxu0
      %4561 = vdwg.mxu0
      %v4562 = vld [vmem:[%s5] sm:$0x1]
      %v4564 = vlaneseq
      %v4565 = vshrl.u32 %v4564, 7
      %v4566 = vsub.s32 0, %v4565
      %v4567 = vrot.slane %v4562, %v4566
      %v4569 = vmul.f32 %v4532, %v4567
      %v4570 = vmul.f32 %v4535, %v4567
      %v4571 = vmul.f32 %v4540, %v4567
      %v4572 = vmul.f32 %v4543, %v4567
      %v4573 = vmul.f32 %v4548, %v4567
      %v4574 = vmul.f32 %v4551, %v4567
      %v4575 = vmul.f32 %v4556, %v4567
      %v4576 = vmul.f32 %v4559, %v4567
      %v4577 = vld [vmem:[%s6] sm:$0x1]
      %v4579 = vlaneseq
      %v4580 = vshrl.u32 %v4579, 7
      %v4581 = vsub.s32 0, %v4580
      %v4582 = vrot.slane %v4577, %v4581
      %v4584 = vadd.f32 %v4569, %v4582
      %v4585 = vadd.f32 %v4570, %v4582
      %v4586 = vadd.f32 %v4571, %v4582
      %v4587 = vadd.f32 %v4572, %v4582
      %v4588 = vadd.f32 %v4573, %v4582
      %v4589 = vadd.f32 %v4574, %v4582
      %v4590 = vadd.f32 %v4575, %v4582
      %v4591 = vadd.f32 %v4576, %v4582
      %v4592 = vmul.f32 %v4584, 0.5
      %v4593 = vmul.f32 %v4585, 0.5
      %v4594 = vmul.f32 %v4586, 0.5
      %v4595 = vmul.f32 %v4587, 0.5
      %v4596 = vmul.f32 %v4588, 0.5
      %v4597 = vmul.f32 %v4589, 0.5
      %v4598 = vmul.f32 %v4590, 0.5
      %v4599 = vmul.f32 %v4591, 0.5
      %v4600 = vmul.f32 %v4584, 0.70710677
      %v4601 = vmul.f32 %v4585, 0.70710677
      %v4602 = vmul.f32 %v4586, 0.70710677
      %v4603 = vmul.f32 %v4587, 0.70710677
      %v4604 = vmul.f32 %v4588, 0.70710677
      %v4605 = vmul.f32 %v4589, 0.70710677
      %v4606 = vmul.f32 %v4590, 0.70710677
      %v4607 = vmul.f32 %v4591, 0.70710677
      %vm4608 = vcmp.ge.f32.partialorder %v4600, 0.0
      %vm4609 = vcmp.ge.f32.partialorder %v4601, 0.0
      %vm4610 = vcmp.ge.f32.partialorder %v4602, 0.0
      %vm4611 = vcmp.ge.f32.partialorder %v4603, 0.0
      %vm4612 = vcmp.ge.f32.partialorder %v4604, 0.0
      %vm4613 = vcmp.ge.f32.partialorder %v4605, 0.0
      %vm4614 = vcmp.ge.f32.partialorder %v4606, 0.0
      %vm4615 = vcmp.ge.f32.partialorder %v4607, 0.0
      %v4616 = vsel %vm4608, 1.0, -1.0
      %v4617 = vsel %vm4609, 1.0, -1.0
      %v4618 = vsel %vm4610, 1.0, -1.0
      %v4619 = vsel %vm4611, 1.0, -1.0
      %v4620 = vsel %vm4612, 1.0, -1.0
      %v4621 = vsel %vm4613, 1.0, -1.0
      %v4622 = vsel %vm4614, 1.0, -1.0
      %v4623 = vsel %vm4615, 1.0, -1.0
      %v4624 = vand.u32 2147483647, %v4600
      %v4625 = vand.u32 2147483647, %v4601
      %v4626 = vand.u32 2147483647, %v4602
      %v4627 = vand.u32 2147483647, %v4603
      %v4628 = vand.u32 2147483647, %v4604
      %v4629 = vand.u32 2147483647, %v4605
      %v4630 = vand.u32 2147483647, %v4606
      %v4631 = vand.u32 2147483647, %v4607
      %v4632 = vmul.f32 %v4624, 0.3275911
      %v4633 = vmul.f32 %v4625, 0.3275911
      %v4634 = vmul.f32 %v4626, 0.3275911
      %v4635 = vmul.f32 %v4627, 0.3275911
      %v4636 = vmul.f32 %v4628, 0.3275911
      %v4637 = vmul.f32 %v4629, 0.3275911
      %v4638 = vmul.f32 %v4630, 0.3275911
      %v4639 = vmul.f32 %v4631, 0.3275911
      %v4640 = vadd.f32 %v4632, 1.0
      %v4641 = vadd.f32 %v4633, 1.0
      %v4642 = vadd.f32 %v4634, 1.0
      %v4643 = vadd.f32 %v4635, 1.0
      %v4644 = vadd.f32 %v4636, 1.0
      %v4645 = vadd.f32 %v4637, 1.0
      %v4646 = vadd.f32 %v4638, 1.0
      %v4647 = vadd.f32 %v4639, 1.0
      %v4648 = vrcp.pop %v4640
      %v4649 = vmul.f32 1.0, %v4648
      %v4650 = vrcp.pop %v4641
      %v4651 = vmul.f32 1.0, %v4650
      %v4652 = vrcp.pop %v4642
      %v4653 = vmul.f32 1.0, %v4652
      %v4654 = vrcp.pop %v4643
      %v4655 = vmul.f32 1.0, %v4654
      %v4656 = vrcp.pop %v4644
      %v4657 = vmul.f32 1.0, %v4656
      %v4658 = vrcp.pop %v4645
      %v4659 = vmul.f32 1.0, %v4658
      %v4660 = vrcp.pop %v4646
      %v4661 = vmul.f32 1.0, %v4660
      %v4662 = vrcp.pop %v4647
      %v4663 = vmul.f32 1.0, %v4662
      %v4664 = vmul.f32 %v4649, 1.0614054
      %v4665 = vmul.f32 %v4651, 1.0614054
      %v4666 = vmul.f32 %v4653, 1.0614054
      %v4667 = vmul.f32 %v4655, 1.0614054
      %v4668 = vmul.f32 %v4657, 1.0614054
      %v4669 = vmul.f32 %v4659, 1.0614054
      %v4670 = vmul.f32 %v4661, 1.0614054
      %v4671 = vmul.f32 %v4663, 1.0614054
      %v4672 = vadd.f32 %v4664, -1.4531521
      %v4673 = vadd.f32 %v4665, -1.4531521
      %v4674 = vadd.f32 %v4666, -1.4531521
      %v4675 = vadd.f32 %v4667, -1.4531521
      %v4676 = vadd.f32 %v4668, -1.4531521
      %v4677 = vadd.f32 %v4669, -1.4531521
      %v4678 = vadd.f32 %v4670, -1.4531521
      %v4679 = vadd.f32 %v4671, -1.4531521
      %v4680 = vmul.f32 %v4672, %v4649
      %v4681 = vmul.f32 %v4673, %v4651
      %v4682 = vmul.f32 %v4674, %v4653
      %v4683 = vmul.f32 %v4675, %v4655
      %v4684 = vmul.f32 %v4676, %v4657
      %v4685 = vmul.f32 %v4677, %v4659
      %v4686 = vmul.f32 %v4678, %v4661
      %v4687 = vmul.f32 %v4679, %v4663
      %v4688 = vadd.f32 %v4680, 1.4214138
      %v4689 = vadd.f32 %v4681, 1.4214138
      %v4690 = vadd.f32 %v4682, 1.4214138
      %v4691 = vadd.f32 %v4683, 1.4214138
      %v4692 = vadd.f32 %v4684, 1.4214138
      %v4693 = vadd.f32 %v4685, 1.4214138
      %v4694 = vadd.f32 %v4686, 1.4214138
      %v4695 = vadd.f32 %v4687, 1.4214138
      %v4696 = vmul.f32 %v4688, %v4649
      %v4697 = vmul.f32 %v4689, %v4651
      %v4698 = vmul.f32 %v4690, %v4653
      %v4699 = vmul.f32 %v4691, %v4655
      %v4700 = vmul.f32 %v4692, %v4657
      %v4701 = vmul.f32 %v4693, %v4659
      %v4702 = vmul.f32 %v4694, %v4661
      %v4703 = vmul.f32 %v4695, %v4663
      %v4704 = vadd.f32 %v4696, -0.28449672
      %v4705 = vadd.f32 %v4697, -0.28449672
      %v4706 = vadd.f32 %v4698, -0.28449672
      %v4707 = vadd.f32 %v4699, -0.28449672
      %v4708 = vadd.f32 %v4700, -0.28449672
      %v4709 = vadd.f32 %v4701, -0.28449672
      %v4710 = vadd.f32 %v4702, -0.28449672
      %v4711 = vadd.f32 %v4703, -0.28449672
      %v4712 = vmul.f32 %v4704, %v4649
      %v4713 = vmul.f32 %v4705, %v4651
      %v4714 = vmul.f32 %v4706, %v4653
      %v4715 = vmul.f32 %v4707, %v4655
      %v4716 = vmul.f32 %v4708, %v4657
      %v4717 = vmul.f32 %v4709, %v4659
      %v4718 = vmul.f32 %v4710, %v4661
      %v4719 = vmul.f32 %v4711, %v4663
      %v4720 = vadd.f32 %v4712, 0.2548296
      %v4721 = vadd.f32 %v4713, 0.2548296
      %v4722 = vadd.f32 %v4714, 0.2548296
      %v4723 = vadd.f32 %v4715, 0.2548296
      %v4724 = vadd.f32 %v4716, 0.2548296
      %v4725 = vadd.f32 %v4717, 0.2548296
      %v4726 = vadd.f32 %v4718, 0.2548296
      %v4727 = vadd.f32 %v4719, 0.2548296
      %v4728 = vmul.f32 %v4720, %v4649
      %v4729 = vmul.f32 %v4721, %v4651
      %v4730 = vmul.f32 %v4722, %v4653
      %v4731 = vmul.f32 %v4723, %v4655
      %v4732 = vmul.f32 %v4724, %v4657
      %v4733 = vmul.f32 %v4725, %v4659
      %v4734 = vmul.f32 %v4726, %v4661
      %v4735 = vmul.f32 %v4727, %v4663
      %v4736 = vsub.f32 0.0, %v4624
      %v4737 = vsub.f32 0.0, %v4625
      %v4738 = vsub.f32 0.0, %v4626
      %v4739 = vsub.f32 0.0, %v4627
      %v4740 = vsub.f32 0.0, %v4628
      %v4741 = vsub.f32 0.0, %v4629
      %v4742 = vsub.f32 0.0, %v4630
      %v4743 = vsub.f32 0.0, %v4631
      %v4744 = vmul.f32 %v4736, %v4624
      %v4745 = vmul.f32 %v4737, %v4625
      %v4746 = vmul.f32 %v4738, %v4626
      %v4747 = vmul.f32 %v4739, %v4627
      %v4748 = vmul.f32 %v4740, %v4628
      %v4749 = vmul.f32 %v4741, %v4629
      %v4750 = vmul.f32 %v4742, %v4630
      %v4751 = vmul.f32 %v4743, %v4631
      %v4752 = vmul.f32 %v4744, 1.442695
      %v4753 = vpow.pop %v4752
      %v4754 = vmul.f32 %v4745, 1.442695
      %v4755 = vpow.pop %v4754
      %v4756 = vmul.f32 %v4746, 1.442695
      %v4757 = vpow.pop %v4756
      %v4758 = vmul.f32 %v4747, 1.442695
      %v4759 = vpow.pop %v4758
      %v4760 = vmul.f32 %v4748, 1.442695
      %v4761 = vpow.pop %v4760
      %v4762 = vmul.f32 %v4749, 1.442695
      %v4763 = vpow.pop %v4762
      %v4764 = vmul.f32 %v4750, 1.442695
      %v4765 = vpow.pop %v4764
      %v4766 = vmul.f32 %v4751, 1.442695
      %v4767 = vpow.pop %v4766
      %v4768 = vmul.f32 %v4728, %v4753
      %v4769 = vmul.f32 %v4729, %v4755
      %v4770 = vmul.f32 %v4730, %v4757
      %v4771 = vmul.f32 %v4731, %v4759
      %v4772 = vmul.f32 %v4732, %v4761
      %v4773 = vmul.f32 %v4733, %v4763
      %v4774 = vmul.f32 %v4734, %v4765
      %v4775 = vmul.f32 %v4735, %v4767
      %v4776 = vsub.f32 1.0, %v4768
      %v4777 = vsub.f32 1.0, %v4769
      %v4778 = vsub.f32 1.0, %v4770
      %v4779 = vsub.f32 1.0, %v4771
      %v4780 = vsub.f32 1.0, %v4772
      %v4781 = vsub.f32 1.0, %v4773
      %v4782 = vsub.f32 1.0, %v4774
      %v4783 = vsub.f32 1.0, %v4775
      %v4784 = vmul.f32 %v4616, %v4776
      %v4785 = vmul.f32 %v4617, %v4777
      %v4786 = vmul.f32 %v4618, %v4778
      %v4787 = vmul.f32 %v4619, %v4779
      %v4788 = vmul.f32 %v4620, %v4780
      %v4789 = vmul.f32 %v4621, %v4781
      %v4790 = vmul.f32 %v4622, %v4782
      %v4791 = vmul.f32 %v4623, %v4783
      %v4792 = vadd.f32 %v4784, 1.0
      %v4793 = vadd.f32 %v4785, 1.0
      %v4794 = vadd.f32 %v4786, 1.0
      %v4795 = vadd.f32 %v4787, 1.0
      %v4796 = vadd.f32 %v4788, 1.0
      %v4797 = vadd.f32 %v4789, 1.0
      %v4798 = vadd.f32 %v4790, 1.0
      %v4799 = vadd.f32 %v4791, 1.0
      %v4800 = vmul.f32 %v4592, %v4792
      %v4801 = vmul.f32 %v4593, %v4793
      %v4802 = vmul.f32 %v4594, %v4794
      %v4803 = vmul.f32 %v4595, %v4795
      %v4804 = vmul.f32 %v4596, %v4796
      %v4805 = vmul.f32 %v4597, %v4797
      %v4806 = vmul.f32 %v4598, %v4798
      %v4807 = vmul.f32 %v4599, %v4799
      %4808 = vst.msk [vmem:[%s336] sm:$0xff] %vm4431, %v4800
      %4809 = vst.msk [vmem:[%s336 + $0x8] sm:$0xff] %vm4431, %v4801
      %4810 = vst.msk [vmem:[%s336 + $0x10] sm:$0xff] %vm4431, %v4802
      %4811 = vst.msk [vmem:[%s336 + $0x18] sm:$0xff] %vm4431, %v4803
      %4812 = vst.msk [vmem:[%s336 + $0x20] sm:$0xff] %vm4431, %v4804
      %4813 = vst.msk [vmem:[%s336 + $0x28] sm:$0xff] %vm4431, %v4805
      %4814 = vst.msk [vmem:[%s336 + $0x30] sm:$0xff] %vm4431, %v4806
      %4815 = vst.msk [vmem:[%s336 + $0x38] sm:$0xff] %vm4431, %v4807
      %s4816 = smul.u32 8, %s23
      %p4817 = scmp.lt.s32.totalorder %s22, 1
      %s4818 = scalar_select %p4817, %s22, 1
      %p4819 = scmp.lt.s32.totalorder %s4816, 7
      %s4820 = scalar_select %p4819, %s4816, 7
      %s4821 = smul.addr %s4818, 8
      %s4822 = sadd.s32 %s4820, %s4821
      %s4823 = smul.addr %s4822, 8
      %s4824 = scalar_lea.vmem %s7, %s4823
      // Predicated region
      $region49: #{tpu_custom_call.1} parent=47 // pred_check
        %p4825 = pneg %p209
      $region50: #{tpu_custom_call.1} parent=47 // pred_check_branch
        %4827 = sbr.rel (%p4825) target = $region52
      $region51: #{tpu_custom_call.1} parent=47 // pred_region
        %s4828 = smul.u32 8, %s23
      $region52: #{tpu_custom_call.1} parent=47 // pred_fallthru
        _
    $region48: #{tpu_custom_call.1} parent=5 // pred_fallthru
      _
    %p4829 = scmp.le.s32.totalorder 2, %s13
    // Predicated region
    $region53: #{tpu_custom_call.1} parent=5 // pred_check
      %p4830 = pneg %p4829
    $region54: #{tpu_custom_call.1} parent=5 // pred_check_branch
      %4832 = sbr.rel (%p4830) target = $region56
    $region55: #{tpu_custom_call.1} parent=5 // pred_region
      %s4833 = ssub.s32 %s13, 2
      // Predicated region
      $region57: #{tpu_custom_call.1} parent=55 // pred_check
        %p4834 = pneg %p215
      $region58: #{tpu_custom_call.1} parent=55 // pred_check_branch
        %4836 = sbr.rel (%p4834) target = $region60
      $region59: #{tpu_custom_call.1} parent=55 // pred_region
        %s4837 = smul.u32 8, %s25
        %p4838 = scmp.lt.s32.totalorder %s24, 1
        %s4839 = scalar_select %p4838, %s24, 1
        %p4840 = scmp.lt.s32.totalorder %s4837, 7
        %s4841 = scalar_select %p4840, %s4837, 7
        %s4842 = smul.addr %s4839, 8
        %s4843 = sadd.s32 %s4841, %s4842
        %s4844 = smul.addr %s4843, 8
        %s4845 = scalar_lea.vmem %s7, %s4844
      $region60: #{tpu_custom_call.1} parent=55 // pred_fallthru
        _
    $region56: #{tpu_custom_call.1} parent=5 // pred_fallthru
      _
  $region6: #{tpu_custom_call.1} parent=0 // loop_footer
    %s17 = sadd.s32 1, %s13
  $region7: #{tpu_custom_call.1} parent=0 // loop_footer_branch
    %12 = sbr.rel target = $region3
  $region8: #{tpu_custom_call.1} parent=0 // loop_exit
    _

</llo_original>
